<compile_context>
chip_gen: v7x
topology: tpu7x:2x2x1
jax: 0.10.0
libtpu: 0.0.40
codegen_flags: <defaults>
</compile_context>

<pallas_src>
import numpy as np
import jax
import jax.numpy as jnp
from jax.experimental import pallas as pl
from jax.experimental.pallas import tpu as pltpu


# --------------------------------------------------------------------------------------
# kornia Rescale(0.5, bilinear, antialias=True) folded into one (n/2, n) matrix per axis:
# gaussian_blur (3-tap, sigma=(1/scale-1)/2=0.5, reflect pad) followed by the bilinear
# 0.5x resample (align_corners=False == 2x2 average).  Both steps are linear.
# TODO(synk): blur ksize/sigma chosen to match kornia's antialias heuristics for
#             factor=0.5; not verified numerically against kornia here.
# --------------------------------------------------------------------------------------
def _rescale_matrix(n):
    sigma = 0.5
    xs = np.arange(3, dtype=np.float64) - 1.0
    g = np.exp(-(xs ** 2) / (2.0 * sigma ** 2))
    g = g / g.sum()
    B = np.zeros((n, n), dtype=np.float64)          # 3-tap blur, reflect padding
    for i in range(n):
        for t, off in zip(g, (-1, 0, 1)):
            j = i + off
            if j < 0:
                j = -j
            if j > n - 1:
                j = 2 * (n - 1) - j
            B[i, j] += t
    m = n // 2
    D = np.zeros((m, n), dtype=np.float64)          # bilinear /2, align_corners=False
    for i in range(m):
        D[i, 2 * i] = 0.5
        D[i, 2 * i + 1] = 0.5
    return (D @ B).astype(np.float32)


# --------------------------------------------------------------------------------------
# Fused kernel: niters x (conv + GroupNorm + ReLU) + rescale, one batch element per step.
# --------------------------------------------------------------------------------------
def _make_fused_kernel(layer_meta, H, W, K, pad, eps):
    L = len(layer_meta)

    def kernel(*refs):
        x_ref, r_ref, sb_ref = refs[0], refs[1], refs[2]
        layer_refs = [refs[3 + 5 * l: 3 + 5 * (l + 1)] for l in range(L)]
        out_down_ref = refs[3 + 5 * L]
        out_skip_ref = refs[3 + 5 * L + 1]
        pad_refs = refs[3 + 5 * L + 2:]

        # Stage the layer-0 input into its zero-padded VMEM buffer (halo handled here).
        cin0 = layer_meta[0][0]
        buf = pad_refs[0]
        buf[...] = jnp.zeros_like(buf)
        buf[pad:pad + H, pad * cin0: pad * cin0 + W * cin0] = x_ref[0]

        y = None
        for l, (cin, cout, groups) in enumerate(layer_meta):
            wb_ref, b_ref, gam_ref, bet_ref, msk_ref = layer_refs[l]
            cg = cout // groups

            # Conv2d as K banded matmuls into a lane-dense (H, W*Cout) accumulator.
            acc = jnp.zeros((H, W * cout), jnp.float32)
            for kh in range(K):
                acc = acc + jnp.dot(buf[kh:kh + H, :], wb_ref[kh],
                                    preferred_element_type=jnp.float32)
            acc = acc + b_ref[...]                                  # (1, W*Cout) bias

            # GroupNorm (biased variance, eps=1e-5) via lane-masked VPU reductions.
            col_sum = jnp.sum(acc, axis=0, keepdims=True)           # (1, W*Cout)
            col_sumsq = jnp.sum(acc * acc, axis=0, keepdims=True)
            denom = float(H * W * cg)
            mask = msk_ref[...]                                     # (G, W*Cout)
            mean_b = jnp.zeros((1, W * cout), jnp.float32)
            inv_b = jnp.zeros((1, W * cout), jnp.float32)
            for g in range(groups):
                mg = mask[g:g + 1, :]
                mu = jnp.sum(col_sum * mg, keepdims=True) / denom       # (1, 1)
                ex2 = jnp.sum(col_sumsq * mg, keepdims=True) / denom    # (1, 1)
                var = jnp.maximum(ex2 - mu * mu, 0.0)
                mean_b = mean_b + mg * mu
                inv_b = inv_b + mg * jax.lax.rsqrt(var + eps)
            y = (acc - mean_b) * inv_b * gam_ref[...] + bet_ref[...]
            y = jnp.maximum(y, 0.0)                                 # ReLU

            if l + 1 < L:
                # Ping into the next layer's zero-padded VMEM buffer (stays on-chip).
                nbuf = pad_refs[l + 1]
                nbuf[...] = jnp.zeros_like(nbuf)
                nbuf[pad:pad + H, pad * cout: pad * cout + W * cout] = y
                buf = nbuf

        # Skip output: lane-dense (H, W*Cout) = (16, 128) unmasked stores.
        out_skip_ref[0] = y
        # Fused antialiased 0.5x rescale: down = R @ Y @ Sb.
        t = jnp.dot(r_ref[...], y, preferred_element_type=jnp.float32)
        out_down_ref[0] = jnp.dot(t, sb_ref[...], preferred_element_type=jnp.float32)

    return kernel


def encoder_block_forward(x_nchw, conv_params, eps=1e-5):
    N, Cin0, H, W = x_nchw.shape
    K = conv_params[0][0].shape[0]
    pad = (K - 1) // 2
    Hp, Wp = H + 2 * pad, W + 2 * pad
    Hh, Wh = H // 2, W // 2
    Cout_last = conv_params[-1][0].shape[-1]

    # NCHW -> lane-dense (N, H, W*Cin) once, at the module boundary.
    x_flat = jnp.transpose(x_nchw, (0, 2, 3, 1)).reshape(N, H, W * Cin0)
    x_flat = x_flat.astype(jnp.float32)

    # Column-selection tensor for banded conv weights: Sel[kw, wp, w] = [wp == w + kw].
    kw_i = np.arange(K)[:, None, None]
    wp_i = np.arange(Wp)[None, :, None]
    w_i = np.arange(W)[None, None, :]
    sel = jnp.asarray((wp_i == w_i + kw_i).astype(np.float32))      # (K, Wp, W)

    # Antialiased 0.5x rescale operators (host constants).
    R_np = _rescale_matrix(H)                                       # (Hh, H)
    S_np = _rescale_matrix(W)                                       # (Wh, W)
    R = jnp.asarray(R_np)
    Sb = jnp.asarray(np.kron(S_np.T, np.eye(Cout_last, dtype=np.float32)))  # (W*C, Wh*C)

    inputs = [x_flat, R, Sb]
    in_specs = [
        pl.BlockSpec((1, H, W * Cin0), lambda n: (n, 0, 0)),
        pl.BlockSpec((Hh, H), lambda n: (0, 0)),
        pl.BlockSpec((W * Cout_last, Wh * Cout_last), lambda n: (0, 0)),
    ]

    layer_meta = []
    scratch = []
    for (w, b, gamma, beta, groups) in conv_params:
        cin, cout = w.shape[2], w.shape[3]
        cg = cout // groups
        # Banded weights: B[kh, wp*Cin + ci, w*Cout + co] = W[kh, wp - w, ci, co]
        wb = jnp.einsum('kvw,hkio->hviwo', sel, w.astype(jnp.float32))
        wb = wb.reshape(K, Wp * cin, W * cout)
        b_t = jnp.tile(b.astype(jnp.float32), W).reshape(1, W * cout)
        g_t = jnp.tile(gamma.astype(jnp.float32), W).reshape(1, W * cout)
        be_t = jnp.tile(beta.astype(jnp.float32), W).reshape(1, W * cout)
        gidx = np.arange(cout) // cg
        msk = np.stack([np.tile((gidx == g).astype(np.float32), W)
                        for g in range(groups)])                    # (G, W*Cout)

        inputs += [wb, b_t, g_t, be_t, jnp.asarray(msk)]
        in_specs += [
            pl.BlockSpec((K, Wp * cin, W * cout), lambda n: (0, 0, 0)),
            pl.BlockSpec((1, W * cout), lambda n: (0, 0)),
            pl.BlockSpec((1, W * cout), lambda n: (0, 0)),
            pl.BlockSpec((1, W * cout), lambda n: (0, 0)),
            pl.BlockSpec((groups, W * cout), lambda n: (0, 0)),
        ]
        scratch.append(pltpu.VMEM((Hp, Wp * cin), jnp.float32))
        layer_meta.append((cin, cout, groups))

    kernel = _make_fused_kernel(layer_meta, H, W, K, pad, eps)

    down_flat, skip_flat = pl.pallas_call(
        kernel,
        out_shape=(jax.ShapeDtypeStruct((N, Hh, Wh * Cout_last), jnp.float32),
                   jax.ShapeDtypeStruct((N, H, W * Cout_last), jnp.float32)),
        grid=(N,),
        in_specs=in_specs,
        out_specs=(pl.BlockSpec((1, Hh, Wh * Cout_last), lambda n: (n, 0, 0)),
                   pl.BlockSpec((1, H, W * Cout_last), lambda n: (n, 0, 0))),
        scratch_shapes=scratch,
        compiler_params=pltpu.CompilerParams(dimension_semantics=("parallel",)),
    )(*inputs)

    x_down = down_flat.reshape(N, Hh, Wh, Cout_last).transpose(0, 3, 1, 2)
    skip = skip_flat.reshape(N, H, W, Cout_last).transpose(0, 3, 1, 2)
    return x_down, skip


# --------------------------------------------------------------------------------------
# Pure-JAX reference (for a loose numerical self-check) + parameter init.
# --------------------------------------------------------------------------------------
def _reference_forward(x_nchw, conv_params, R, S, eps=1e-5):
    pad = (conv_params[0][0].shape[0] - 1) // 2
    x = jnp.transpose(x_nchw, (0, 2, 3, 1)).astype(jnp.float32)     # NHWC
    for (w, b, gamma, beta, groups) in conv_params:
        y = jax.lax.conv_general_dilated(
            x, w.astype(jnp.float32), window_strides=(1, 1),
            padding=((pad, pad), (pad, pad)),
            dimension_numbers=('NHWC', 'HWIO', 'NHWC'),
            precision=jax.lax.Precision.HIGHEST)
        y = y + b
        Nn, Hh_, Ww_, Cc = y.shape
        cg = Cc // groups
        yg = y.reshape(Nn, Hh_, Ww_, groups, cg)
        mu = jnp.mean(yg, axis=(1, 2, 4), keepdims=True)
        var = jnp.mean((yg - mu) ** 2, axis=(1, 2, 4), keepdims=True)
        yg = (yg - mu) * jax.lax.rsqrt(var + eps)
        y = yg.reshape(Nn, Hh_, Ww_, Cc) * gamma + beta
        x = jnp.maximum(y, 0.0)
    skip = jnp.transpose(x, (0, 3, 1, 2))                           # NCHW
    down = jnp.einsum('ph,qw,nchw->ncpq', R, S, skip)
    return down, skip


def init_params(key, in_ch, mid_ch, out_ch, niters, k, group_size):
    chans = [in_ch] + [mid_ch] * (niters - 1) + [out_ch]
    params = []
    for i in range(niters):
        cin, cout = chans[i], chans[i + 1]
        key, kw_, kb_ = jax.random.split(key, 3)
        w = jax.random.normal(kw_, (k, k, cin, cout), jnp.float32) * 0.1   # HWIO
        b = jax.random.normal(kb_, (cout,), jnp.float32) * 0.1
        gamma = jnp.ones((cout,), jnp.float32)
        beta = jnp.zeros((cout,), jnp.float32)
        groups = int(max(1, cout / group_size))
        params.append((w, b, gamma, beta, groups))
    return params


if __name__ == "__main__":
    key = jax.random.PRNGKey(0)
    k_x, k_p = jax.random.split(key)

    N, IN_CH, H, W = 2, 4, 16, 16
    MID_CH, OUT_CH, NITERS, KSIZE, GROUP_SIZE = 8, 8, 3, 3, 4

    x = jax.random.normal(k_x, (N, IN_CH, H, W), jnp.float32)
    params = init_params(k_p, IN_CH, MID_CH, OUT_CH, NITERS, KSIZE, GROUP_SIZE)

    x_down, skip = encoder_block_forward(x, params)
    jax.block_until_ready((x_down, skip))

    assert x_down.shape == (N, OUT_CH, H // 2, W // 2), x_down.shape
    assert skip.shape == (N, OUT_CH, H, W), skip.shape
    assert bool(jnp.all(jnp.isfinite(x_down))) and bool(jnp.all(jnp.isfinite(skip)))

    # Loose numerical self-check against a pure-JAX reference (catches layout /
    # banding / mask bugs; tolerance is generous to allow MXU precision differences).
    ref_down, ref_skip = _reference_forward(
        x, params, jnp.asarray(_rescale_matrix(H)), jnp.asarray(_rescale_matrix(W)))
    err_d = float(jnp.max(jnp.abs(x_down - ref_down)))
    err_s = float(jnp.max(jnp.abs(skip - ref_skip)))
    assert err_d < 0.15 and err_s < 0.15, (err_d, err_s)

    print("KERNEL_OK")
</pallas_src>

<mosaic_0001>
module attributes {stable_mosaic.version = 11 : i64} {
  func.func @kernel(%arg0: i32, %arg1: memref<1x16x64xf32, #tpu.memory_space<vmem>>, %arg2: memref<8x16xf32, #tpu.memory_space<vmem>>, %arg3: memref<128x64xf32, #tpu.memory_space<vmem>>, %arg4: memref<3x72x128xf32, #tpu.memory_space<vmem>>, %arg5: memref<1x128xf32, #tpu.memory_space<vmem>>, %arg6: memref<1x128xf32, #tpu.memory_space<vmem>>, %arg7: memref<1x128xf32, #tpu.memory_space<vmem>>, %arg8: memref<2x128xf32, #tpu.memory_space<vmem>>, %arg9: memref<3x144x128xf32, #tpu.memory_space<vmem>>, %arg10: memref<1x128xf32, #tpu.memory_space<vmem>>, %arg11: memref<1x128xf32, #tpu.memory_space<vmem>>, %arg12: memref<1x128xf32, #tpu.memory_space<vmem>>, %arg13: memref<2x128xf32, #tpu.memory_space<vmem>>, %arg14: memref<3x144x128xf32, #tpu.memory_space<vmem>>, %arg15: memref<1x128xf32, #tpu.memory_space<vmem>>, %arg16: memref<1x128xf32, #tpu.memory_space<vmem>>, %arg17: memref<1x128xf32, #tpu.memory_space<vmem>>, %arg18: memref<2x128xf32, #tpu.memory_space<vmem>>, %arg19: memref<1x8x64xf32, #tpu.memory_space<vmem>>, %arg20: memref<1x16x128xf32, #tpu.memory_space<vmem>>, %arg21: memref<18x72xf32, #tpu.memory_space<vmem>>, %arg22: memref<18x144xf32, #tpu.memory_space<vmem>>, %arg23: memref<18x144xf32, #tpu.memory_space<vmem>>) attributes {dimension_semantics = [#tpu.dimension_semantics<parallel>], iteration_bounds = array<i64: 2>, scalar_prefetch = 0 : i64, scratch_operands = 3 : i64, tpu.core_type = #tpu.core_type<tc>, window_params = [{transform_indices = @transform_0, window_bounds = array<i64: 1, 16, 64>}, {pipeline_mode = #tpu.pipeline_mode<synchronous>, transform_indices = @transform_1, window_bounds = array<i64: 8, 16>}, {pipeline_mode = #tpu.pipeline_mode<synchronous>, transform_indices = @transform_2, window_bounds = array<i64: 128, 64>}, {pipeline_mode = #tpu.pipeline_mode<synchronous>, transform_indices = @transform_3, window_bounds = array<i64: 3, 72, 128>}, {pipeline_mode = #tpu.pipeline_mode<synchronous>, transform_indices = @transform_4, window_bounds = array<i64: 1, 128>}, {pipeline_mode = #tpu.pipeline_mode<synchronous>, transform_indices = @transform_5, window_bounds = array<i64: 1, 128>}, {pipeline_mode = #tpu.pipeline_mode<synchronous>, transform_indices = @transform_6, window_bounds = array<i64: 1, 128>}, {pipeline_mode = #tpu.pipeline_mode<synchronous>, transform_indices = @transform_7, window_bounds = array<i64: 2, 128>}, {pipeline_mode = #tpu.pipeline_mode<synchronous>, transform_indices = @transform_8, window_bounds = array<i64: 3, 144, 128>}, {pipeline_mode = #tpu.pipeline_mode<synchronous>, transform_indices = @transform_9, window_bounds = array<i64: 1, 128>}, {pipeline_mode = #tpu.pipeline_mode<synchronous>, transform_indices = @transform_10, window_bounds = array<i64: 1, 128>}, {pipeline_mode = #tpu.pipeline_mode<synchronous>, transform_indices = @transform_11, window_bounds = array<i64: 1, 128>}, {pipeline_mode = #tpu.pipeline_mode<synchronous>, transform_indices = @transform_12, window_bounds = array<i64: 2, 128>}, {pipeline_mode = #tpu.pipeline_mode<synchronous>, transform_indices = @transform_13, window_bounds = array<i64: 3, 144, 128>}, {pipeline_mode = #tpu.pipeline_mode<synchronous>, transform_indices = @transform_14, window_bounds = array<i64: 1, 128>}, {pipeline_mode = #tpu.pipeline_mode<synchronous>, transform_indices = @transform_15, window_bounds = array<i64: 1, 128>}, {pipeline_mode = #tpu.pipeline_mode<synchronous>, transform_indices = @transform_16, window_bounds = array<i64: 1, 128>}, {pipeline_mode = #tpu.pipeline_mode<synchronous>, transform_indices = @transform_17, window_bounds = array<i64: 2, 128>}, {transform_indices = @transform_18, window_bounds = array<i64: 1, 8, 64>}, {transform_indices = @transform_19, window_bounds = array<i64: 1, 16, 128>}]} {
    %cst = arith.constant 0.000000e+00 : f32
    %0 = vector.broadcast %cst : f32 to vector<18x72xf32>
    %c0 = arith.constant 0 : index
    %c0_0 = arith.constant 0 : index
    %1 = vector.load %arg21[%c0, %c0_0] : memref<18x72xf32, #tpu.memory_space<vmem>>, vector<18x72xf32>
    tpu.vector_store %arg21[%c0, %c0_0], %0 {strides = array<i32>} : memref<18x72xf32, #tpu.memory_space<vmem>>, vector<18x72xf32>,
    %c0_1 = arith.constant 0 : index
    %c0_2 = arith.constant 0 : index
    %c0_3 = arith.constant 0 : index
    %2 = vector.load %arg1[%c0_1, %c0_2, %c0_3] : memref<1x16x64xf32, #tpu.memory_space<vmem>>, vector<1x16x64xf32>
    %3 = vector.shape_cast %2 : vector<1x16x64xf32> to vector<16x64xf32>
    %c1 = arith.constant 1 : index
    %c4 = arith.constant 4 : index
    %4 = vector.load %arg21[%c1, %c4] : memref<18x72xf32, #tpu.memory_space<vmem>>, vector<16x64xf32>
    tpu.vector_store %arg21[%c1, %c4], %3 {strides = array<i32>} : memref<18x72xf32, #tpu.memory_space<vmem>>, vector<16x64xf32>,
    %cst_4 = arith.constant 0.000000e+00 : f32
    %5 = vector.broadcast %cst_4 : f32 to vector<16x128xf32>
    %c0_5 = arith.constant 0 : index
    %c0_6 = arith.constant 0 : index
    %6 = vector.load %arg21[%c0_5, %c0_6] : memref<18x72xf32, #tpu.memory_space<vmem>>, vector<16x72xf32>
    %c0_7 = arith.constant 0 : index
    %c0_8 = arith.constant 0 : index
    %c0_9 = arith.constant 0 : index
    %7 = vector.load %arg4[%c0_7, %c0_8, %c0_9] : memref<3x72x128xf32, #tpu.memory_space<vmem>>, vector<1x72x128xf32>
    %8 = vector.shape_cast %7 : vector<1x72x128xf32> to vector<72x128xf32>
    %cst_10 = arith.constant dense<0.000000e+00> : vector<16x128xf32>
    %9 = tpu.matmul %6, %8, %cst_10 {dimension_numbers = #tpu.dot_dimension_numbers<[1], [0], [0], [1], [0, 0, 1, 1], [], []>} : vector<16x72xf32>, vector<72x128xf32>, vector<16x128xf32> -> vector<16x128xf32>
    %10 = arith.addf %5, %9 : vector<16x128xf32>
    %c1_11 = arith.constant 1 : index
    %c0_12 = arith.constant 0 : index
    %11 = vector.load %arg21[%c1_11, %c0_12] : memref<18x72xf32, #tpu.memory_space<vmem>>, vector<16x72xf32>
    %c1_13 = arith.constant 1 : index
    %c0_14 = arith.constant 0 : index
    %c0_15 = arith.constant 0 : index
    %12 = vector.load %arg4[%c1_13, %c0_14, %c0_15] : memref<3x72x128xf32, #tpu.memory_space<vmem>>, vector<1x72x128xf32>
    %13 = vector.shape_cast %12 : vector<1x72x128xf32> to vector<72x128xf32>
    %cst_16 = arith.constant dense<0.000000e+00> : vector<16x128xf32>
    %14 = tpu.matmul %11, %13, %cst_16 {dimension_numbers = #tpu.dot_dimension_numbers<[1], [0], [0], [1], [0, 0, 1, 1], [], []>} : vector<16x72xf32>, vector<72x128xf32>, vector<16x128xf32> -> vector<16x128xf32>
    %15 = arith.addf %10, %14 : vector<16x128xf32>
    %c2 = arith.constant 2 : index
    %c0_17 = arith.constant 0 : index
    %16 = vector.load %arg21[%c2, %c0_17] : memref<18x72xf32, #tpu.memory_space<vmem>>, vector<16x72xf32>
    %c2_18 = arith.constant 2 : index
    %c0_19 = arith.constant 0 : index
    %c0_20 = arith.constant 0 : index
    %17 = vector.load %arg4[%c2_18, %c0_19, %c0_20] : memref<3x72x128xf32, #tpu.memory_space<vmem>>, vector<1x72x128xf32>
    %18 = vector.shape_cast %17 : vector<1x72x128xf32> to vector<72x128xf32>
    %cst_21 = arith.constant dense<0.000000e+00> : vector<16x128xf32>
    %19 = tpu.matmul %16, %18, %cst_21 {dimension_numbers = #tpu.dot_dimension_numbers<[1], [0], [0], [1], [0, 0, 1, 1], [], []>} : vector<16x72xf32>, vector<72x128xf32>, vector<16x128xf32> -> vector<16x128xf32>
    %20 = arith.addf %15, %19 : vector<16x128xf32>
    %c0_22 = arith.constant 0 : index
    %c0_23 = arith.constant 0 : index
    %21 = vector.load %arg5[%c0_22, %c0_23] : memref<1x128xf32, #tpu.memory_space<vmem>>, vector<1x128xf32>
    %22 = vector.broadcast %21 : vector<1x128xf32> to vector<16x128xf32>
    %23 = arith.addf %20, %22 : vector<16x128xf32>
    %cst_24 = arith.constant dense<0.000000e+00> : vector<128xf32>
    %24 = vector.multi_reduction <add>, %23, %cst_24 [0] : vector<16x128xf32> to vector<128xf32>
    %25 = vector.shape_cast %24 : vector<128xf32> to vector<1x128xf32>
    %26 = arith.mulf %23, %23 : vector<16x128xf32>
    %cst_25 = arith.constant dense<0.000000e+00> : vector<128xf32>
    %27 = vector.multi_reduction <add>, %26, %cst_25 [0] : vector<16x128xf32> to vector<128xf32>
    %28 = vector.shape_cast %27 : vector<128xf32> to vector<1x128xf32>
    %c0_26 = arith.constant 0 : index
    %c0_27 = arith.constant 0 : index
    %29 = vector.load %arg8[%c0_26, %c0_27] : memref<2x128xf32, #tpu.memory_space<vmem>>, vector<2x128xf32>
    %cst_28 = arith.constant 0.000000e+00 : f32
    %30 = vector.broadcast %cst_28 : f32 to vector<1x128xf32>
    %cst_29 = arith.constant 0.000000e+00 : f32
    %31 = vector.broadcast %cst_29 : f32 to vector<1x128xf32>
    %32 = vector.extract_strided_slice %29 {offsets = [0, 0], sizes = [1, 128], strides = [1, 1]} : vector<2x128xf32> to vector<1x128xf32>
    %33 = arith.mulf %25, %32 : vector<1x128xf32>
    %34 = vector.shape_cast %33 : vector<1x128xf32> to vector<1x1x128xf32>
    %cst_30 = arith.constant dense<0.000000e+00> : vector<1xf32>
    %35 = vector.multi_reduction <add>, %34, %cst_30 [1, 2] : vector<1x1x128xf32> to vector<1xf32>
    %36 = vector.shape_cast %35 : vector<1xf32> to vector<1x1x1xf32>
    %37 = vector.extract %36[0, 0, 0] : f32 from vector<1x1x1xf32>
    %38 = vector.broadcast %37 : f32 to vector<1x1xf32>
    %cst_31 = arith.constant 1.024000e+03 : f32
    %39 = vector.broadcast %cst_31 : f32 to vector<1x1xf32>
    %40 = arith.divf %38, %39 : vector<1x1xf32>
    %41 = arith.mulf %28, %32 : vector<1x128xf32>
    %42 = vector.shape_cast %41 : vector<1x128xf32> to vector<1x1x128xf32>
    %cst_32 = arith.constant dense<0.000000e+00> : vector<1xf32>
    %43 = vector.multi_reduction <add>, %42, %cst_32 [1, 2] : vector<1x1x128xf32> to vector<1xf32>
    %44 = vector.shape_cast %43 : vector<1xf32> to vector<1x1x1xf32>
    %45 = vector.extract %44[0, 0, 0] : f32 from vector<1x1x1xf32>
    %46 = vector.broadcast %45 : f32 to vector<1x1xf32>
    %cst_33 = arith.constant 1.024000e+03 : f32
    %47 = vector.broadcast %cst_33 : f32 to vector<1x1xf32>
    %48 = arith.divf %46, %47 : vector<1x1xf32>
    %49 = arith.mulf %40, %40 : vector<1x1xf32>
    %50 = arith.subf %48, %49 : vector<1x1xf32>
    %cst_34 = arith.constant 0.000000e+00 : f32
    %51 = vector.broadcast %cst_34 : f32 to vector<1x1xf32>
    %52 = arith.maximumf %50, %51 : vector<1x1xf32>
    %53 = vector.broadcast %40 : vector<1x1xf32> to vector<1x128xf32>
    %54 = arith.mulf %32, %53 : vector<1x128xf32>
    %55 = arith.addf %30, %54 : vector<1x128xf32>
    %cst_35 = arith.constant 9.99999974E-6 : f32
    %56 = vector.broadcast %cst_35 : f32 to vector<1x1xf32>
    %57 = arith.addf %52, %56 : vector<1x1xf32>
    %58 = math.rsqrt %57 : vector<1x1xf32>
    %59 = vector.broadcast %58 : vector<1x1xf32> to vector<1x128xf32>
    %60 = arith.mulf %32, %59 : vector<1x128xf32>
    %61 = arith.addf %31, %60 : vector<1x128xf32>
    %62 = vector.extract_strided_slice %29 {offsets = [1, 0], sizes = [1, 128], strides = [1, 1]} : vector<2x128xf32> to vector<1x128xf32>
    %63 = arith.mulf %25, %62 : vector<1x128xf32>
    %64 = vector.shape_cast %63 : vector<1x128xf32> to vector<1x1x128xf32>
    %cst_36 = arith.constant dense<0.000000e+00> : vector<1xf32>
    %65 = vector.multi_reduction <add>, %64, %cst_36 [1, 2] : vector<1x1x128xf32> to vector<1xf32>
    %66 = vector.shape_cast %65 : vector<1xf32> to vector<1x1x1xf32>
    %67 = vector.extract %66[0, 0, 0] : f32 from vector<1x1x1xf32>
    %68 = vector.broadcast %67 : f32 to vector<1x1xf32>
    %cst_37 = arith.constant 1.024000e+03 : f32
    %69 = vector.broadcast %cst_37 : f32 to vector<1x1xf32>
    %70 = arith.divf %68, %69 : vector<1x1xf32>
    %71 = arith.mulf %28, %62 : vector<1x128xf32>
    %72 = vector.shape_cast %71 : vector<1x128xf32> to vector<1x1x128xf32>
    %cst_38 = arith.constant dense<0.000000e+00> : vector<1xf32>
    %73 = vector.multi_reduction <add>, %72, %cst_38 [1, 2] : vector<1x1x128xf32> to vector<1xf32>
    %74 = vector.shape_cast %73 : vector<1xf32> to vector<1x1x1xf32>
    %75 = vector.extract %74[0, 0, 0] : f32 from vector<1x1x1xf32>
    %76 = vector.broadcast %75 : f32 to vector<1x1xf32>
    %cst_39 = arith.constant 1.024000e+03 : f32
    %77 = vector.broadcast %cst_39 : f32 to vector<1x1xf32>
    %78 = arith.divf %76, %77 : vector<1x1xf32>
    %79 = arith.mulf %70, %70 : vector<1x1xf32>
    %80 = arith.subf %78, %79 : vector<1x1xf32>
    %cst_40 = arith.constant 0.000000e+00 : f32
    %81 = vector.broadcast %cst_40 : f32 to vector<1x1xf32>
    %82 = arith.maximumf %80, %81 : vector<1x1xf32>
    %83 = vector.broadcast %70 : vector<1x1xf32> to vector<1x128xf32>
    %84 = arith.mulf %62, %83 : vector<1x128xf32>
    %85 = arith.addf %55, %84 : vector<1x128xf32>
    %cst_41 = arith.constant 9.99999974E-6 : f32
    %86 = vector.broadcast %cst_41 : f32 to vector<1x1xf32>
    %87 = arith.addf %82, %86 : vector<1x1xf32>
    %88 = math.rsqrt %87 : vector<1x1xf32>
    %89 = vector.broadcast %88 : vector<1x1xf32> to vector<1x128xf32>
    %90 = arith.mulf %62, %89 : vector<1x128xf32>
    %91 = arith.addf %61, %90 : vector<1x128xf32>
    %92 = vector.broadcast %85 : vector<1x128xf32> to vector<16x128xf32>
    %93 = arith.subf %23, %92 : vector<16x128xf32>
    %94 = vector.broadcast %91 : vector<1x128xf32> to vector<16x128xf32>
    %95 = arith.mulf %93, %94 : vector<16x128xf32>
    %c0_42 = arith.constant 0 : index
    %c0_43 = arith.constant 0 : index
    %96 = vector.load %arg6[%c0_42, %c0_43] : memref<1x128xf32, #tpu.memory_space<vmem>>, vector<1x128xf32>
    %97 = vector.broadcast %96 : vector<1x128xf32> to vector<16x128xf32>
    %98 = arith.mulf %95, %97 : vector<16x128xf32>
    %c0_44 = arith.constant 0 : index
    %c0_45 = arith.constant 0 : index
    %99 = vector.load %arg7[%c0_44, %c0_45] : memref<1x128xf32, #tpu.memory_space<vmem>>, vector<1x128xf32>
    %100 = vector.broadcast %99 : vector<1x128xf32> to vector<16x128xf32>
    %101 = arith.addf %98, %100 : vector<16x128xf32>
    %cst_46 = arith.constant 0.000000e+00 : f32
    %102 = vector.broadcast %cst_46 : f32 to vector<16x128xf32>
    %103 = arith.maximumf %101, %102 : vector<16x128xf32>
    %cst_47 = arith.constant 0.000000e+00 : f32
    %104 = vector.broadcast %cst_47 : f32 to vector<18x144xf32>
    %c0_48 = arith.constant 0 : index
    %c0_49 = arith.constant 0 : index
    %105 = vector.load %arg22[%c0_48, %c0_49] : memref<18x144xf32, #tpu.memory_space<vmem>>, vector<18x144xf32>
    tpu.vector_store %arg22[%c0_48, %c0_49], %104 {strides = array<i32>} : memref<18x144xf32, #tpu.memory_space<vmem>>, vector<18x144xf32>,
    %c1_50 = arith.constant 1 : index
    %c8 = arith.constant 8 : index
    %106 = vector.load %arg22[%c1_50, %c8] : memref<18x144xf32, #tpu.memory_space<vmem>>, vector<16x128xf32>
    tpu.vector_store %arg22[%c1_50, %c8], %103 {strides = array<i32>} : memref<18x144xf32, #tpu.memory_space<vmem>>, vector<16x128xf32>,
    %cst_51 = arith.constant 0.000000e+00 : f32
    %107 = vector.broadcast %cst_51 : f32 to vector<16x128xf32>
    %c0_52 = arith.constant 0 : index
    %c0_53 = arith.constant 0 : index
    %108 = vector.load %arg22[%c0_52, %c0_53] : memref<18x144xf32, #tpu.memory_space<vmem>>, vector<16x144xf32>
    %c0_54 = arith.constant 0 : index
    %c0_55 = arith.constant 0 : index
    %c0_56 = arith.constant 0 : index
    %109 = vector.load %arg9[%c0_54, %c0_55, %c0_56] : memref<3x144x128xf32, #tpu.memory_space<vmem>>, vector<1x144x128xf32>
    %110 = vector.shape_cast %109 : vector<1x144x128xf32> to vector<144x128xf32>
    %cst_57 = arith.constant dense<0.000000e+00> : vector<16x128xf32>
    %111 = tpu.matmul %108, %110, %cst_57 {dimension_numbers = #tpu.dot_dimension_numbers<[1], [0], [0], [1], [0, 0, 1, 1], [], []>} : vector<16x144xf32>, vector<144x128xf32>, vector<16x128xf32> -> vector<16x128xf32>
    %112 = arith.addf %107, %111 : vector<16x128xf32>
    %c1_58 = arith.constant 1 : index
    %c0_59 = arith.constant 0 : index
    %113 = vector.load %arg22[%c1_58, %c0_59] : memref<18x144xf32, #tpu.memory_space<vmem>>, vector<16x144xf32>
    %c1_60 = arith.constant 1 : index
    %c0_61 = arith.constant 0 : index
    %c0_62 = arith.constant 0 : index
    %114 = vector.load %arg9[%c1_60, %c0_61, %c0_62] : memref<3x144x128xf32, #tpu.memory_space<vmem>>, vector<1x144x128xf32>
    %115 = vector.shape_cast %114 : vector<1x144x128xf32> to vector<144x128xf32>
    %cst_63 = arith.constant dense<0.000000e+00> : vector<16x128xf32>
    %116 = tpu.matmul %113, %115, %cst_63 {dimension_numbers = #tpu.dot_dimension_numbers<[1], [0], [0], [1], [0, 0, 1, 1], [], []>} : vector<16x144xf32>, vector<144x128xf32>, vector<16x128xf32> -> vector<16x128xf32>
    %117 = arith.addf %112, %116 : vector<16x128xf32>
    %c2_64 = arith.constant 2 : index
    %c0_65 = arith.constant 0 : index
    %118 = vector.load %arg22[%c2_64, %c0_65] : memref<18x144xf32, #tpu.memory_space<vmem>>, vector<16x144xf32>
    %c2_66 = arith.constant 2 : index
    %c0_67 = arith.constant 0 : index
    %c0_68 = arith.constant 0 : index
    %119 = vector.load %arg9[%c2_66, %c0_67, %c0_68] : memref<3x144x128xf32, #tpu.memory_space<vmem>>, vector<1x144x128xf32>
    %120 = vector.shape_cast %119 : vector<1x144x128xf32> to vector<144x128xf32>
    %cst_69 = arith.constant dense<0.000000e+00> : vector<16x128xf32>
    %121 = tpu.matmul %118, %120, %cst_69 {dimension_numbers = #tpu.dot_dimension_numbers<[1], [0], [0], [1], [0, 0, 1, 1], [], []>} : vector<16x144xf32>, vector<144x128xf32>, vector<16x128xf32> -> vector<16x128xf32>
    %122 = arith.addf %117, %121 : vector<16x128xf32>
    %c0_70 = arith.constant 0 : index
    %c0_71 = arith.constant 0 : index
    %123 = vector.load %arg10[%c0_70, %c0_71] : memref<1x128xf32, #tpu.memory_space<vmem>>, vector<1x128xf32>
    %124 = vector.broadcast %123 : vector<1x128xf32> to vector<16x128xf32>
    %125 = arith.addf %122, %124 : vector<16x128xf32>
    %cst_72 = arith.constant dense<0.000000e+00> : vector<128xf32>
    %126 = vector.multi_reduction <add>, %125, %cst_72 [0] : vector<16x128xf32> to vector<128xf32>
    %127 = vector.shape_cast %126 : vector<128xf32> to vector<1x128xf32>
    %128 = arith.mulf %125, %125 : vector<16x128xf32>
    %cst_73 = arith.constant dense<0.000000e+00> : vector<128xf32>
    %129 = vector.multi_reduction <add>, %128, %cst_73 [0] : vector<16x128xf32> to vector<128xf32>
    %130 = vector.shape_cast %129 : vector<128xf32> to vector<1x128xf32>
    %c0_74 = arith.constant 0 : index
    %c0_75 = arith.constant 0 : index
    %131 = vector.load %arg13[%c0_74, %c0_75] : memref<2x128xf32, #tpu.memory_space<vmem>>, vector<2x128xf32>
    %cst_76 = arith.constant 0.000000e+00 : f32
    %132 = vector.broadcast %cst_76 : f32 to vector<1x128xf32>
    %cst_77 = arith.constant 0.000000e+00 : f32
    %133 = vector.broadcast %cst_77 : f32 to vector<1x128xf32>
    %134 = vector.extract_strided_slice %131 {offsets = [0, 0], sizes = [1, 128], strides = [1, 1]} : vector<2x128xf32> to vector<1x128xf32>
    %135 = arith.mulf %127, %134 : vector<1x128xf32>
    %136 = vector.shape_cast %135 : vector<1x128xf32> to vector<1x1x128xf32>
    %cst_78 = arith.constant dense<0.000000e+00> : vector<1xf32>
    %137 = vector.multi_reduction <add>, %136, %cst_78 [1, 2] : vector<1x1x128xf32> to vector<1xf32>
    %138 = vector.shape_cast %137 : vector<1xf32> to vector<1x1x1xf32>
    %139 = vector.extract %138[0, 0, 0] : f32 from vector<1x1x1xf32>
    %140 = vector.broadcast %139 : f32 to vector<1x1xf32>
    %cst_79 = arith.constant 1.024000e+03 : f32
    %141 = vector.broadcast %cst_79 : f32 to vector<1x1xf32>
    %142 = arith.divf %140, %141 : vector<1x1xf32>
    %143 = arith.mulf %130, %134 : vector<1x128xf32>
    %144 = vector.shape_cast %143 : vector<1x128xf32> to vector<1x1x128xf32>
    %cst_80 = arith.constant dense<0.000000e+00> : vector<1xf32>
    %145 = vector.multi_reduction <add>, %144, %cst_80 [1, 2] : vector<1x1x128xf32> to vector<1xf32>
    %146 = vector.shape_cast %145 : vector<1xf32> to vector<1x1x1xf32>
    %147 = vector.extract %146[0, 0, 0] : f32 from vector<1x1x1xf32>
    %148 = vector.broadcast %147 : f32 to vector<1x1xf32>
    %cst_81 = arith.constant 1.024000e+03 : f32
    %149 = vector.broadcast %cst_81 : f32 to vector<1x1xf32>
    %150 = arith.divf %148, %149 : vector<1x1xf32>
    %151 = arith.mulf %142, %142 : vector<1x1xf32>
    %152 = arith.subf %150, %151 : vector<1x1xf32>
    %cst_82 = arith.constant 0.000000e+00 : f32
    %153 = vector.broadcast %cst_82 : f32 to vector<1x1xf32>
    %154 = arith.maximumf %152, %153 : vector<1x1xf32>
    %155 = vector.broadcast %142 : vector<1x1xf32> to vector<1x128xf32>
    %156 = arith.mulf %134, %155 : vector<1x128xf32>
    %157 = arith.addf %132, %156 : vector<1x128xf32>
    %cst_83 = arith.constant 9.99999974E-6 : f32
    %158 = vector.broadcast %cst_83 : f32 to vector<1x1xf32>
    %159 = arith.addf %154, %158 : vector<1x1xf32>
    %160 = math.rsqrt %159 : vector<1x1xf32>
    %161 = vector.broadcast %160 : vector<1x1xf32> to vector<1x128xf32>
    %162 = arith.mulf %134, %161 : vector<1x128xf32>
    %163 = arith.addf %133, %162 : vector<1x128xf32>
    %164 = vector.extract_strided_slice %131 {offsets = [1, 0], sizes = [1, 128], strides = [1, 1]} : vector<2x128xf32> to vector<1x128xf32>
    %165 = arith.mulf %127, %164 : vector<1x128xf32>
    %166 = vector.shape_cast %165 : vector<1x128xf32> to vector<1x1x128xf32>
    %cst_84 = arith.constant dense<0.000000e+00> : vector<1xf32>
    %167 = vector.multi_reduction <add>, %166, %cst_84 [1, 2] : vector<1x1x128xf32> to vector<1xf32>
    %168 = vector.shape_cast %167 : vector<1xf32> to vector<1x1x1xf32>
    %169 = vector.extract %168[0, 0, 0] : f32 from vector<1x1x1xf32>
    %170 = vector.broadcast %169 : f32 to vector<1x1xf32>
    %cst_85 = arith.constant 1.024000e+03 : f32
    %171 = vector.broadcast %cst_85 : f32 to vector<1x1xf32>
    %172 = arith.divf %170, %171 : vector<1x1xf32>
    %173 = arith.mulf %130, %164 : vector<1x128xf32>
    %174 = vector.shape_cast %173 : vector<1x128xf32> to vector<1x1x128xf32>
    %cst_86 = arith.constant dense<0.000000e+00> : vector<1xf32>
    %175 = vector.multi_reduction <add>, %174, %cst_86 [1, 2] : vector<1x1x128xf32> to vector<1xf32>
    %176 = vector.shape_cast %175 : vector<1xf32> to vector<1x1x1xf32>
    %177 = vector.extract %176[0, 0, 0] : f32 from vector<1x1x1xf32>
    %178 = vector.broadcast %177 : f32 to vector<1x1xf32>
    %cst_87 = arith.constant 1.024000e+03 : f32
    %179 = vector.broadcast %cst_87 : f32 to vector<1x1xf32>
    %180 = arith.divf %178, %179 : vector<1x1xf32>
    %181 = arith.mulf %172, %172 : vector<1x1xf32>
    %182 = arith.subf %180, %181 : vector<1x1xf32>
    %cst_88 = arith.constant 0.000000e+00 : f32
    %183 = vector.broadcast %cst_88 : f32 to vector<1x1xf32>
    %184 = arith.maximumf %182, %183 : vector<1x1xf32>
    %185 = vector.broadcast %172 : vector<1x1xf32> to vector<1x128xf32>
    %186 = arith.mulf %164, %185 : vector<1x128xf32>
    %187 = arith.addf %157, %186 : vector<1x128xf32>
    %cst_89 = arith.constant 9.99999974E-6 : f32
    %188 = vector.broadcast %cst_89 : f32 to vector<1x1xf32>
    %189 = arith.addf %184, %188 : vector<1x1xf32>
    %190 = math.rsqrt %189 : vector<1x1xf32>
    %191 = vector.broadcast %190 : vector<1x1xf32> to vector<1x128xf32>
    %192 = arith.mulf %164, %191 : vector<1x128xf32>
    %193 = arith.addf %163, %192 : vector<1x128xf32>
    %194 = vector.broadcast %187 : vector<1x128xf32> to vector<16x128xf32>
    %195 = arith.subf %125, %194 : vector<16x128xf32>
    %196 = vector.broadcast %193 : vector<1x128xf32> to vector<16x128xf32>
    %197 = arith.mulf %195, %196 : vector<16x128xf32>
    %c0_90 = arith.constant 0 : index
    %c0_91 = arith.constant 0 : index
    %198 = vector.load %arg11[%c0_90, %c0_91] : memref<1x128xf32, #tpu.memory_space<vmem>>, vector<1x128xf32>
    %199 = vector.broadcast %198 : vector<1x128xf32> to vector<16x128xf32>
    %200 = arith.mulf %197, %199 : vector<16x128xf32>
    %c0_92 = arith.constant 0 : index
    %c0_93 = arith.constant 0 : index
    %201 = vector.load %arg12[%c0_92, %c0_93] : memref<1x128xf32, #tpu.memory_space<vmem>>, vector<1x128xf32>
    %202 = vector.broadcast %201 : vector<1x128xf32> to vector<16x128xf32>
    %203 = arith.addf %200, %202 : vector<16x128xf32>
    %cst_94 = arith.constant 0.000000e+00 : f32
    %204 = vector.broadcast %cst_94 : f32 to vector<16x128xf32>
    %205 = arith.maximumf %203, %204 : vector<16x128xf32>
    %cst_95 = arith.constant 0.000000e+00 : f32
    %206 = vector.broadcast %cst_95 : f32 to vector<18x144xf32>
    %c0_96 = arith.constant 0 : index
    %c0_97 = arith.constant 0 : index
    %207 = vector.load %arg23[%c0_96, %c0_97] : memref<18x144xf32, #tpu.memory_space<vmem>>, vector<18x144xf32>
    tpu.vector_store %arg23[%c0_96, %c0_97], %206 {strides = array<i32>} : memref<18x144xf32, #tpu.memory_space<vmem>>, vector<18x144xf32>,
    %c1_98 = arith.constant 1 : index
    %c8_99 = arith.constant 8 : index
    %208 = vector.load %arg23[%c1_98, %c8_99] : memref<18x144xf32, #tpu.memory_space<vmem>>, vector<16x128xf32>
    tpu.vector_store %arg23[%c1_98, %c8_99], %205 {strides = array<i32>} : memref<18x144xf32, #tpu.memory_space<vmem>>, vector<16x128xf32>,
    %cst_100 = arith.constant 0.000000e+00 : f32
    %209 = vector.broadcast %cst_100 : f32 to vector<16x128xf32>
    %c0_101 = arith.constant 0 : index
    %c0_102 = arith.constant 0 : index
    %210 = vector.load %arg23[%c0_101, %c0_102] : memref<18x144xf32, #tpu.memory_space<vmem>>, vector<16x144xf32>
    %c0_103 = arith.constant 0 : index
    %c0_104 = arith.constant 0 : index
    %c0_105 = arith.constant 0 : index
    %211 = vector.load %arg14[%c0_103, %c0_104, %c0_105] : memref<3x144x128xf32, #tpu.memory_space<vmem>>, vector<1x144x128xf32>
    %212 = vector.shape_cast %211 : vector<1x144x128xf32> to vector<144x128xf32>
    %cst_106 = arith.constant dense<0.000000e+00> : vector<16x128xf32>
    %213 = tpu.matmul %210, %212, %cst_106 {dimension_numbers = #tpu.dot_dimension_numbers<[1], [0], [0], [1], [0, 0, 1, 1], [], []>} : vector<16x144xf32>, vector<144x128xf32>, vector<16x128xf32> -> vector<16x128xf32>
    %214 = arith.addf %209, %213 : vector<16x128xf32>
    %c1_107 = arith.constant 1 : index
    %c0_108 = arith.constant 0 : index
    %215 = vector.load %arg23[%c1_107, %c0_108] : memref<18x144xf32, #tpu.memory_space<vmem>>, vector<16x144xf32>
    %c1_109 = arith.constant 1 : index
    %c0_110 = arith.constant 0 : index
    %c0_111 = arith.constant 0 : index
    %216 = vector.load %arg14[%c1_109, %c0_110, %c0_111] : memref<3x144x128xf32, #tpu.memory_space<vmem>>, vector<1x144x128xf32>
    %217 = vector.shape_cast %216 : vector<1x144x128xf32> to vector<144x128xf32>
    %cst_112 = arith.constant dense<0.000000e+00> : vector<16x128xf32>
    %218 = tpu.matmul %215, %217, %cst_112 {dimension_numbers = #tpu.dot_dimension_numbers<[1], [0], [0], [1], [0, 0, 1, 1], [], []>} : vector<16x144xf32>, vector<144x128xf32>, vector<16x128xf32> -> vector<16x128xf32>
    %219 = arith.addf %214, %218 : vector<16x128xf32>
    %c2_113 = arith.constant 2 : index
    %c0_114 = arith.constant 0 : index
    %220 = vector.load %arg23[%c2_113, %c0_114] : memref<18x144xf32, #tpu.memory_space<vmem>>, vector<16x144xf32>
    %c2_115 = arith.constant 2 : index
    %c0_116 = arith.constant 0 : index
    %c0_117 = arith.constant 0 : index
    %221 = vector.load %arg14[%c2_115, %c0_116, %c0_117] : memref<3x144x128xf32, #tpu.memory_space<vmem>>, vector<1x144x128xf32>
    %222 = vector.shape_cast %221 : vector<1x144x128xf32> to vector<144x128xf32>
    %cst_118 = arith.constant dense<0.000000e+00> : vector<16x128xf32>
    %223 = tpu.matmul %220, %222, %cst_118 {dimension_numbers = #tpu.dot_dimension_numbers<[1], [0], [0], [1], [0, 0, 1, 1], [], []>} : vector<16x144xf32>, vector<144x128xf32>, vector<16x128xf32> -> vector<16x128xf32>
    %224 = arith.addf %219, %223 : vector<16x128xf32>
    %c0_119 = arith.constant 0 : index
    %c0_120 = arith.constant 0 : index
    %225 = vector.load %arg15[%c0_119, %c0_120] : memref<1x128xf32, #tpu.memory_space<vmem>>, vector<1x128xf32>
    %226 = vector.broadcast %225 : vector<1x128xf32> to vector<16x128xf32>
    %227 = arith.addf %224, %226 : vector<16x128xf32>
    %cst_121 = arith.constant dense<0.000000e+00> : vector<128xf32>
    %228 = vector.multi_reduction <add>, %227, %cst_121 [0] : vector<16x128xf32> to vector<128xf32>
    %229 = vector.shape_cast %228 : vector<128xf32> to vector<1x128xf32>
    %230 = arith.mulf %227, %227 : vector<16x128xf32>
    %cst_122 = arith.constant dense<0.000000e+00> : vector<128xf32>
    %231 = vector.multi_reduction <add>, %230, %cst_122 [0] : vector<16x128xf32> to vector<128xf32>
    %232 = vector.shape_cast %231 : vector<128xf32> to vector<1x128xf32>
    %c0_123 = arith.constant 0 : index
    %c0_124 = arith.constant 0 : index
    %233 = vector.load %arg18[%c0_123, %c0_124] : memref<2x128xf32, #tpu.memory_space<vmem>>, vector<2x128xf32>
    %cst_125 = arith.constant 0.000000e+00 : f32
    %234 = vector.broadcast %cst_125 : f32 to vector<1x128xf32>
    %cst_126 = arith.constant 0.000000e+00 : f32
    %235 = vector.broadcast %cst_126 : f32 to vector<1x128xf32>
    %236 = vector.extract_strided_slice %233 {offsets = [0, 0], sizes = [1, 128], strides = [1, 1]} : vector<2x128xf32> to vector<1x128xf32>
    %237 = arith.mulf %229, %236 : vector<1x128xf32>
    %238 = vector.shape_cast %237 : vector<1x128xf32> to vector<1x1x128xf32>
    %cst_127 = arith.constant dense<0.000000e+00> : vector<1xf32>
    %239 = vector.multi_reduction <add>, %238, %cst_127 [1, 2] : vector<1x1x128xf32> to vector<1xf32>
    %240 = vector.shape_cast %239 : vector<1xf32> to vector<1x1x1xf32>
    %241 = vector.extract %240[0, 0, 0] : f32 from vector<1x1x1xf32>
    %242 = vector.broadcast %241 : f32 to vector<1x1xf32>
    %cst_128 = arith.constant 1.024000e+03 : f32
    %243 = vector.broadcast %cst_128 : f32 to vector<1x1xf32>
    %244 = arith.divf %242, %243 : vector<1x1xf32>
    %245 = arith.mulf %232, %236 : vector<1x128xf32>
    %246 = vector.shape_cast %245 : vector<1x128xf32> to vector<1x1x128xf32>
    %cst_129 = arith.constant dense<0.000000e+00> : vector<1xf32>
    %247 = vector.multi_reduction <add>, %246, %cst_129 [1, 2] : vector<1x1x128xf32> to vector<1xf32>
    %248 = vector.shape_cast %247 : vector<1xf32> to vector<1x1x1xf32>
    %249 = vector.extract %248[0, 0, 0] : f32 from vector<1x1x1xf32>
    %250 = vector.broadcast %249 : f32 to vector<1x1xf32>
    %cst_130 = arith.constant 1.024000e+03 : f32
    %251 = vector.broadcast %cst_130 : f32 to vector<1x1xf32>
    %252 = arith.divf %250, %251 : vector<1x1xf32>
    %253 = arith.mulf %244, %244 : vector<1x1xf32>
    %254 = arith.subf %252, %253 : vector<1x1xf32>
    %cst_131 = arith.constant 0.000000e+00 : f32
    %255 = vector.broadcast %cst_131 : f32 to vector<1x1xf32>
    %256 = arith.maximumf %254, %255 : vector<1x1xf32>
    %257 = vector.broadcast %244 : vector<1x1xf32> to vector<1x128xf32>
    %258 = arith.mulf %236, %257 : vector<1x128xf32>
    %259 = arith.addf %234, %258 : vector<1x128xf32>
    %cst_132 = arith.constant 9.99999974E-6 : f32
    %260 = vector.broadcast %cst_132 : f32 to vector<1x1xf32>
    %261 = arith.addf %256, %260 : vector<1x1xf32>
    %262 = math.rsqrt %261 : vector<1x1xf32>
    %263 = vector.broadcast %262 : vector<1x1xf32> to vector<1x128xf32>
    %264 = arith.mulf %236, %263 : vector<1x128xf32>
    %265 = arith.addf %235, %264 : vector<1x128xf32>
    %266 = vector.extract_strided_slice %233 {offsets = [1, 0], sizes = [1, 128], strides = [1, 1]} : vector<2x128xf32> to vector<1x128xf32>
    %267 = arith.mulf %229, %266 : vector<1x128xf32>
    %268 = vector.shape_cast %267 : vector<1x128xf32> to vector<1x1x128xf32>
    %cst_133 = arith.constant dense<0.000000e+00> : vector<1xf32>
    %269 = vector.multi_reduction <add>, %268, %cst_133 [1, 2] : vector<1x1x128xf32> to vector<1xf32>
    %270 = vector.shape_cast %269 : vector<1xf32> to vector<1x1x1xf32>
    %271 = vector.extract %270[0, 0, 0] : f32 from vector<1x1x1xf32>
    %272 = vector.broadcast %271 : f32 to vector<1x1xf32>
    %cst_134 = arith.constant 1.024000e+03 : f32
    %273 = vector.broadcast %cst_134 : f32 to vector<1x1xf32>
    %274 = arith.divf %272, %273 : vector<1x1xf32>
    %275 = arith.mulf %232, %266 : vector<1x128xf32>
    %276 = vector.shape_cast %275 : vector<1x128xf32> to vector<1x1x128xf32>
    %cst_135 = arith.constant dense<0.000000e+00> : vector<1xf32>
    %277 = vector.multi_reduction <add>, %276, %cst_135 [1, 2] : vector<1x1x128xf32> to vector<1xf32>
    %278 = vector.shape_cast %277 : vector<1xf32> to vector<1x1x1xf32>
    %279 = vector.extract %278[0, 0, 0] : f32 from vector<1x1x1xf32>
    %280 = vector.broadcast %279 : f32 to vector<1x1xf32>
    %cst_136 = arith.constant 1.024000e+03 : f32
    %281 = vector.broadcast %cst_136 : f32 to vector<1x1xf32>
    %282 = arith.divf %280, %281 : vector<1x1xf32>
    %283 = arith.mulf %274, %274 : vector<1x1xf32>
    %284 = arith.subf %282, %283 : vector<1x1xf32>
    %cst_137 = arith.constant 0.000000e+00 : f32
    %285 = vector.broadcast %cst_137 : f32 to vector<1x1xf32>
    %286 = arith.maximumf %284, %285 : vector<1x1xf32>
    %287 = vector.broadcast %274 : vector<1x1xf32> to vector<1x128xf32>
    %288 = arith.mulf %266, %287 : vector<1x128xf32>
    %289 = arith.addf %259, %288 : vector<1x128xf32>
    %cst_138 = arith.constant 9.99999974E-6 : f32
    %290 = vector.broadcast %cst_138 : f32 to vector<1x1xf32>
    %291 = arith.addf %286, %290 : vector<1x1xf32>
    %292 = math.rsqrt %291 : vector<1x1xf32>
    %293 = vector.broadcast %292 : vector<1x1xf32> to vector<1x128xf32>
    %294 = arith.mulf %266, %293 : vector<1x128xf32>
    %295 = arith.addf %265, %294 : vector<1x128xf32>
    %296 = vector.broadcast %289 : vector<1x128xf32> to vector<16x128xf32>
    %297 = arith.subf %227, %296 : vector<16x128xf32>
    %298 = vector.broadcast %295 : vector<1x128xf32> to vector<16x128xf32>
    %299 = arith.mulf %297, %298 : vector<16x128xf32>
    %c0_139 = arith.constant 0 : index
    %c0_140 = arith.constant 0 : index
    %300 = vector.load %arg16[%c0_139, %c0_140] : memref<1x128xf32, #tpu.memory_space<vmem>>, vector<1x128xf32>
    %301 = vector.broadcast %300 : vector<1x128xf32> to vector<16x128xf32>
    %302 = arith.mulf %299, %301 : vector<16x128xf32>
    %c0_141 = arith.constant 0 : index
    %c0_142 = arith.constant 0 : index
    %303 = vector.load %arg17[%c0_141, %c0_142] : memref<1x128xf32, #tpu.memory_space<vmem>>, vector<1x128xf32>
    %304 = vector.broadcast %303 : vector<1x128xf32> to vector<16x128xf32>
    %305 = arith.addf %302, %304 : vector<16x128xf32>
    %cst_143 = arith.constant 0.000000e+00 : f32
    %306 = vector.broadcast %cst_143 : f32 to vector<16x128xf32>
    %307 = arith.maximumf %305, %306 : vector<16x128xf32>
    %c0_144 = arith.constant 0 : index
    %c0_145 = arith.constant 0 : index
    %c0_146 = arith.constant 0 : index
    %308 = vector.load %arg20[%c0_144, %c0_145, %c0_146] : memref<1x16x128xf32, #tpu.memory_space<vmem>>, vector<1x16x128xf32>
    %309 = vector.shape_cast %308 : vector<1x16x128xf32> to vector<16x128xf32>
    %310 = vector.shape_cast %307 : vector<16x128xf32> to vector<1x16x128xf32>
    tpu.vector_store %arg20[%c0_144, %c0_145, %c0_146], %310 {strides = array<i32>} : memref<1x16x128xf32, #tpu.memory_space<vmem>>, vector<1x16x128xf32>,
    %c0_147 = arith.constant 0 : index
    %c0_148 = arith.constant 0 : index
    %311 = vector.load %arg2[%c0_147, %c0_148] : memref<8x16xf32, #tpu.memory_space<vmem>>, vector<8x16xf32>
    %cst_149 = arith.constant dense<0.000000e+00> : vector<8x128xf32>
    %312 = tpu.matmul %311, %307, %cst_149 {dimension_numbers = #tpu.dot_dimension_numbers<[1], [0], [0], [1], [0, 0, 1, 1], [], []>} : vector<8x16xf32>, vector<16x128xf32>, vector<8x128xf32> -> vector<8x128xf32>
    %c0_150 = arith.constant 0 : index
    %c0_151 = arith.constant 0 : index
    %313 = vector.load %arg3[%c0_150, %c0_151] : memref<128x64xf32, #tpu.memory_space<vmem>>, vector<128x64xf32>
    %cst_152 = arith.constant dense<0.000000e+00> : vector<8x64xf32>
    %314 = tpu.matmul %312, %313, %cst_152 {dimension_numbers = #tpu.dot_dimension_numbers<[1], [0], [0], [1], [0, 0, 1, 1], [], []>} : vector<8x128xf32>, vector<128x64xf32>, vector<8x64xf32> -> vector<8x64xf32>
    %c0_153 = arith.constant 0 : index
    %c0_154 = arith.constant 0 : index
    %c0_155 = arith.constant 0 : index
    %315 = vector.load %arg19[%c0_153, %c0_154, %c0_155] : memref<1x8x64xf32, #tpu.memory_space<vmem>>, vector<1x8x64xf32>
    %316 = vector.shape_cast %315 : vector<1x8x64xf32> to vector<8x64xf32>
    %317 = vector.shape_cast %314 : vector<8x64xf32> to vector<1x8x64xf32>
    tpu.vector_store %arg19[%c0_153, %c0_154, %c0_155], %317 {strides = array<i32>} : memref<1x8x64xf32, #tpu.memory_space<vmem>>, vector<1x8x64xf32>,
    return
  }
  func.func @transform_0(%arg0: i32) -> (i32, i32, i32) {
    %c0_i32 = arith.constant 0 : i32
    %c0_i32_0 = arith.constant 0 : i32
    %c0_i32_1 = arith.constant 0 : i32
    return %arg0, %c0_i32, %c0_i32_0 : i32, i32, i32
  }
  func.func @transform_1(%arg0: i32) -> (i32, i32) {
    %c0_i32 = arith.constant 0 : i32
    %c0_i32_0 = arith.constant 0 : i32
    %c0_i32_1 = arith.constant 0 : i32
    return %c0_i32, %c0_i32_0 : i32, i32
  }
  func.func @transform_2(%arg0: i32) -> (i32, i32) {
    %c0_i32 = arith.constant 0 : i32
    %c0_i32_0 = arith.constant 0 : i32
    %c0_i32_1 = arith.constant 0 : i32
    return %c0_i32, %c0_i32_0 : i32, i32
  }
  func.func @transform_3(%arg0: i32) -> (i32, i32, i32) {
    %c0_i32 = arith.constant 0 : i32
    %c0_i32_0 = arith.constant 0 : i32
    %c0_i32_1 = arith.constant 0 : i32
    %c0_i32_2 = arith.constant 0 : i32
    return %c0_i32, %c0_i32_0, %c0_i32_1 : i32, i32, i32
  }
  func.func @transform_4(%arg0: i32) -> (i32, i32) {
    %c0_i32 = arith.constant 0 : i32
    %c0_i32_0 = arith.constant 0 : i32
    %c0_i32_1 = arith.constant 0 : i32
    return %c0_i32, %c0_i32_0 : i32, i32
  }
  func.func @transform_5(%arg0: i32) -> (i32, i32) {
    %c0_i32 = arith.constant 0 : i32
    %c0_i32_0 = arith.constant 0 : i32
    %c0_i32_1 = arith.constant 0 : i32
    return %c0_i32, %c0_i32_0 : i32, i32
  }
  func.func @transform_6(%arg0: i32) -> (i32, i32) {
    %c0_i32 = arith.constant 0 : i32
    %c0_i32_0 = arith.constant 0 : i32
    %c0_i32_1 = arith.constant 0 : i32
    return %c0_i32, %c0_i32_0 : i32, i32
  }
  func.func @transform_7(%arg0: i32) -> (i32, i32) {
    %c0_i32 = arith.constant 0 : i32
    %c0_i32_0 = arith.constant 0 : i32
    %c0_i32_1 = arith.constant 0 : i32
    return %c0_i32, %c0_i32_0 : i32, i32
  }
  func.func @transform_8(%arg0: i32) -> (i32, i32, i32) {
    %c0_i32 = arith.constant 0 : i32
    %c0_i32_0 = arith.constant 0 : i32
    %c0_i32_1 = arith.constant 0 : i32
    %c0_i32_2 = arith.constant 0 : i32
    return %c0_i32, %c0_i32_0, %c0_i32_1 : i32, i32, i32
  }
  func.func @transform_9(%arg0: i32) -> (i32, i32) {
    %c0_i32 = arith.constant 0 : i32
    %c0_i32_0 = arith.constant 0 : i32
    %c0_i32_1 = arith.constant 0 : i32
    return %c0_i32, %c0_i32_0 : i32, i32
  }
  func.func @transform_10(%arg0: i32) -> (i32, i32) {
    %c0_i32 = arith.constant 0 : i32
    %c0_i32_0 = arith.constant 0 : i32
    %c0_i32_1 = arith.constant 0 : i32
    return %c0_i32, %c0_i32_0 : i32, i32
  }
  func.func @transform_11(%arg0: i32) -> (i32, i32) {
    %c0_i32 = arith.constant 0 : i32
    %c0_i32_0 = arith.constant 0 : i32
    %c0_i32_1 = arith.constant 0 : i32
    return %c0_i32, %c0_i32_0 : i32, i32
  }
  func.func @transform_12(%arg0: i32) -> (i32, i32) {
    %c0_i32 = arith.constant 0 : i32
    %c0_i32_0 = arith.constant 0 : i32
    %c0_i32_1 = arith.constant 0 : i32
    return %c0_i32, %c0_i32_0 : i32, i32
  }
  func.func @transform_13(%arg0: i32) -> (i32, i32, i32) {
    %c0_i32 = arith.constant 0 : i32
    %c0_i32_0 = arith.constant 0 : i32
    %c0_i32_1 = arith.constant 0 : i32
    %c0_i32_2 = arith.constant 0 : i32
    return %c0_i32, %c0_i32_0, %c0_i32_1 : i32, i32, i32
  }
  func.func @transform_14(%arg0: i32) -> (i32, i32) {
    %c0_i32 = arith.constant 0 : i32
    %c0_i32_0 = arith.constant 0 : i32
    %c0_i32_1 = arith.constant 0 : i32
    return %c0_i32, %c0_i32_0 : i32, i32
  }
  func.func @transform_15(%arg0: i32) -> (i32, i32) {
    %c0_i32 = arith.constant 0 : i32
    %c0_i32_0 = arith.constant 0 : i32
    %c0_i32_1 = arith.constant 0 : i32
    return %c0_i32, %c0_i32_0 : i32, i32
  }
  func.func @transform_16(%arg0: i32) -> (i32, i32) {
    %c0_i32 = arith.constant 0 : i32
    %c0_i32_0 = arith.constant 0 : i32
    %c0_i32_1 = arith.constant 0 : i32
    return %c0_i32, %c0_i32_0 : i32, i32
  }
  func.func @transform_17(%arg0: i32) -> (i32, i32) {
    %c0_i32 = arith.constant 0 : i32
    %c0_i32_0 = arith.constant 0 : i32
    %c0_i32_1 = arith.constant 0 : i32
    return %c0_i32, %c0_i32_0 : i32, i32
  }
  func.func @transform_18(%arg0: i32) -> (i32, i32, i32) {
    %c0_i32 = arith.constant 0 : i32
    %c0_i32_0 = arith.constant 0 : i32
    %c0_i32_1 = arith.constant 0 : i32
    return %arg0, %c0_i32, %c0_i32_0 : i32, i32, i32
  }
  func.func @transform_19(%arg0: i32) -> (i32, i32, i32) {
    %c0_i32 = arith.constant 0 : i32
    %c0_i32_0 = arith.constant 0 : i32
    %c0_i32_1 = arith.constant 0 : i32
    return %arg0, %c0_i32, %c0_i32_0 : i32, i32, i32
  }
}

</mosaic_0001>

<llo_original>
// kernel: tpu_custom_call.1
$region0: #{tpu_custom_call.1}
  #allocation0 [shape = 'u32[]', space=smem, size = 0x4, offset = 0x4, fixed_abs, tag = 'smem constant byte address 0x4 - core index']
  #allocation1 [shape = 'u32[144,128]{1,0:T(1,128)}', space=vmem, size = 0x12000, scoped, tag = 'internal scratch']
  #allocation2 [shape = 'f32[18,72]{1,0:T(8,128)}', space=vmem, size = 0x3000, scoped, tag = 'scratch operand']
  #allocation3 [shape = 'f32[18,144]{1,0:T(8,128)}', space=vmem, size = 0x6000, scoped, tag = 'scratch operand']
  #allocation4 [shape = 'f32[18,144]{1,0:T(8,128)}', space=vmem, size = 0x6000, scoped, tag = 'scratch operand']
  %s0 = inlined_call_operand.vmem [shape: f32[2,16,64], index: 0, kind: input, shape index: {}]
  %s1 = inlined_call_operand.vmem [shape: f32[8,16], index: 1, kind: input, shape index: {}]
  %s2 = inlined_call_operand.vmem [shape: f32[128,64], index: 2, kind: input, shape index: {}]
  %s3 = inlined_call_operand.hbm [shape: f32[3,72,128], index: 3, kind: input, shape index: {}]
  %s4 = inlined_call_operand.vmem [shape: f32[1,128], index: 4, kind: input, shape index: {}]
  %s5 = inlined_call_operand.vmem [shape: f32[1,128], index: 5, kind: input, shape index: {}]
  %s6 = inlined_call_operand.vmem [shape: f32[1,128], index: 6, kind: input, shape index: {}]
  %s7 = inlined_call_operand.vmem [shape: f32[2,128], index: 7, kind: input, shape index: {}]
  %s8 = inlined_call_operand.hbm [shape: f32[3,144,128], index: 8, kind: input, shape index: {}]
  %s9 = inlined_call_operand.vmem [shape: f32[1,128], index: 9, kind: input, shape index: {}]
  %s10 = inlined_call_operand.vmem [shape: f32[1,128], index: 10, kind: input, shape index: {}]
  %s11 = inlined_call_operand.vmem [shape: f32[1,128], index: 11, kind: input, shape index: {}]
  %s12 = inlined_call_operand.vmem [shape: f32[2,128], index: 12, kind: input, shape index: {}]
  %s13 = inlined_call_operand.hbm [shape: f32[3,144,128], index: 13, kind: input, shape index: {}]
  %s14 = inlined_call_operand.vmem [shape: f32[1,128], index: 14, kind: input, shape index: {}]
  %s15 = inlined_call_operand.vmem [shape: f32[1,128], index: 15, kind: input, shape index: {}]
  %s16 = inlined_call_operand.vmem [shape: f32[1,128], index: 16, kind: input, shape index: {}]
  %s17 = inlined_call_operand.vmem [shape: f32[2,128], index: 17, kind: input, shape index: {}]
  %s18 = inlined_call_operand.hbm [shape: f32[2,8,64], index: 18, kind: output, shape index: {0}]
  %s19 = inlined_call_operand.hbm [shape: f32[2,16,128], index: 19, kind: output, shape index: {1}]
  %20 = xla_tuple %s18, %s19
  %s21 = sld [smem:[#allocation0]]
  $region125: #{tpu_custom_call.1} parent=0
    _
  %s23 = ssub.s32 1, %s21
  %s24 = scalar_select 0, %s23, %s21
  $region1: #{tpu_custom_call.1} parent=0
    #allocation5 [shape = 'u8[110592]{0}', space=vmem, size = 0x1b000, scoped, tag = 'input window, operand 3, single buffered']
    #allocation6 [shape = 's32[2]{0}', space=sflag, size = 0x8, scoped, tag = 'scoped memory for tpu_custom_call.1']
    #allocation7 [shape = 's32[2]{0}', space=sflag, size = 0x8, scoped, tag = 'scoped memory for tpu_custom_call.1']
    #allocation8 [shape = 'u8[221184]{0}', space=vmem, size = 0x36000, scoped, tag = 'input window, operand 8, single buffered']
    #allocation9 [shape = 's32[1]{0}', space=sflag, size = 0x4, scoped, tag = 'scoped memory for tpu_custom_call.1']
    #allocation10 [shape = 'u8[221184]{0}', space=vmem, size = 0x36000, scoped, tag = 'input window, operand 13, single buffered']
    #allocation11 [shape = 'u8[8192]{0}', space=vmem, size = 0x2000, scoped, tag = 'output window, operand 0']
    #allocation12 [shape = 'u8[16384]{0}', space=vmem, size = 0x4000, scoped, tag = 'output window, operand 1']
    #allocation13 [shape = 's32[2]{0}', space=sflag, size = 0x8, scoped, tag = 'scoped memory for tpu_custom_call.1']
    %25 = vsyncpa [#allocation6], 0
    %26 = vsyncpa [#allocation9], 0
    %27 = vsyncpa [#allocation7], 0
    %s28 = scalar_lea.sflag [#allocation7], 1
    %29 = vsyncpa %s28, 0
    %30 = vsyncpa [#allocation13], 0
    %s31 = scalar_lea.sflag [#allocation13], 1
    %32 = vsyncpa %s31, 0
    loop: start=0, step=1, limit=4
    $region2: #{tpu_custom_call.1} parent=1 // loop_pre_header
      _
    $region3: #{tpu_custom_call.1} parent=1 // loop_header
      %s34 = sphi 0, %s38
      %p35 = scmp.ge.s32.totalorder %s34, 4
      %s44 = sphi 0, %s46
      %s47 = sphi 0, %s44
      %s48 = sphi 0, %s47
      %s64 = sphi 0, %s48
      %s68 = sphi 0, %s68
      %s70 = sphi 0, %s68
      %s71 = sphi 0, %s70
      %s85 = sphi 0, %s71
      %s89 = sphi 0, %s89
      %s91 = sphi 0, %s89
      %s92 = sphi 0, %s91
      %s106 = sphi 0, %s92
      %s110 = sphi 0, %s110
      %s112 = sphi 0, %s110
      %s113 = sphi 0, %s112
      %s127 = sphi 0, %s113
      %s131 = sphi 0, %s131
      %s133 = sphi 0, %s131
      %s134 = sphi 0, %s133
      %s148 = sphi 0, %s134
      %s152 = sphi 0, %s152
      %s154 = sphi 0, %s152
      %s155 = sphi 0, %s154
      %s169 = sphi 0, %s155
      %s173 = sphi 0, %s173
      %s175 = sphi 0, %s173
      %s176 = sphi 0, %s175
      %s190 = sphi 0, %s176
      %s194 = sphi 0, %s194
      %s196 = sphi 0, %s194
      %s197 = sphi 0, %s196
      %s211 = sphi 0, %s197
      %s215 = sphi 0, %s215
      %s217 = sphi 0, %s215
      %s218 = sphi 0, %s217
      %s232 = sphi 0, %s218
      %s236 = sphi 0, %s236
      %s238 = sphi 0, %s236
      %s239 = sphi 0, %s238
      %s253 = sphi 0, %s239
      %s257 = sphi 0, %s257
      %s259 = sphi 0, %s257
      %s260 = sphi 0, %s259
      %s274 = sphi 0, %s260
      %s278 = sphi 0, %s278
      %s280 = sphi 0, %s278
      %s281 = sphi 0, %s280
      %s295 = sphi 0, %s281
      %s299 = sphi 0, %s299
      %s301 = sphi 0, %s299
      %s302 = sphi 0, %s301
      %s316 = sphi 0, %s302
      %s320 = sphi 0, %s320
      %s322 = sphi 0, %s320
      %s323 = sphi 0, %s322
      %s337 = sphi 0, %s323
      %s341 = sphi 0, %s341
      %s343 = sphi 0, %s341
      %s344 = sphi 0, %s343
      %s358 = sphi 0, %s344
      %s362 = sphi 0, %s362
      %s364 = sphi 0, %s362
      %s365 = sphi 0, %s364
      %s379 = sphi 0, %s365
      %s383 = sphi 0, %s383
      %s385 = sphi 0, %s383
      %s386 = sphi 0, %s385
      %s400 = sphi 0, %s386
      %s404 = sphi 0, %s404
      %s406 = sphi 0, %s404
      %s407 = sphi 0, %s406
      %s421 = sphi 0, %s407
      %s427 = sphi 0, %s429
      %s430 = sphi 0, %s427
      %s431 = sphi 0, %s430
      %s447 = sphi 0, %s431
      %s453 = sphi 0, %s455
      %s456 = sphi 0, %s453
      %s457 = sphi 0, %s456
      %s473 = sphi 0, %s457
    $region4: #{tpu_custom_call.1} parent=1 // loop_header_branch
      %37 = sbr.rel (%p35) target = $region8
    $region5: #{tpu_custom_call.1} parent=1 // loop_body
      %s39 = ssub.s32 %s34, 1
      %s40 = ssub.s32 %s34, 2
      %s41 = sadd.s32 %s34, 1
      %s42 = ssub.s32 %s34, %s41
      %p43 = scmp.eq.s32.totalorder %s42, 0
      %s45 = sadd.s32 %s44, 1
      %s46 = scalar_select %p43, %s44, %s45
      %p49 = pneg %p43
      %p50 = scmp.eq.s32.totalorder %s34, 1
      %p51 = por %p49, %p50
      %p52 = scmp.ne.s32.totalorder %s44, %s47
      %p53 = scmp.eq.s32.totalorder %s34, 0
      %p54 = por %p52, %p53
      %p55 = scmp.ne.s32.totalorder %s44, %s47
      %p56 = scmp.eq.s32.totalorder %s39, 1
      %p57 = por %p55, %p56
      %p58 = scmp.ne.s32.totalorder %s47, %s48
      %p59 = scmp.eq.s32.totalorder %s39, 0
      %p60 = por %p58, %p59
      %p61 = scmp.ne.s32.totalorder %s47, %s48
      %p62 = scmp.eq.s32.totalorder %s40, 1
      %p63 = por %p61, %p62
      %p65 = scmp.ne.s32.totalorder %s48, %s64
      %p66 = scmp.eq.s32.totalorder %s40, 0
      %p67 = por %p65, %p66
      %s69 = sadd.s32 %s68, 1
      %p72 = scmp.eq.s32.totalorder %s34, 1
      %p73 = scmp.ne.s32.totalorder %s68, %s70
      %p74 = scmp.eq.s32.totalorder %s34, 0
      %p75 = por %p73, %p74
      %p76 = scmp.ne.s32.totalorder %s68, %s70
      %p77 = scmp.eq.s32.totalorder %s39, 1
      %p78 = por %p76, %p77
      %p79 = scmp.ne.s32.totalorder %s70, %s71
      %p80 = scmp.eq.s32.totalorder %s39, 0
      %p81 = por %p79, %p80
      %p82 = scmp.ne.s32.totalorder %s70, %s71
      %p83 = scmp.eq.s32.totalorder %s40, 1
      %p84 = por %p82, %p83
      %p86 = scmp.ne.s32.totalorder %s71, %s85
      %p87 = scmp.eq.s32.totalorder %s40, 0
      %p88 = por %p86, %p87
      %s90 = sadd.s32 %s89, 1
      %p93 = scmp.eq.s32.totalorder %s34, 1
      %p94 = scmp.ne.s32.totalorder %s89, %s91
      %p95 = scmp.eq.s32.totalorder %s34, 0
      %p96 = por %p94, %p95
      %p97 = scmp.ne.s32.totalorder %s89, %s91
      %p98 = scmp.eq.s32.totalorder %s39, 1
      %p99 = por %p97, %p98
      %p100 = scmp.ne.s32.totalorder %s91, %s92
      %p101 = scmp.eq.s32.totalorder %s39, 0
      %p102 = por %p100, %p101
      %p103 = scmp.ne.s32.totalorder %s91, %s92
      %p104 = scmp.eq.s32.totalorder %s40, 1
      %p105 = por %p103, %p104
      %p107 = scmp.ne.s32.totalorder %s92, %s106
      %p108 = scmp.eq.s32.totalorder %s40, 0
      %p109 = por %p107, %p108
      %s111 = sadd.s32 %s110, 1
      %p114 = scmp.eq.s32.totalorder %s34, 1
      %p115 = scmp.ne.s32.totalorder %s110, %s112
      %p116 = scmp.eq.s32.totalorder %s34, 0
      %p117 = por %p115, %p116
      %p118 = scmp.ne.s32.totalorder %s110, %s112
      %p119 = scmp.eq.s32.totalorder %s39, 1
      %p120 = por %p118, %p119
      %p121 = scmp.ne.s32.totalorder %s112, %s113
      %p122 = scmp.eq.s32.totalorder %s39, 0
      %p123 = por %p121, %p122
      %p124 = scmp.ne.s32.totalorder %s112, %s113
      %p125 = scmp.eq.s32.totalorder %s40, 1
      %p126 = por %p124, %p125
      %p128 = scmp.ne.s32.totalorder %s113, %s127
      %p129 = scmp.eq.s32.totalorder %s40, 0
      %p130 = por %p128, %p129
      %s132 = sadd.s32 %s131, 1
      %p135 = scmp.eq.s32.totalorder %s34, 1
      %p136 = scmp.ne.s32.totalorder %s131, %s133
      %p137 = scmp.eq.s32.totalorder %s34, 0
      %p138 = por %p136, %p137
      %p139 = scmp.ne.s32.totalorder %s131, %s133
      %p140 = scmp.eq.s32.totalorder %s39, 1
      %p141 = por %p139, %p140
      %p142 = scmp.ne.s32.totalorder %s133, %s134
      %p143 = scmp.eq.s32.totalorder %s39, 0
      %p144 = por %p142, %p143
      %p145 = scmp.ne.s32.totalorder %s133, %s134
      %p146 = scmp.eq.s32.totalorder %s40, 1
      %p147 = por %p145, %p146
      %p149 = scmp.ne.s32.totalorder %s134, %s148
      %p150 = scmp.eq.s32.totalorder %s40, 0
      %p151 = por %p149, %p150
      %s153 = sadd.s32 %s152, 1
      %p156 = scmp.eq.s32.totalorder %s34, 1
      %p157 = scmp.ne.s32.totalorder %s152, %s154
      %p158 = scmp.eq.s32.totalorder %s34, 0
      %p159 = por %p157, %p158
      %p160 = scmp.ne.s32.totalorder %s152, %s154
      %p161 = scmp.eq.s32.totalorder %s39, 1
      %p162 = por %p160, %p161
      %p163 = scmp.ne.s32.totalorder %s154, %s155
      %p164 = scmp.eq.s32.totalorder %s39, 0
      %p165 = por %p163, %p164
      %p166 = scmp.ne.s32.totalorder %s154, %s155
      %p167 = scmp.eq.s32.totalorder %s40, 1
      %p168 = por %p166, %p167
      %p170 = scmp.ne.s32.totalorder %s155, %s169
      %p171 = scmp.eq.s32.totalorder %s40, 0
      %p172 = por %p170, %p171
      %s174 = sadd.s32 %s173, 1
      %p177 = scmp.eq.s32.totalorder %s34, 1
      %p178 = scmp.ne.s32.totalorder %s173, %s175
      %p179 = scmp.eq.s32.totalorder %s34, 0
      %p180 = por %p178, %p179
      %p181 = scmp.ne.s32.totalorder %s173, %s175
      %p182 = scmp.eq.s32.totalorder %s39, 1
      %p183 = por %p181, %p182
      %p184 = scmp.ne.s32.totalorder %s175, %s176
      %p185 = scmp.eq.s32.totalorder %s39, 0
      %p186 = por %p184, %p185
      %p187 = scmp.ne.s32.totalorder %s175, %s176
      %p188 = scmp.eq.s32.totalorder %s40, 1
      %p189 = por %p187, %p188
      %p191 = scmp.ne.s32.totalorder %s176, %s190
      %p192 = scmp.eq.s32.totalorder %s40, 0
      %p193 = por %p191, %p192
      %s195 = sadd.s32 %s194, 1
      %p198 = scmp.eq.s32.totalorder %s34, 1
      %p199 = scmp.ne.s32.totalorder %s194, %s196
      %p200 = scmp.eq.s32.totalorder %s34, 0
      %p201 = por %p199, %p200
      %p202 = scmp.ne.s32.totalorder %s194, %s196
      %p203 = scmp.eq.s32.totalorder %s39, 1
      %p204 = por %p202, %p203
      %p205 = scmp.ne.s32.totalorder %s196, %s197
      %p206 = scmp.eq.s32.totalorder %s39, 0
      %p207 = por %p205, %p206
      %p208 = scmp.ne.s32.totalorder %s196, %s197
      %p209 = scmp.eq.s32.totalorder %s40, 1
      %p210 = por %p208, %p209
      %p212 = scmp.ne.s32.totalorder %s197, %s211
      %p213 = scmp.eq.s32.totalorder %s40, 0
      %p214 = por %p212, %p213
      %s216 = sadd.s32 %s215, 1
      %p219 = scmp.eq.s32.totalorder %s34, 1
      %p220 = scmp.ne.s32.totalorder %s215, %s217
      %p221 = scmp.eq.s32.totalorder %s34, 0
      %p222 = por %p220, %p221
      %p223 = scmp.ne.s32.totalorder %s215, %s217
      %p224 = scmp.eq.s32.totalorder %s39, 1
      %p225 = por %p223, %p224
      %p226 = scmp.ne.s32.totalorder %s217, %s218
      %p227 = scmp.eq.s32.totalorder %s39, 0
      %p228 = por %p226, %p227
      %p229 = scmp.ne.s32.totalorder %s217, %s218
      %p230 = scmp.eq.s32.totalorder %s40, 1
      %p231 = por %p229, %p230
      %p233 = scmp.ne.s32.totalorder %s218, %s232
      %p234 = scmp.eq.s32.totalorder %s40, 0
      %p235 = por %p233, %p234
      %s237 = sadd.s32 %s236, 1
      %p240 = scmp.eq.s32.totalorder %s34, 1
      %p241 = scmp.ne.s32.totalorder %s236, %s238
      %p242 = scmp.eq.s32.totalorder %s34, 0
      %p243 = por %p241, %p242
      %p244 = scmp.ne.s32.totalorder %s236, %s238
      %p245 = scmp.eq.s32.totalorder %s39, 1
      %p246 = por %p244, %p245
      %p247 = scmp.ne.s32.totalorder %s238, %s239
      %p248 = scmp.eq.s32.totalorder %s39, 0
      %p249 = por %p247, %p248
      %p250 = scmp.ne.s32.totalorder %s238, %s239
      %p251 = scmp.eq.s32.totalorder %s40, 1
      %p252 = por %p250, %p251
      %p254 = scmp.ne.s32.totalorder %s239, %s253
      %p255 = scmp.eq.s32.totalorder %s40, 0
      %p256 = por %p254, %p255
      %s258 = sadd.s32 %s257, 1
      %p261 = scmp.eq.s32.totalorder %s34, 1
      %p262 = scmp.ne.s32.totalorder %s257, %s259
      %p263 = scmp.eq.s32.totalorder %s34, 0
      %p264 = por %p262, %p263
      %p265 = scmp.ne.s32.totalorder %s257, %s259
      %p266 = scmp.eq.s32.totalorder %s39, 1
      %p267 = por %p265, %p266
      %p268 = scmp.ne.s32.totalorder %s259, %s260
      %p269 = scmp.eq.s32.totalorder %s39, 0
      %p270 = por %p268, %p269
      %p271 = scmp.ne.s32.totalorder %s259, %s260
      %p272 = scmp.eq.s32.totalorder %s40, 1
      %p273 = por %p271, %p272
      %p275 = scmp.ne.s32.totalorder %s260, %s274
      %p276 = scmp.eq.s32.totalorder %s40, 0
      %p277 = por %p275, %p276
      %s279 = sadd.s32 %s278, 1
      %p282 = scmp.eq.s32.totalorder %s34, 1
      %p283 = scmp.ne.s32.totalorder %s278, %s280
      %p284 = scmp.eq.s32.totalorder %s34, 0
      %p285 = por %p283, %p284
      %p286 = scmp.ne.s32.totalorder %s278, %s280
      %p287 = scmp.eq.s32.totalorder %s39, 1
      %p288 = por %p286, %p287
      %p289 = scmp.ne.s32.totalorder %s280, %s281
      %p290 = scmp.eq.s32.totalorder %s39, 0
      %p291 = por %p289, %p290
      %p292 = scmp.ne.s32.totalorder %s280, %s281
      %p293 = scmp.eq.s32.totalorder %s40, 1
      %p294 = por %p292, %p293
      %p296 = scmp.ne.s32.totalorder %s281, %s295
      %p297 = scmp.eq.s32.totalorder %s40, 0
      %p298 = por %p296, %p297
      %s300 = sadd.s32 %s299, 1
      %p303 = scmp.eq.s32.totalorder %s34, 1
      %p304 = scmp.ne.s32.totalorder %s299, %s301
      %p305 = scmp.eq.s32.totalorder %s34, 0
      %p306 = por %p304, %p305
      %p307 = scmp.ne.s32.totalorder %s299, %s301
      %p308 = scmp.eq.s32.totalorder %s39, 1
      %p309 = por %p307, %p308
      %p310 = scmp.ne.s32.totalorder %s301, %s302
      %p311 = scmp.eq.s32.totalorder %s39, 0
      %p312 = por %p310, %p311
      %p313 = scmp.ne.s32.totalorder %s301, %s302
      %p314 = scmp.eq.s32.totalorder %s40, 1
      %p315 = por %p313, %p314
      %p317 = scmp.ne.s32.totalorder %s302, %s316
      %p318 = scmp.eq.s32.totalorder %s40, 0
      %p319 = por %p317, %p318
      %s321 = sadd.s32 %s320, 1
      %p324 = scmp.eq.s32.totalorder %s34, 1
      %p325 = scmp.ne.s32.totalorder %s320, %s322
      %p326 = scmp.eq.s32.totalorder %s34, 0
      %p327 = por %p325, %p326
      %p328 = scmp.ne.s32.totalorder %s320, %s322
      %p329 = scmp.eq.s32.totalorder %s39, 1
      %p330 = por %p328, %p329
      %p331 = scmp.ne.s32.totalorder %s322, %s323
      %p332 = scmp.eq.s32.totalorder %s39, 0
      %p333 = por %p331, %p332
      %p334 = scmp.ne.s32.totalorder %s322, %s323
      %p335 = scmp.eq.s32.totalorder %s40, 1
      %p336 = por %p334, %p335
      %p338 = scmp.ne.s32.totalorder %s323, %s337
      %p339 = scmp.eq.s32.totalorder %s40, 0
      %p340 = por %p338, %p339
      %s342 = sadd.s32 %s341, 1
      %p345 = scmp.eq.s32.totalorder %s34, 1
      %p346 = scmp.ne.s32.totalorder %s341, %s343
      %p347 = scmp.eq.s32.totalorder %s34, 0
      %p348 = por %p346, %p347
      %p349 = scmp.ne.s32.totalorder %s341, %s343
      %p350 = scmp.eq.s32.totalorder %s39, 1
      %p351 = por %p349, %p350
      %p352 = scmp.ne.s32.totalorder %s343, %s344
      %p353 = scmp.eq.s32.totalorder %s39, 0
      %p354 = por %p352, %p353
      %p355 = scmp.ne.s32.totalorder %s343, %s344
      %p356 = scmp.eq.s32.totalorder %s40, 1
      %p357 = por %p355, %p356
      %p359 = scmp.ne.s32.totalorder %s344, %s358
      %p360 = scmp.eq.s32.totalorder %s40, 0
      %p361 = por %p359, %p360
      %s363 = sadd.s32 %s362, 1
      %p366 = scmp.eq.s32.totalorder %s34, 1
      %p367 = scmp.ne.s32.totalorder %s362, %s364
      %p368 = scmp.eq.s32.totalorder %s34, 0
      %p369 = por %p367, %p368
      %p370 = scmp.ne.s32.totalorder %s362, %s364
      %p371 = scmp.eq.s32.totalorder %s39, 1
      %p372 = por %p370, %p371
      %p373 = scmp.ne.s32.totalorder %s364, %s365
      %p374 = scmp.eq.s32.totalorder %s39, 0
      %p375 = por %p373, %p374
      %p376 = scmp.ne.s32.totalorder %s364, %s365
      %p377 = scmp.eq.s32.totalorder %s40, 1
      %p378 = por %p376, %p377
      %p380 = scmp.ne.s32.totalorder %s365, %s379
      %p381 = scmp.eq.s32.totalorder %s40, 0
      %p382 = por %p380, %p381
      %s384 = sadd.s32 %s383, 1
      %p387 = scmp.eq.s32.totalorder %s34, 1
      %p388 = scmp.ne.s32.totalorder %s383, %s385
      %p389 = scmp.eq.s32.totalorder %s34, 0
      %p390 = por %p388, %p389
      %p391 = scmp.ne.s32.totalorder %s383, %s385
      %p392 = scmp.eq.s32.totalorder %s39, 1
      %p393 = por %p391, %p392
      %p394 = scmp.ne.s32.totalorder %s385, %s386
      %p395 = scmp.eq.s32.totalorder %s39, 0
      %p396 = por %p394, %p395
      %p397 = scmp.ne.s32.totalorder %s385, %s386
      %p398 = scmp.eq.s32.totalorder %s40, 1
      %p399 = por %p397, %p398
      %p401 = scmp.ne.s32.totalorder %s386, %s400
      %p402 = scmp.eq.s32.totalorder %s40, 0
      %p403 = por %p401, %p402
      %s405 = sadd.s32 %s404, 1
      %p408 = scmp.eq.s32.totalorder %s34, 1
      %p409 = scmp.ne.s32.totalorder %s404, %s406
      %p410 = scmp.eq.s32.totalorder %s34, 0
      %p411 = por %p409, %p410
      %p412 = scmp.ne.s32.totalorder %s404, %s406
      %p413 = scmp.eq.s32.totalorder %s39, 1
      %p414 = por %p412, %p413
      %p415 = scmp.ne.s32.totalorder %s406, %s407
      %p416 = scmp.eq.s32.totalorder %s39, 0
      %p417 = por %p415, %p416
      %p418 = scmp.ne.s32.totalorder %s406, %s407
      %p419 = scmp.eq.s32.totalorder %s40, 1
      %p420 = por %p418, %p419
      %p422 = scmp.ne.s32.totalorder %s407, %s421
      %p423 = scmp.eq.s32.totalorder %s40, 0
      %p424 = por %p422, %p423
      %s425 = ssub.s32 %s34, %s41
      %p426 = scmp.eq.s32.totalorder %s425, 0
      %s428 = sadd.s32 %s427, 1
      %s429 = scalar_select %p426, %s427, %s428
      %p432 = pneg %p426
      %p433 = scmp.eq.s32.totalorder %s34, 1
      %p434 = por %p432, %p433
      %p435 = scmp.ne.s32.totalorder %s427, %s430
      %p436 = scmp.eq.s32.totalorder %s34, 0
      %p437 = por %p435, %p436
      %p438 = scmp.ne.s32.totalorder %s427, %s430
      %p439 = scmp.eq.s32.totalorder %s39, 1
      %p440 = por %p438, %p439
      %p441 = scmp.ne.s32.totalorder %s430, %s431
      %p442 = scmp.eq.s32.totalorder %s39, 0
      %p443 = por %p441, %p442
      %p444 = scmp.ne.s32.totalorder %s430, %s431
      %p445 = scmp.eq.s32.totalorder %s40, 1
      %p446 = por %p444, %p445
      %p448 = scmp.ne.s32.totalorder %s431, %s447
      %p449 = scmp.eq.s32.totalorder %s40, 0
      %p450 = por %p448, %p449
      %s451 = ssub.s32 %s34, %s41
      %p452 = scmp.eq.s32.totalorder %s451, 0
      %s454 = sadd.s32 %s453, 1
      %s455 = scalar_select %p452, %s453, %s454
      %p458 = pneg %p452
      %p459 = scmp.eq.s32.totalorder %s34, 1
      %p460 = por %p458, %p459
      %p461 = scmp.ne.s32.totalorder %s453, %s456
      %p462 = scmp.eq.s32.totalorder %s34, 0
      %p463 = por %p461, %p462
      %p464 = scmp.ne.s32.totalorder %s453, %s456
      %p465 = scmp.eq.s32.totalorder %s39, 1
      %p466 = por %p464, %p465
      %p467 = scmp.ne.s32.totalorder %s456, %s457
      %p468 = scmp.eq.s32.totalorder %s39, 0
      %p469 = por %p467, %p468
      %p470 = scmp.ne.s32.totalorder %s456, %s457
      %p471 = scmp.eq.s32.totalorder %s40, 1
      %p472 = por %p470, %p471
      %p474 = scmp.ne.s32.totalorder %s457, %s473
      %p475 = scmp.eq.s32.totalorder %s40, 0
      %p476 = por %p474, %p475
      %p477 = scmp.le.s32.totalorder 1, %s34
      %p478 = scmp.lt.s32.totalorder %s34, 3
      %p479 = pnand %p477, %p478
      %p480 = pneg %p479
      // Predicated region
      $region9: #{tpu_custom_call.1} parent=5 // pred_check
        _
      $region10: #{tpu_custom_call.1} parent=5 // pred_check_branch
        %482 = sbr.rel (%p479) target = $region12
      $region11: #{tpu_custom_call.1} parent=5 // pred_region
        %s483 = ssub.s32 %s34, 1
        // Predicated region
        $region13: #{tpu_custom_call.1} parent=11 // pred_check
          %p484 = pneg %p81
        $region14: #{tpu_custom_call.1} parent=11 // pred_check_branch
          %486 = sbr.rel (%p484) target = $region16
        $region15: #{tpu_custom_call.1} parent=11 // pred_region
          _
        $region16: #{tpu_custom_call.1} parent=11 // pred_fallthru
          _
        // Predicated region
        $region17: #{tpu_custom_call.1} parent=11 // pred_check
          %p487 = pneg %p102
        $region18: #{tpu_custom_call.1} parent=11 // pred_check_branch
          %489 = sbr.rel (%p487) target = $region20
        $region19: #{tpu_custom_call.1} parent=11 // pred_region
          _
        $region20: #{tpu_custom_call.1} parent=11 // pred_fallthru
          _
        // Predicated region
        $region21: #{tpu_custom_call.1} parent=11 // pred_check
          %p490 = pneg %p123
        $region22: #{tpu_custom_call.1} parent=11 // pred_check_branch
          %492 = sbr.rel (%p490) target = $region24
        $region23: #{tpu_custom_call.1} parent=11 // pred_region
          %s494 = ssub.s32 3456, 3456
          %495 = vsyncadd [#allocation6], %s494
          %s496 = sshll.u32 [#allocation5], 4
          %s497 = int_to_ptr.vmem [resolvable:$true] %s496
          %502 = dma.hbm_to_vmem [thread:$0]  %s3, 3456, %s497, [#allocation6], 128, 128, 8
        $region24: #{tpu_custom_call.1} parent=11 // pred_fallthru
          _
        // Predicated region
        $region25: #{tpu_custom_call.1} parent=11 // pred_check
          %p503 = pneg %p144
        $region26: #{tpu_custom_call.1} parent=11 // pred_check_branch
          %505 = sbr.rel (%p503) target = $region28
        $region27: #{tpu_custom_call.1} parent=11 // pred_region
          _
        $region28: #{tpu_custom_call.1} parent=11 // pred_fallthru
          _
        // Predicated region
        $region29: #{tpu_custom_call.1} parent=11 // pred_check
          %p506 = pneg %p165
        $region30: #{tpu_custom_call.1} parent=11 // pred_check_branch
          %508 = sbr.rel (%p506) target = $region32
        $region31: #{tpu_custom_call.1} parent=11 // pred_region
          _
        $region32: #{tpu_custom_call.1} parent=11 // pred_fallthru
          _
        // Predicated region
        $region33: #{tpu_custom_call.1} parent=11 // pred_check
          %p509 = pneg %p186
        $region34: #{tpu_custom_call.1} parent=11 // pred_check_branch
          %511 = sbr.rel (%p509) target = $region36
        $region35: #{tpu_custom_call.1} parent=11 // pred_region
          _
        $region36: #{tpu_custom_call.1} parent=11 // pred_fallthru
          _
        // Predicated region
        $region37: #{tpu_custom_call.1} parent=11 // pred_check
          %p512 = pneg %p207
        $region38: #{tpu_custom_call.1} parent=11 // pred_check_branch
          %514 = sbr.rel (%p512) target = $region40
        $region39: #{tpu_custom_call.1} parent=11 // pred_region
          _
        $region40: #{tpu_custom_call.1} parent=11 // pred_fallthru
          _
        // Predicated region
        $region41: #{tpu_custom_call.1} parent=11 // pred_check
          %p515 = pneg %p228
        $region42: #{tpu_custom_call.1} parent=11 // pred_check_branch
          %517 = sbr.rel (%p515) target = $region44
        $region43: #{tpu_custom_call.1} parent=11 // pred_region
          %s519 = ssub.s32 6912, 6912
          %520 = vsyncadd [#allocation9], %s519
          %s521 = sshll.u32 [#allocation8], 4
          %s522 = int_to_ptr.vmem [resolvable:$true] %s521
          %527 = dma.hbm_to_vmem [thread:$0]  %s8, 6912, %s522, [#allocation9], 128, 128, 8
        $region44: #{tpu_custom_call.1} parent=11 // pred_fallthru
          _
        // Predicated region
        $region45: #{tpu_custom_call.1} parent=11 // pred_check
          %p528 = pneg %p249
        $region46: #{tpu_custom_call.1} parent=11 // pred_check_branch
          %530 = sbr.rel (%p528) target = $region48
        $region47: #{tpu_custom_call.1} parent=11 // pred_region
          _
        $region48: #{tpu_custom_call.1} parent=11 // pred_fallthru
          _
        // Predicated region
        $region49: #{tpu_custom_call.1} parent=11 // pred_check
          %p531 = pneg %p270
        $region50: #{tpu_custom_call.1} parent=11 // pred_check_branch
          %533 = sbr.rel (%p531) target = $region52
        $region51: #{tpu_custom_call.1} parent=11 // pred_region
          _
        $region52: #{tpu_custom_call.1} parent=11 // pred_fallthru
          _
        // Predicated region
        $region53: #{tpu_custom_call.1} parent=11 // pred_check
          %p534 = pneg %p291
        $region54: #{tpu_custom_call.1} parent=11 // pred_check_branch
          %536 = sbr.rel (%p534) target = $region56
        $region55: #{tpu_custom_call.1} parent=11 // pred_region
          _
        $region56: #{tpu_custom_call.1} parent=11 // pred_fallthru
          _
        // Predicated region
        $region57: #{tpu_custom_call.1} parent=11 // pred_check
          %p537 = pneg %p312
        $region58: #{tpu_custom_call.1} parent=11 // pred_check_branch
          %539 = sbr.rel (%p537) target = $region60
        $region59: #{tpu_custom_call.1} parent=11 // pred_region
          _
        $region60: #{tpu_custom_call.1} parent=11 // pred_fallthru
          _
        // Predicated region
        $region61: #{tpu_custom_call.1} parent=11 // pred_check
          %p540 = pneg %p333
        $region62: #{tpu_custom_call.1} parent=11 // pred_check_branch
          %542 = sbr.rel (%p540) target = $region64
        $region63: #{tpu_custom_call.1} parent=11 // pred_region
          %s544 = ssub.s32 6912, 6912
          %545 = vsyncadd [#allocation9], %s544
          %s546 = sshll.u32 [#allocation10], 4
          %s547 = int_to_ptr.vmem [resolvable:$true] %s546
          %552 = dma.hbm_to_vmem [thread:$0]  %s13, 6912, %s547, [#allocation9], 128, 128, 8
        $region64: #{tpu_custom_call.1} parent=11 // pred_fallthru
          _
        // Predicated region
        $region65: #{tpu_custom_call.1} parent=11 // pred_check
          %p553 = pneg %p354
        $region66: #{tpu_custom_call.1} parent=11 // pred_check_branch
          %555 = sbr.rel (%p553) target = $region68
        $region67: #{tpu_custom_call.1} parent=11 // pred_region
          _
        $region68: #{tpu_custom_call.1} parent=11 // pred_fallthru
          _
        // Predicated region
        $region69: #{tpu_custom_call.1} parent=11 // pred_check
          %p556 = pneg %p375
        $region70: #{tpu_custom_call.1} parent=11 // pred_check_branch
          %558 = sbr.rel (%p556) target = $region72
        $region71: #{tpu_custom_call.1} parent=11 // pred_region
          _
        $region72: #{tpu_custom_call.1} parent=11 // pred_fallthru
          _
        // Predicated region
        $region73: #{tpu_custom_call.1} parent=11 // pred_check
          %p559 = pneg %p396
        $region74: #{tpu_custom_call.1} parent=11 // pred_check_branch
          %561 = sbr.rel (%p559) target = $region76
        $region75: #{tpu_custom_call.1} parent=11 // pred_region
          _
        $region76: #{tpu_custom_call.1} parent=11 // pred_fallthru
          _
        // Predicated region
        $region77: #{tpu_custom_call.1} parent=11 // pred_check
          %p562 = pneg %p417
        $region78: #{tpu_custom_call.1} parent=11 // pred_check_branch
          %564 = sbr.rel (%p562) target = $region80
        $region79: #{tpu_custom_call.1} parent=11 // pred_region
          _
        $region80: #{tpu_custom_call.1} parent=11 // pred_fallthru
          _
      $region12: #{tpu_custom_call.1} parent=5 // pred_fallthru
        _
      %p565 = scmp.lt.s32.totalorder %s34, 2
      // Predicated region
      $region81: #{tpu_custom_call.1} parent=5 // pred_check
        %p566 = pneg %p565
      $region82: #{tpu_custom_call.1} parent=5 // pred_check_branch
        %568 = sbr.rel (%p566) target = $region84
      $region83: #{tpu_custom_call.1} parent=5 // pred_region
        // Predicated region
        $region85: #{tpu_custom_call.1} parent=83 // pred_check
          %p569 = pneg %p54
        $region86: #{tpu_custom_call.1} parent=83 // pred_check_branch
          %571 = sbr.rel (%p569) target = $region88
        $region87: #{tpu_custom_call.1} parent=83 // pred_region
          %p572 = scmp.lt.s32.totalorder %s34, 1
          %s573 = scalar_select %p572, %s34, 1
          %s574 = smul.addr %s573, 2
          %s575 = smul.addr %s574, 8
          %s576 = scalar_lea.vmem %s0, %s575
        $region88: #{tpu_custom_call.1} parent=83 // pred_fallthru
          _
      $region84: #{tpu_custom_call.1} parent=5 // pred_fallthru
        _
      %p577 = scmp.le.s32.totalorder 1, %s34
      %p578 = scmp.lt.s32.totalorder %s34, 3
      %p579 = pnand %p577, %p578
      %p580 = pneg %p579
      // Predicated region
      $region89: #{tpu_custom_call.1} parent=5 // pred_check
        _
      $region90: #{tpu_custom_call.1} parent=5 // pred_check_branch
        %582 = sbr.rel (%p579) target = $region92
      $region91: #{tpu_custom_call.1} parent=5 // pred_region
        %s583 = ssub.s32 %s34, 1
        // Predicated region
        $region93: #{tpu_custom_call.1} parent=91 // pred_check
          %p584 = pneg %p123
        $region94: #{tpu_custom_call.1} parent=91 // pred_check_branch
          %586 = sbr.rel (%p584) target = $region96
        $region95: #{tpu_custom_call.1} parent=91 // pred_region
          %587 = dma.done [#allocation6], 3456
        $region96: #{tpu_custom_call.1} parent=91 // pred_fallthru
          _
        // Predicated region
        $region97: #{tpu_custom_call.1} parent=91 // pred_check
          %p588 = pneg %p228
        $region98: #{tpu_custom_call.1} parent=91 // pred_check_branch
          %590 = sbr.rel (%p588) target = $region100
        $region99: #{tpu_custom_call.1} parent=91 // pred_region
          %591 = dma.done [#allocation9], 6912
        $region100: #{tpu_custom_call.1} parent=91 // pred_fallthru
          _
        // Predicated region
        $region101: #{tpu_custom_call.1} parent=91 // pred_check
          %p592 = pneg %p333
        $region102: #{tpu_custom_call.1} parent=91 // pred_check_branch
          %594 = sbr.rel (%p592) target = $region104
        $region103: #{tpu_custom_call.1} parent=91 // pred_region
          %595 = dma.done [#allocation9], 6912
        $region104: #{tpu_custom_call.1} parent=91 // pred_fallthru
          _
        %p596 = scmp.lt.s32.totalorder %s39, 1
        %s597 = scalar_select %p596, %s39, 1
        %s598 = smul.addr %s597, 2
        %s599 = smul.addr %s598, 8
        %s600 = scalar_lea.vmem %s0, %s599
        %p601 = pneg %p60
        %p602 = pneg %p57
        %p603 = pneg %p81
        %p604 = pneg %p78
        %p605 = pneg %p102
        %p606 = pneg %p99
        %p607 = pneg %p123
        %p608 = pneg %p120
        %p609 = pneg %p144
        %p610 = pneg %p141
        %p611 = pneg %p165
        %p612 = pneg %p162
        %p613 = pneg %p186
        %p614 = pneg %p183
        %p615 = pneg %p207
        %p616 = pneg %p204
        %p617 = pneg %p228
        %p618 = pneg %p225
        %p619 = pneg %p249
        %p620 = pneg %p246
        %p621 = pneg %p270
        %p622 = pneg %p267
        %p623 = pneg %p291
        %p624 = pneg %p288
        %p625 = pneg %p312
        %p626 = pneg %p309
        %p627 = pneg %p333
        %p628 = pneg %p330
        %p629 = pneg %p354
        %p630 = pneg %p351
        %p631 = pneg %p375
        %p632 = pneg %p372
        %p633 = pneg %p396
        %p634 = pneg %p393
        %p635 = pneg %p417
        %p636 = pneg %p414
        %p637 = pneg %p443
        %p638 = pneg %p440
        %s639 = sand.u32 %s430, 1
        %s640 = scalar_lea.sflag [#allocation7], %s639
        %s641 = sand.u32 %s430, 1
        %s642 = smul.addr %s641, 8
        %s643 = scalar_lea.vmem [#allocation11], %s642
        %p644 = pneg %p469
        %p645 = pneg %p466
        %s646 = sand.u32 %s456, 1
        %s647 = scalar_lea.sflag [#allocation13], %s646
        %s648 = sand.u32 %s456, 1
        %s649 = smul.addr %s648, 16
        %s650 = scalar_lea.vmem [#allocation12], %s649
        %p651 = scmp.lt.s32.totalorder %s39, 1
        %s652 = scalar_select %p651, %s39, 1
        %s653 = smul.addr %s652, 2
        %s654 = smul.addr %s653, 8
        %s655 = scalar_lea.vmem %s0, %s654
        %vm656 = vcmask 588800
        %657 = vst.msk [vmem:[#allocation2] sm:$0xff] %vm656, 0.0
        %658 = vst.msk [vmem:[#allocation2 + $0x8] sm:$0xff] %vm656, 0.0
        %vm659 = vcmask 582656
        %660 = vst.msk [vmem:[#allocation2 + $0x10] sm:$0x3] %vm659, 0.0
        %v661 = vld [vmem:[%s655] sm:$0xff]
        %v662 = vld [vmem:[%s655 + $0x8] sm:$0xff]
        %665 = vrot.lane.b32.xlu0 %v661, 4
        %v666 = vpop.permute.xlu0 %665
        %667 = vrot.lane.b32.xlu0 %v662, 4
        %v668 = vpop.permute.xlu0 %667
        %vm671 = vcmask 556064
        %672 = vst.msk [vmem:[#allocation2 + $0x1] sm:$0xff] %vm671, %v666
        %673 = vst.msk [vmem:[#allocation2 + $0x9] sm:$0xff] %vm671, %v668
        %v674 = vld [vmem:[#allocation2] sm:$0xff]
        %v675 = vld [vmem:[#allocation2 + $0x8] sm:$0xff]
        %v676 = vld [vmem:[#allocation5] sm:$0xff]
        %v677 = vld [vmem:[#allocation5 + $0x8] sm:$0xff]
        %v678 = vld [vmem:[#allocation5 + $0x10] sm:$0xff]
        %v679 = vld [vmem:[#allocation5 + $0x18] sm:$0xff]
        %v680 = vld [vmem:[#allocation5 + $0x20] sm:$0xff]
        %v681 = vld [vmem:[#allocation5 + $0x28] sm:$0xff]
        %v682 = vld [vmem:[#allocation5 + $0x30] sm:$0xff]
        %v683 = vld [vmem:[#allocation5 + $0x38] sm:$0xff]
        %v684 = vld [vmem:[#allocation5 + $0x40] sm:$0xff]
        %v685 = vld [vmem:[#allocation2 + $0x1] sm:$0xff]
        %v686 = vld [vmem:[#allocation2 + $0x9] sm:$0xff]
        %s687 = scalar_lea.vmem [#allocation5], 72
        %v688 = vld [vmem:[%s687] sm:$0xff]
        %v689 = vld [vmem:[%s687 + $0x8] sm:$0xff]
        %v690 = vld [vmem:[%s687 + $0x10] sm:$0xff]
        %v691 = vld [vmem:[%s687 + $0x18] sm:$0xff]
        %v692 = vld [vmem:[%s687 + $0x20] sm:$0xff]
        %v693 = vld [vmem:[%s687 + $0x28] sm:$0xff]
        %v694 = vld [vmem:[%s687 + $0x30] sm:$0xff]
        %v695 = vld [vmem:[%s687 + $0x38] sm:$0xff]
        %v696 = vld [vmem:[%s687 + $0x40] sm:$0xff]
        %v698 = vsel %vm656, %v685, 0
        %v701 = vsel %vm656, %v686, 0
        %703 = vmatprep.subr.mxu0 0.0
        %704 = vmatpush1.msra.mxu0 %v688
        %705 = vmatprep.subr.mxu0 0.0
        %706 = vmatpush1.msra.mxu0 %v689
        %707 = vmatprep.subr.mxu0 0.0
        %708 = vmatpush1.msra.mxu0 %v690
        %709 = vmatprep.subr.mxu0 0.0
        %710 = vmatpush1.msra.mxu0 %v691
        %711 = vmatprep.subr.mxu0 0.0
        %712 = vmatpush1.msra.mxu0 %v692
        %713 = vmatprep.subr.mxu0 0.0
        %714 = vmatpush1.msra.mxu0 %v693
        %715 = vmatprep.subr.mxu0 0.0
        %716 = vmatpush1.msra.mxu0 %v694
        %717 = vmatprep.subr.mxu0 0.0
        %718 = vmatpush1.msra.mxu0 %v695
        %719 = vmatprep.subr.mxu0 0.0
        %720 = vmatpush1.msra.mxu0 %v696
        %721 = vmatprep.subr.mxu0 0.0
        %722 = vmatpush1.msra.mxu0 0.0
        %723 = vmatprep.subr.mxu0 0.0
        %724 = vmatpush1.msra.mxu0 0.0
        %725 = vmatprep.subr.mxu0 0.0
        %726 = vmatpush1.msra.mxu0 0.0
        %727 = vmatprep.subr.mxu0 0.0
        %728 = vmatpush1.msra.mxu0 0.0
        %729 = vmatprep.subr.mxu0 0.0
        %730 = vmatpush1.msra.mxu0 0.0
        %731 = vmatprep.subr.mxu0 0.0
        %732 = vmatpush1.msra.mxu0 0.0
        %733 = vmatprep.subr.mxu0 0.0
        %734 = vmatpush1.msra.mxu0 0.0
        %735 = vmatprep.subr.mxu0 0.0
        %736 = vmatpush1.msra.mxu0 0.0
        %737 = vmatprep.subr.mxu0 0.0
        %738 = vmatpush1.msra.mxu0 0.0
        %739 = vmatprep.subr.mxu0 0.0
        %740 = vmatpush1.msra.mxu0 0.0
        %741 = vmatprep.subr.mxu0 0.0
        %742 = vmatpush1.msra.mxu0 0.0
        %743 = vmatprep.subr.mxu0 0.0
        %744 = vmatpush1.msra.mxu0 0.0
        %745 = vmatprep.subr.mxu0 0.0
        %746 = vmatpush1.msra.mxu0 0.0
        %747 = vmatprep.subr.mxu0 0.0
        %748 = vmatpush1.msra.mxu0 0.0
        %749 = vmatprep.subr.mxu0 0.0
        %750 = vmatpush1.msra.mxu0 0.0
        %751 = vmatprep.subr.mxu0 0.0
        %752 = vmatpush1.msra.mxu0 0.0
        %753 = vmatprep.subr.mxu0 0.0
        %754 = vmatpush1.msra.mxu0 0.0
        %755 = vmatprep.subr.mxu0 0.0
        %756 = vmatpush1.msra.mxu0 0.0
        %757 = vmatprep.subr.mxu0 0.0
        %758 = vmatpush1.msra.mxu0 0.0
        %759 = vmatprep.subr.mxu0 0.0
        %760 = vmatpush1.msra.mxu0 0.0
        %761 = vmatprep.subr.mxu0 0.0
        %762 = vmatpush1.msra.mxu0 0.0
        %763 = vmatprep.subr.mxu0 0.0
        %764 = vmatpush1.msra.mxu0 0.0
        %765 = vmatprep.subr.mxu0 0.0
        %766 = vmatpush1.msra.mxu0 0.0
        %767 = vmatprep.mubr.f32.mxu0 0.0
        %768 = vmatmul.mubr.f32.gmra.mrb[0].mxu0 %v698
        %v769 = vpop.f32.mrb[0].mxu0
        %v770 = vadd.f32 0.0, %v769
        %v771 = vpop.f32.mrb[0].mxu0
        %772 = vmatprep.mubr.f32.mxu0 0.0
        %773 = vmatmul.mubr.f32.gmra.mrb[0].mxu0 %v701
        %v774 = vpop.f32.mrb[0].mxu0
        %v775 = vadd.f32 0.0, %v774
        %v776 = vpop.f32.mrb[0].mxu0
        %777 = vdwg.mxu0
        %v779 = vsel %vm656, %v674, 0
        %v782 = vsel %vm656, %v675, 0
        %784 = vmatprep.subr.mxu0 0.0
        %785 = vmatpush1.msra.mxu0 %v676
        %786 = vmatprep.subr.mxu0 0.0
        %787 = vmatpush1.msra.mxu0 %v677
        %788 = vmatprep.subr.mxu0 0.0
        %789 = vmatpush1.msra.mxu0 %v678
        %790 = vmatprep.subr.mxu0 0.0
        %791 = vmatpush1.msra.mxu0 %v679
        %792 = vmatprep.subr.mxu0 0.0
        %793 = vmatpush1.msra.mxu0 %v680
        %794 = vmatprep.subr.mxu0 0.0
        %795 = vmatpush1.msra.mxu0 %v681
        %796 = vmatprep.subr.mxu0 0.0
        %797 = vmatpush1.msra.mxu0 %v682
        %798 = vmatprep.subr.mxu0 0.0
        %799 = vmatpush1.msra.mxu0 %v683
        %800 = vmatprep.subr.mxu0 0.0
        %801 = vmatpush1.msra.mxu0 %v684
        %802 = vmatprep.subr.mxu0 0.0
        %803 = vmatpush1.msra.mxu0 0.0
        %804 = vmatprep.subr.mxu0 0.0
        %805 = vmatpush1.msra.mxu0 0.0
        %806 = vmatprep.subr.mxu0 0.0
        %807 = vmatpush1.msra.mxu0 0.0
        %808 = vmatprep.subr.mxu0 0.0
        %809 = vmatpush1.msra.mxu0 0.0
        %810 = vmatprep.subr.mxu0 0.0
        %811 = vmatpush1.msra.mxu0 0.0
        %812 = vmatprep.subr.mxu0 0.0
        %813 = vmatpush1.msra.mxu0 0.0
        %814 = vmatprep.subr.mxu0 0.0
        %815 = vmatpush1.msra.mxu0 0.0
        %816 = vmatprep.subr.mxu0 0.0
        %817 = vmatpush1.msra.mxu0 0.0
        %818 = vmatprep.subr.mxu0 0.0
        %819 = vmatpush1.msra.mxu0 0.0
        %820 = vmatprep.subr.mxu0 0.0
        %821 = vmatpush1.msra.mxu0 0.0
        %822 = vmatprep.subr.mxu0 0.0
        %823 = vmatpush1.msra.mxu0 0.0
        %824 = vmatprep.subr.mxu0 0.0
        %825 = vmatpush1.msra.mxu0 0.0
        %826 = vmatprep.subr.mxu0 0.0
        %827 = vmatpush1.msra.mxu0 0.0
        %828 = vmatprep.subr.mxu0 0.0
        %829 = vmatpush1.msra.mxu0 0.0
        %830 = vmatprep.subr.mxu0 0.0
        %831 = vmatpush1.msra.mxu0 0.0
        %832 = vmatprep.subr.mxu0 0.0
        %833 = vmatpush1.msra.mxu0 0.0
        %834 = vmatprep.subr.mxu0 0.0
        %835 = vmatpush1.msra.mxu0 0.0
        %836 = vmatprep.subr.mxu0 0.0
        %837 = vmatpush1.msra.mxu0 0.0
        %838 = vmatprep.subr.mxu0 0.0
        %839 = vmatpush1.msra.mxu0 0.0
        %840 = vmatprep.subr.mxu0 0.0
        %841 = vmatpush1.msra.mxu0 0.0
        %842 = vmatprep.subr.mxu0 0.0
        %843 = vmatpush1.msra.mxu0 0.0
        %844 = vmatprep.subr.mxu0 0.0
        %845 = vmatpush1.msra.mxu0 0.0
        %846 = vmatprep.subr.mxu0 0.0
        %847 = vmatpush1.msra.mxu0 0.0
        %848 = vmatprep.mubr.f32.mxu0 0.0
        %849 = vmatmul.mubr.f32.gmra.mrb[0].mxu0 %v779
        %v850 = vpop.f32.mrb[0].mxu0
        %v851 = vadd.f32 %v770, %v850
        %v852 = vpop.f32.mrb[0].mxu0
        %853 = vmatprep.mubr.f32.mxu0 0.0
        %854 = vmatmul.mubr.f32.gmra.mrb[0].mxu0 %v782
        %v855 = vpop.f32.mrb[0].mxu0
        %v856 = vadd.f32 %v775, %v855
        %v857 = vpop.f32.mrb[0].mxu0
        %858 = vdwg.mxu0
        %v859 = vld [vmem:[#allocation2 + $0x2] sm:$0xff]
        %v860 = vld [vmem:[#allocation2 + $0xa] sm:$0xff]
        %s861 = scalar_lea.vmem [#allocation5], 144
        %v862 = vld [vmem:[%s861] sm:$0xff]
        %v863 = vld [vmem:[%s861 + $0x8] sm:$0xff]
        %v864 = vld [vmem:[%s861 + $0x10] sm:$0xff]
        %v865 = vld [vmem:[%s861 + $0x18] sm:$0xff]
        %v866 = vld [vmem:[%s861 + $0x20] sm:$0xff]
        %v867 = vld [vmem:[%s861 + $0x28] sm:$0xff]
        %v868 = vld [vmem:[%s861 + $0x30] sm:$0xff]
        %v869 = vld [vmem:[%s861 + $0x38] sm:$0xff]
        %v870 = vld [vmem:[%s861 + $0x40] sm:$0xff]
        %v872 = vsel %vm656, %v859, 0
        %v875 = vsel %vm656, %v860, 0
        %877 = vmatprep.subr.mxu0 0.0
        %878 = vmatpush1.msra.mxu0 %v862
        %879 = vmatprep.subr.mxu0 0.0
        %880 = vmatpush1.msra.mxu0 %v863
        %881 = vmatprep.subr.mxu0 0.0
        %882 = vmatpush1.msra.mxu0 %v864
        %883 = vmatprep.subr.mxu0 0.0
        %884 = vmatpush1.msra.mxu0 %v865
        %885 = vmatprep.subr.mxu0 0.0
        %886 = vmatpush1.msra.mxu0 %v866
        %887 = vmatprep.subr.mxu0 0.0
        %888 = vmatpush1.msra.mxu0 %v867
        %889 = vmatprep.subr.mxu0 0.0
        %890 = vmatpush1.msra.mxu0 %v868
        %891 = vmatprep.subr.mxu0 0.0
        %892 = vmatpush1.msra.mxu0 %v869
        %893 = vmatprep.subr.mxu0 0.0
        %894 = vmatpush1.msra.mxu0 %v870
        %895 = vmatprep.subr.mxu0 0.0
        %896 = vmatpush1.msra.mxu0 0.0
        %897 = vmatprep.subr.mxu0 0.0
        %898 = vmatpush1.msra.mxu0 0.0
        %899 = vmatprep.subr.mxu0 0.0
        %900 = vmatpush1.msra.mxu0 0.0
        %901 = vmatprep.subr.mxu0 0.0
        %902 = vmatpush1.msra.mxu0 0.0
        %903 = vmatprep.subr.mxu0 0.0
        %904 = vmatpush1.msra.mxu0 0.0
        %905 = vmatprep.subr.mxu0 0.0
        %906 = vmatpush1.msra.mxu0 0.0
        %907 = vmatprep.subr.mxu0 0.0
        %908 = vmatpush1.msra.mxu0 0.0
        %909 = vmatprep.subr.mxu0 0.0
        %910 = vmatpush1.msra.mxu0 0.0
        %911 = vmatprep.subr.mxu0 0.0
        %912 = vmatpush1.msra.mxu0 0.0
        %913 = vmatprep.subr.mxu0 0.0
        %914 = vmatpush1.msra.mxu0 0.0
        %915 = vmatprep.subr.mxu0 0.0
        %916 = vmatpush1.msra.mxu0 0.0
        %917 = vmatprep.subr.mxu0 0.0
        %918 = vmatpush1.msra.mxu0 0.0
        %919 = vmatprep.subr.mxu0 0.0
        %920 = vmatpush1.msra.mxu0 0.0
        %921 = vmatprep.subr.mxu0 0.0
        %922 = vmatpush1.msra.mxu0 0.0
        %923 = vmatprep.subr.mxu0 0.0
        %924 = vmatpush1.msra.mxu0 0.0
        %925 = vmatprep.subr.mxu0 0.0
        %926 = vmatpush1.msra.mxu0 0.0
        %927 = vmatprep.subr.mxu0 0.0
        %928 = vmatpush1.msra.mxu0 0.0
        %929 = vmatprep.subr.mxu0 0.0
        %930 = vmatpush1.msra.mxu0 0.0
        %931 = vmatprep.subr.mxu0 0.0
        %932 = vmatpush1.msra.mxu0 0.0
        %933 = vmatprep.subr.mxu0 0.0
        %934 = vmatpush1.msra.mxu0 0.0
        %935 = vmatprep.subr.mxu0 0.0
        %936 = vmatpush1.msra.mxu0 0.0
        %937 = vmatprep.subr.mxu0 0.0
        %938 = vmatpush1.msra.mxu0 0.0
        %939 = vmatprep.subr.mxu0 0.0
        %940 = vmatpush1.msra.mxu0 0.0
        %941 = vmatprep.mubr.f32.mxu0 0.0
        %942 = vmatmul.mubr.f32.gmra.mrb[0].mxu0 %v872
        %v943 = vpop.f32.mrb[0].mxu0
        %v944 = vadd.f32 0.0, %v943
        %v945 = vpop.f32.mrb[0].mxu0
        %946 = vmatprep.mubr.f32.mxu0 0.0
        %947 = vmatmul.mubr.f32.gmra.mrb[0].mxu0 %v875
        %v948 = vpop.f32.mrb[0].mxu0
        %v949 = vadd.f32 0.0, %v948
        %v950 = vpop.f32.mrb[0].mxu0
        %951 = vdwg.mxu0
        %v952 = vadd.f32 %v851, %v944
        %v953 = vadd.f32 %v856, %v949
        %v954 = vld [vmem:[%s4] sm:$0x1]
        %v956 = vlaneseq
        %v957 = vshrl.u32 %v956, 7
        %v958 = vsub.s32 0, %v957
        %v959 = vrot.slane %v954, %v958
        %v961 = vadd.f32 %v952, %v959
        %v962 = vadd.f32 %v953, %v959
        %v963 = vadd.f32 %v961, %v962
        %v964 = vrot.slane %v963, 4
        %v965 = vadd.f32 %v963, %v964
        %v966 = vrot.slane %v965, 2
        %v967 = vadd.f32 %v965, %v966
        %v968 = vrot.slane %v967, 1
        %v969 = vadd.f32 %v967, %v968
        %v970 = vmul.f32 %v961, %v961
        %v971 = vmul.f32 %v962, %v962
        %v972 = vadd.f32 %v970, %v971
        %v973 = vrot.slane %v972, 4
        %v974 = vadd.f32 %v972, %v973
        %v975 = vrot.slane %v974, 2
        %v976 = vadd.f32 %v974, %v975
        %v977 = vrot.slane %v976, 1
        %v978 = vadd.f32 %v976, %v977
        %v979 = vld [vmem:[%s7] sm:$0x3]
        %v980 = vmul.f32 %v969, %v979
        %vm981 = vcmask 1040384
        %v982 = vsel %vm981, %v980, 0.0
        %983 = vadd.xlane.f32.xlu0 %v982
        %v984 = vpop.xlane.xlu0 %983
        %v985 = vrot.slane %v984, 4
        %v986 = vadd.f32 %v984, %v985
        %v987 = vrot.slane %v986, 2
        %v988 = vadd.f32 %v986, %v987
        %v989 = vrot.slane %v988, 1
        %v990 = vadd.f32 %v988, %v989
        %s991 = vtos %v990
        %v992 = vstv %s991
        %v993 = vrcp.pop 1024.0
        %v994 = vmul.f32 %v992, %v993
        %v995 = vmul.f32 %v978, %v979
        %v996 = vsel %vm981, %v995, 0.0
        %997 = vadd.xlane.f32.xlu0 %v996
        %v998 = vpop.xlane.xlu0 %997
        %v999 = vrot.slane %v998, 4
        %v1000 = vadd.f32 %v998, %v999
        %v1001 = vrot.slane %v1000, 2
        %v1002 = vadd.f32 %v1000, %v1001
        %v1003 = vrot.slane %v1002, 1
        %v1004 = vadd.f32 %v1002, %v1003
        %s1005 = vtos %v1004
        %v1006 = vstv %s1005
        %v1007 = vmul.f32 %v1006, %v993
        %v1008 = vmul.f32 %v994, %v994
        %v1009 = vsub.f32 %v1007, %v1008
        %v1010 = vmax.f32 %v1009, 0.0
        %v1011 = vmul.f32 %v979, %v994
        %v1012 = vadd.f32 %v1011, 0.0
        %v1013 = vadd.f32 %v1010, 1e-05
        %v1014 = vrsqrt.pop %v1013
        %v1015 = vmul.f32 %v979, %v1014
        %v1016 = vadd.f32 %v1015, 0.0
        %v1018 = vrot.slane %v980, 1
        %v1020 = vsel %vm981, %v1018, 0.0
        %1021 = vadd.xlane.f32.xlu0 %v1020
        %v1022 = vpop.xlane.xlu0 %1021
        %v1023 = vrot.slane %v1022, 4
        %v1024 = vadd.f32 %v1022, %v1023
        %v1025 = vrot.slane %v1024, 2
        %v1026 = vadd.f32 %v1024, %v1025
        %v1027 = vrot.slane %v1026, 1
        %v1028 = vadd.f32 %v1026, %v1027
        %s1029 = vtos %v1028
        %v1030 = vstv %s1029
        %v1031 = vmul.f32 %v1030, %v993
        %v1033 = vrot.slane %v995, 1
        %v1035 = vsel %vm981, %v1033, 0.0
        %1036 = vadd.xlane.f32.xlu0 %v1035
        %v1037 = vpop.xlane.xlu0 %1036
        %v1038 = vrot.slane %v1037, 4
        %v1039 = vadd.f32 %v1037, %v1038
        %v1040 = vrot.slane %v1039, 2
        %v1041 = vadd.f32 %v1039, %v1040
        %v1042 = vrot.slane %v1041, 1
        %v1043 = vadd.f32 %v1041, %v1042
        %s1044 = vtos %v1043
        %v1045 = vstv %s1044
        %v1046 = vmul.f32 %v1045, %v993
        %v1047 = vmul.f32 %v1031, %v1031
        %v1048 = vsub.f32 %v1046, %v1047
        %v1049 = vmax.f32 %v1048, 0.0
        %v1050 = vmul.f32 %v979, %v1031
        %v1052 = vrot.slane %v1050, 1
        %v1054 = vadd.f32 %v1012, %v1052
        %v1055 = vadd.f32 %v1049, 1e-05
        %v1056 = vrsqrt.pop %v1055
        %v1057 = vmul.f32 %v979, %v1056
        %v1059 = vrot.slane %v1057, 1
        %v1061 = vadd.f32 %v1016, %v1059
        %v1062 = vlaneseq
        %v1063 = vshrl.u32 %v1062, 7
        %v1064 = vsub.s32 0, %v1063
        %v1065 = vrot.slane %v1054, %v1064
        %v1066 = vsub.f32 %v961, %v1065
        %v1067 = vsub.f32 %v962, %v1065
        %v1068 = vlaneseq
        %v1069 = vshrl.u32 %v1068, 7
        %v1070 = vsub.s32 0, %v1069
        %v1071 = vrot.slane %v1061, %v1070
        %v1072 = vmul.f32 %v1066, %v1071
        %v1073 = vmul.f32 %v1067, %v1071
        %v1074 = vld [vmem:[%s5] sm:$0x1]
        %v1076 = vlaneseq
        %v1077 = vshrl.u32 %v1076, 7
        %v1078 = vsub.s32 0, %v1077
        %v1079 = vrot.slane %v1074, %v1078
        %v1081 = vmul.f32 %v1072, %v1079
        %v1082 = vmul.f32 %v1073, %v1079
        %v1083 = vld [vmem:[%s6] sm:$0x1]
        %v1085 = vlaneseq
        %v1086 = vshrl.u32 %v1085, 7
        %v1087 = vsub.s32 0, %v1086
        %v1088 = vrot.slane %v1083, %v1087
        %v1090 = vadd.f32 %v1081, %v1088
        %v1091 = vadd.f32 %v1082, %v1088
        %v1092 = vmax.f32 %v1090, 0.0
        %v1093 = vmax.f32 %v1091, 0.0
        %1094 = vst [vmem:[#allocation3] sm:$0xff] 0.0
        %vm1095 = vcmask 130048
        %1096 = vst.msk [vmem:[#allocation3 + $0x8] sm:$0xff] %vm1095, 0.0
        %1097 = vst [vmem:[#allocation3 + $0x10] sm:$0xff] 0.0
        %1098 = vst.msk [vmem:[#allocation3 + $0x18] sm:$0xff] %vm1095, 0.0
        %1099 = vst [vmem:[#allocation3 + $0x20] sm:$0x3] 0.0
        %vm1100 = vcmask 123904
        %1101 = vst.msk [vmem:[#allocation3 + $0x28] sm:$0x3] %vm1100, 0.0
        %v1104 = vrot.slane %v1092, 7
        %v1105 = vrot.slane %v1093, 7
        %v1106 = vsel %vm981, %v1104, %v1105
        %1107 = vrot.lane.b32.xlu0 %v1104, 8
        %v1108 = vpop.permute.xlu0 %1107
        %1109 = vrot.lane.b32.xlu0 %v1106, 8
        %v1110 = vpop.permute.xlu0 %1109
        %1111 = vrot.lane.b32.xlu0 %v1105, 8
        %v1112 = vpop.permute.xlu0 %1111
        %vm1116 = vcmask 1047617
        %1117 = vst.msk [vmem:[#allocation3] sm:$0xfe] %vm1116, %v1108
        %vm1118 = vcmask 64513
        %1119 = vst.msk [vmem:[#allocation3 + $0x8] sm:$0xfe] %vm1118, %v1108
        %vm1120 = vcmask 1047616
        %1121 = vst.msk [vmem:[#allocation3 + $0x10] sm:$0xff] %vm1120, %v1110
        %vm1122 = vcmask 64512
        %1123 = vst.msk [vmem:[#allocation3 + $0x18] sm:$0xff] %vm1122, %v1110
        %vm1124 = vcmask 1040448
        %1125 = vst.msk [vmem:[#allocation3 + $0x20] sm:$0x1] %vm1124, %v1112
        %vm1126 = vcmask 57344
        %1127 = vst.msk [vmem:[#allocation3 + $0x28] sm:$0x1] %vm1126, %v1112
        %v1128 = vld [vmem:[#allocation3] sm:$0xff]
        %v1129 = vld [vmem:[#allocation3 + $0x8] sm:$0xff]
        %v1130 = vld [vmem:[#allocation3 + $0x10] sm:$0xff]
        %v1131 = vld [vmem:[#allocation3 + $0x18] sm:$0xff]
        %v1132 = vld [vmem:[#allocation8] sm:$0xff]
        %v1133 = vld [vmem:[#allocation8 + $0x8] sm:$0xff]
        %v1134 = vld [vmem:[#allocation8 + $0x10] sm:$0xff]
        %v1135 = vld [vmem:[#allocation8 + $0x18] sm:$0xff]
        %v1136 = vld [vmem:[#allocation8 + $0x20] sm:$0xff]
        %v1137 = vld [vmem:[#allocation8 + $0x28] sm:$0xff]
        %v1138 = vld [vmem:[#allocation8 + $0x30] sm:$0xff]
        %v1139 = vld [vmem:[#allocation8 + $0x38] sm:$0xff]
        %v1140 = vld [vmem:[#allocation8 + $0x40] sm:$0xff]
        %v1141 = vld [vmem:[#allocation8 + $0x48] sm:$0xff]
        %v1142 = vld [vmem:[#allocation8 + $0x50] sm:$0xff]
        %v1143 = vld [vmem:[#allocation8 + $0x58] sm:$0xff]
        %v1144 = vld [vmem:[#allocation8 + $0x60] sm:$0xff]
        %v1145 = vld [vmem:[#allocation8 + $0x68] sm:$0xff]
        %v1146 = vld [vmem:[#allocation8 + $0x70] sm:$0xff]
        %v1147 = vld [vmem:[#allocation8 + $0x78] sm:$0xff]
        %v1148 = vld [vmem:[#allocation8 + $0x80] sm:$0xff]
        %v1149 = vld [vmem:[#allocation8 + $0x88] sm:$0xff]
        %v1150 = vld [vmem:[#allocation3] sm:$0xfe]
        %v1151 = vld [vmem:[#allocation3 + $0x8] sm:$0xfe]
        %v1152 = vld [vmem:[#allocation3 + $0x20] sm:$0x1]
        %v1153 = vld [vmem:[#allocation3 + $0x28] sm:$0x1]
        %s1154 = scalar_lea.vmem [#allocation8], 144
        %v1155 = vld [vmem:[%s1154] sm:$0xff]
        %v1156 = vld [vmem:[%s1154 + $0x8] sm:$0xff]
        %v1157 = vld [vmem:[%s1154 + $0x10] sm:$0xff]
        %v1158 = vld [vmem:[%s1154 + $0x18] sm:$0xff]
        %v1159 = vld [vmem:[%s1154 + $0x20] sm:$0xff]
        %v1160 = vld [vmem:[%s1154 + $0x28] sm:$0xff]
        %v1161 = vld [vmem:[%s1154 + $0x30] sm:$0xff]
        %v1162 = vld [vmem:[%s1154 + $0x38] sm:$0xff]
        %v1163 = vld [vmem:[%s1154 + $0x40] sm:$0xff]
        %v1164 = vld [vmem:[%s1154 + $0x48] sm:$0xff]
        %v1165 = vld [vmem:[%s1154 + $0x50] sm:$0xff]
        %v1166 = vld [vmem:[%s1154 + $0x58] sm:$0xff]
        %v1167 = vld [vmem:[%s1154 + $0x60] sm:$0xff]
        %v1168 = vld [vmem:[%s1154 + $0x68] sm:$0xff]
        %v1169 = vld [vmem:[%s1154 + $0x70] sm:$0xff]
        %v1170 = vld [vmem:[%s1154 + $0x78] sm:$0xff]
        %v1171 = vld [vmem:[%s1154 + $0x80] sm:$0xff]
        %v1172 = vld [vmem:[%s1154 + $0x88] sm:$0xff]
        %vm1179 = vcmask 1046528
        %v1180 = vrot.slane %v1150, 1
        %v1181 = vrot.slane %v1130, 1
        %v1182 = vsel %vm1179, %v1180, %v1181
        %v1183 = vrot.slane %v1151, 1
        %v1184 = vrot.slane %v1131, 1
        %v1185 = vsel %vm1179, %v1183, %v1184
        %v1186 = vrot.slane %v1152, 1
        %v1187 = vsel %vm1179, %v1181, %v1186
        %v1188 = vrot.slane %v1153, 1
        %v1189 = vsel %vm1179, %v1184, %v1188
        %v1192 = vsel %vm1095, %v1185, 0
        %v1194 = vsel %vm1095, %v1189, 0
        %1196 = vmatprep.subr.mxu0 0.0
        %1197 = vmatpush1.msra.mxu0 %v1155
        %1198 = vmatprep.subr.mxu0 0.0
        %1199 = vmatpush1.msra.mxu0 %v1156
        %1200 = vmatprep.subr.mxu0 0.0
        %1201 = vmatpush1.msra.mxu0 %v1157
        %1202 = vmatprep.subr.mxu0 0.0
        %1203 = vmatpush1.msra.mxu0 %v1158
        %1204 = vmatprep.subr.mxu0 0.0
        %1205 = vmatpush1.msra.mxu0 %v1159
        %1206 = vmatprep.subr.mxu0 0.0
        %1207 = vmatpush1.msra.mxu0 %v1160
        %1208 = vmatprep.subr.mxu0 0.0
        %1209 = vmatpush1.msra.mxu0 %v1161
        %1210 = vmatprep.subr.mxu0 0.0
        %1211 = vmatpush1.msra.mxu0 %v1162
        %1212 = vmatprep.subr.mxu0 0.0
        %1213 = vmatpush1.msra.mxu0 %v1163
        %1214 = vmatprep.subr.mxu0 0.0
        %1215 = vmatpush1.msra.mxu0 %v1164
        %1216 = vmatprep.subr.mxu0 0.0
        %1217 = vmatpush1.msra.mxu0 %v1165
        %1218 = vmatprep.subr.mxu0 0.0
        %1219 = vmatpush1.msra.mxu0 %v1166
        %1220 = vmatprep.subr.mxu0 0.0
        %1221 = vmatpush1.msra.mxu0 %v1167
        %1222 = vmatprep.subr.mxu0 0.0
        %1223 = vmatpush1.msra.mxu0 %v1168
        %1224 = vmatprep.subr.mxu0 0.0
        %1225 = vmatpush1.msra.mxu0 %v1169
        %1226 = vmatprep.subr.mxu0 0.0
        %1227 = vmatpush1.msra.mxu0 %v1170
        %1228 = vmatprep.subr.mxu0 0.0
        %1229 = vmatpush1.msra.mxu0 %v1171
        %1230 = vmatprep.subr.mxu0 0.0
        %1231 = vmatpush1.msra.mxu0 %v1172
        %1232 = vmatprep.subr.mxu0 0.0
        %1233 = vmatpush1.msra.mxu0 0.0
        %1234 = vmatprep.subr.mxu0 0.0
        %1235 = vmatpush1.msra.mxu0 0.0
        %1236 = vmatprep.subr.mxu0 0.0
        %1237 = vmatpush1.msra.mxu0 0.0
        %1238 = vmatprep.subr.mxu0 0.0
        %1239 = vmatpush1.msra.mxu0 0.0
        %1240 = vmatprep.subr.mxu0 0.0
        %1241 = vmatpush1.msra.mxu0 0.0
        %1242 = vmatprep.subr.mxu0 0.0
        %1243 = vmatpush1.msra.mxu0 0.0
        %1244 = vmatprep.subr.mxu0 0.0
        %1245 = vmatpush1.msra.mxu0 0.0
        %1246 = vmatprep.subr.mxu0 0.0
        %1247 = vmatpush1.msra.mxu0 0.0
        %1248 = vmatprep.subr.mxu0 0.0
        %1249 = vmatpush1.msra.mxu0 0.0
        %1250 = vmatprep.subr.mxu0 0.0
        %1251 = vmatpush1.msra.mxu0 0.0
        %1252 = vmatprep.subr.mxu0 0.0
        %1253 = vmatpush1.msra.mxu0 0.0
        %1254 = vmatprep.subr.mxu0 0.0
        %1255 = vmatpush1.msra.mxu0 0.0
        %1256 = vmatprep.subr.mxu0 0.0
        %1257 = vmatpush1.msra.mxu0 0.0
        %1258 = vmatprep.subr.mxu0 0.0
        %1259 = vmatpush1.msra.mxu0 0.0
        %1260 = vmatprep.mubr.f32.mxu0 %v1192
        %1261 = vmatmul.mubr.f32.gmra.mrb[0].mxu0 %v1182
        %v1262 = vpop.f32.mrb[0].mxu0
        %v1263 = vadd.f32 0.0, %v1262
        %v1264 = vpop.f32.mrb[0].mxu0
        %1265 = vmatprep.mubr.f32.mxu0 %v1194
        %1266 = vmatmul.mubr.f32.gmra.mrb[0].mxu0 %v1187
        %v1267 = vpop.f32.mrb[0].mxu0
        %v1268 = vadd.f32 0.0, %v1267
        %v1269 = vpop.f32.mrb[0].mxu0
        %1270 = vdwg.mxu0
        %v1272 = vsel %vm1095, %v1129, 0
        %v1274 = vsel %vm1095, %v1131, 0
        %1276 = vmatprep.subr.mxu0 0.0
        %1277 = vmatpush1.msra.mxu0 %v1132
        %1278 = vmatprep.subr.mxu0 0.0
        %1279 = vmatpush1.msra.mxu0 %v1133
        %1280 = vmatprep.subr.mxu0 0.0
        %1281 = vmatpush1.msra.mxu0 %v1134
        %1282 = vmatprep.subr.mxu0 0.0
        %1283 = vmatpush1.msra.mxu0 %v1135
        %1284 = vmatprep.subr.mxu0 0.0
        %1285 = vmatpush1.msra.mxu0 %v1136
        %1286 = vmatprep.subr.mxu0 0.0
        %1287 = vmatpush1.msra.mxu0 %v1137
        %1288 = vmatprep.subr.mxu0 0.0
        %1289 = vmatpush1.msra.mxu0 %v1138
        %1290 = vmatprep.subr.mxu0 0.0
        %1291 = vmatpush1.msra.mxu0 %v1139
        %1292 = vmatprep.subr.mxu0 0.0
        %1293 = vmatpush1.msra.mxu0 %v1140
        %1294 = vmatprep.subr.mxu0 0.0
        %1295 = vmatpush1.msra.mxu0 %v1141
        %1296 = vmatprep.subr.mxu0 0.0
        %1297 = vmatpush1.msra.mxu0 %v1142
        %1298 = vmatprep.subr.mxu0 0.0
        %1299 = vmatpush1.msra.mxu0 %v1143
        %1300 = vmatprep.subr.mxu0 0.0
        %1301 = vmatpush1.msra.mxu0 %v1144
        %1302 = vmatprep.subr.mxu0 0.0
        %1303 = vmatpush1.msra.mxu0 %v1145
        %1304 = vmatprep.subr.mxu0 0.0
        %1305 = vmatpush1.msra.mxu0 %v1146
        %1306 = vmatprep.subr.mxu0 0.0
        %1307 = vmatpush1.msra.mxu0 %v1147
        %1308 = vmatprep.subr.mxu0 0.0
        %1309 = vmatpush1.msra.mxu0 %v1148
        %1310 = vmatprep.subr.mxu0 0.0
        %1311 = vmatpush1.msra.mxu0 %v1149
        %1312 = vmatprep.subr.mxu0 0.0
        %1313 = vmatpush1.msra.mxu0 0.0
        %1314 = vmatprep.subr.mxu0 0.0
        %1315 = vmatpush1.msra.mxu0 0.0
        %1316 = vmatprep.subr.mxu0 0.0
        %1317 = vmatpush1.msra.mxu0 0.0
        %1318 = vmatprep.subr.mxu0 0.0
        %1319 = vmatpush1.msra.mxu0 0.0
        %1320 = vmatprep.subr.mxu0 0.0
        %1321 = vmatpush1.msra.mxu0 0.0
        %1322 = vmatprep.subr.mxu0 0.0
        %1323 = vmatpush1.msra.mxu0 0.0
        %1324 = vmatprep.subr.mxu0 0.0
        %1325 = vmatpush1.msra.mxu0 0.0
        %1326 = vmatprep.subr.mxu0 0.0
        %1327 = vmatpush1.msra.mxu0 0.0
        %1328 = vmatprep.subr.mxu0 0.0
        %1329 = vmatpush1.msra.mxu0 0.0
        %1330 = vmatprep.subr.mxu0 0.0
        %1331 = vmatpush1.msra.mxu0 0.0
        %1332 = vmatprep.subr.mxu0 0.0
        %1333 = vmatpush1.msra.mxu0 0.0
        %1334 = vmatprep.subr.mxu0 0.0
        %1335 = vmatpush1.msra.mxu0 0.0
        %1336 = vmatprep.subr.mxu0 0.0
        %1337 = vmatpush1.msra.mxu0 0.0
        %1338 = vmatprep.subr.mxu0 0.0
        %1339 = vmatpush1.msra.mxu0 0.0
        %1340 = vmatprep.mubr.f32.mxu0 %v1272
        %1341 = vmatmul.mubr.f32.gmra.mrb[0].mxu0 %v1128
        %v1342 = vpop.f32.mrb[0].mxu0
        %v1343 = vadd.f32 %v1263, %v1342
        %v1344 = vpop.f32.mrb[0].mxu0
        %1345 = vmatprep.mubr.f32.mxu0 %v1274
        %1346 = vmatmul.mubr.f32.gmra.mrb[0].mxu0 %v1130
        %v1347 = vpop.f32.mrb[0].mxu0
        %v1348 = vadd.f32 %v1268, %v1347
        %v1349 = vpop.f32.mrb[0].mxu0
        %1350 = vdwg.mxu0
        %v1351 = vld [vmem:[#allocation3] sm:$0xfc]
        %v1352 = vld [vmem:[#allocation3 + $0x8] sm:$0xfc]
        %v1353 = vld [vmem:[#allocation3 + $0x20] sm:$0x3]
        %v1354 = vld [vmem:[#allocation3 + $0x28] sm:$0x3]
        %s1355 = scalar_lea.vmem [#allocation8], 288
        %v1356 = vld [vmem:[%s1355] sm:$0xff]
        %v1357 = vld [vmem:[%s1355 + $0x8] sm:$0xff]
        %v1358 = vld [vmem:[%s1355 + $0x10] sm:$0xff]
        %v1359 = vld [vmem:[%s1355 + $0x18] sm:$0xff]
        %v1360 = vld [vmem:[%s1355 + $0x20] sm:$0xff]
        %v1361 = vld [vmem:[%s1355 + $0x28] sm:$0xff]
        %v1362 = vld [vmem:[%s1355 + $0x30] sm:$0xff]
        %v1363 = vld [vmem:[%s1355 + $0x38] sm:$0xff]
        %v1364 = vld [vmem:[%s1355 + $0x40] sm:$0xff]
        %v1365 = vld [vmem:[%s1355 + $0x48] sm:$0xff]
        %v1366 = vld [vmem:[%s1355 + $0x50] sm:$0xff]
        %v1367 = vld [vmem:[%s1355 + $0x58] sm:$0xff]
        %v1368 = vld [vmem:[%s1355 + $0x60] sm:$0xff]
        %v1369 = vld [vmem:[%s1355 + $0x68] sm:$0xff]
        %v1370 = vld [vmem:[%s1355 + $0x70] sm:$0xff]
        %v1371 = vld [vmem:[%s1355 + $0x78] sm:$0xff]
        %v1372 = vld [vmem:[%s1355 + $0x80] sm:$0xff]
        %v1373 = vld [vmem:[%s1355 + $0x88] sm:$0xff]
        %vm1378 = vcmask 1045504
        %v1379 = vrot.slane %v1351, 2
        %v1380 = vrot.slane %v1130, 2
        %v1381 = vsel %vm1378, %v1379, %v1380
        %v1382 = vrot.slane %v1352, 2
        %v1383 = vrot.slane %v1131, 2
        %v1384 = vsel %vm1378, %v1382, %v1383
        %v1385 = vrot.slane %v1353, 2
        %v1386 = vsel %vm1378, %v1380, %v1385
        %v1387 = vrot.slane %v1354, 2
        %v1388 = vsel %vm1378, %v1383, %v1387
        %v1391 = vsel %vm1095, %v1384, 0
        %v1393 = vsel %vm1095, %v1388, 0
        %1395 = vmatprep.subr.mxu0 0.0
        %1396 = vmatpush1.msra.mxu0 %v1356
        %1397 = vmatprep.subr.mxu0 0.0
        %1398 = vmatpush1.msra.mxu0 %v1357
        %1399 = vmatprep.subr.mxu0 0.0
        %1400 = vmatpush1.msra.mxu0 %v1358
        %1401 = vmatprep.subr.mxu0 0.0
        %1402 = vmatpush1.msra.mxu0 %v1359
        %1403 = vmatprep.subr.mxu0 0.0
        %1404 = vmatpush1.msra.mxu0 %v1360
        %1405 = vmatprep.subr.mxu0 0.0
        %1406 = vmatpush1.msra.mxu0 %v1361
        %1407 = vmatprep.subr.mxu0 0.0
        %1408 = vmatpush1.msra.mxu0 %v1362
        %1409 = vmatprep.subr.mxu0 0.0
        %1410 = vmatpush1.msra.mxu0 %v1363
        %1411 = vmatprep.subr.mxu0 0.0
        %1412 = vmatpush1.msra.mxu0 %v1364
        %1413 = vmatprep.subr.mxu0 0.0
        %1414 = vmatpush1.msra.mxu0 %v1365
        %1415 = vmatprep.subr.mxu0 0.0
        %1416 = vmatpush1.msra.mxu0 %v1366
        %1417 = vmatprep.subr.mxu0 0.0
        %1418 = vmatpush1.msra.mxu0 %v1367
        %1419 = vmatprep.subr.mxu0 0.0
        %1420 = vmatpush1.msra.mxu0 %v1368
        %1421 = vmatprep.subr.mxu0 0.0
        %1422 = vmatpush1.msra.mxu0 %v1369
        %1423 = vmatprep.subr.mxu0 0.0
        %1424 = vmatpush1.msra.mxu0 %v1370
        %1425 = vmatprep.subr.mxu0 0.0
        %1426 = vmatpush1.msra.mxu0 %v1371
        %1427 = vmatprep.subr.mxu0 0.0
        %1428 = vmatpush1.msra.mxu0 %v1372
        %1429 = vmatprep.subr.mxu0 0.0
        %1430 = vmatpush1.msra.mxu0 %v1373
        %1431 = vmatprep.subr.mxu0 0.0
        %1432 = vmatpush1.msra.mxu0 0.0
        %1433 = vmatprep.subr.mxu0 0.0
        %1434 = vmatpush1.msra.mxu0 0.0
        %1435 = vmatprep.subr.mxu0 0.0
        %1436 = vmatpush1.msra.mxu0 0.0
        %1437 = vmatprep.subr.mxu0 0.0
        %1438 = vmatpush1.msra.mxu0 0.0
        %1439 = vmatprep.subr.mxu0 0.0
        %1440 = vmatpush1.msra.mxu0 0.0
        %1441 = vmatprep.subr.mxu0 0.0
        %1442 = vmatpush1.msra.mxu0 0.0
        %1443 = vmatprep.subr.mxu0 0.0
        %1444 = vmatpush1.msra.mxu0 0.0
        %1445 = vmatprep.subr.mxu0 0.0
        %1446 = vmatpush1.msra.mxu0 0.0
        %1447 = vmatprep.subr.mxu0 0.0
        %1448 = vmatpush1.msra.mxu0 0.0
        %1449 = vmatprep.subr.mxu0 0.0
        %1450 = vmatpush1.msra.mxu0 0.0
        %1451 = vmatprep.subr.mxu0 0.0
        %1452 = vmatpush1.msra.mxu0 0.0
        %1453 = vmatprep.subr.mxu0 0.0
        %1454 = vmatpush1.msra.mxu0 0.0
        %1455 = vmatprep.subr.mxu0 0.0
        %1456 = vmatpush1.msra.mxu0 0.0
        %1457 = vmatprep.subr.mxu0 0.0
        %1458 = vmatpush1.msra.mxu0 0.0
        %1459 = vmatprep.mubr.f32.mxu0 %v1391
        %1460 = vmatmul.mubr.f32.gmra.mrb[0].mxu0 %v1381
        %v1461 = vpop.f32.mrb[0].mxu0
        %v1462 = vadd.f32 0.0, %v1461
        %v1463 = vpop.f32.mrb[0].mxu0
        %1464 = vmatprep.mubr.f32.mxu0 %v1393
        %1465 = vmatmul.mubr.f32.gmra.mrb[0].mxu0 %v1386
        %v1466 = vpop.f32.mrb[0].mxu0
        %v1467 = vadd.f32 0.0, %v1466
        %v1468 = vpop.f32.mrb[0].mxu0
        %1469 = vdwg.mxu0
        %v1470 = vadd.f32 %v1343, %v1462
        %v1471 = vadd.f32 %v1348, %v1467
        %v1472 = vld [vmem:[%s9] sm:$0x1]
        %v1474 = vlaneseq
        %v1475 = vshrl.u32 %v1474, 7
        %v1476 = vsub.s32 0, %v1475
        %v1477 = vrot.slane %v1472, %v1476
        %v1479 = vadd.f32 %v1470, %v1477
        %v1480 = vadd.f32 %v1471, %v1477
        %v1481 = vadd.f32 %v1479, %v1480
        %v1482 = vrot.slane %v1481, 4
        %v1483 = vadd.f32 %v1481, %v1482
        %v1484 = vrot.slane %v1483, 2
        %v1485 = vadd.f32 %v1483, %v1484
        %v1486 = vrot.slane %v1485, 1
        %v1487 = vadd.f32 %v1485, %v1486
        %v1488 = vmul.f32 %v1479, %v1479
        %v1489 = vmul.f32 %v1480, %v1480
        %v1490 = vadd.f32 %v1488, %v1489
        %v1491 = vrot.slane %v1490, 4
        %v1492 = vadd.f32 %v1490, %v1491
        %v1493 = vrot.slane %v1492, 2
        %v1494 = vadd.f32 %v1492, %v1493
        %v1495 = vrot.slane %v1494, 1
        %v1496 = vadd.f32 %v1494, %v1495
        %v1497 = vld [vmem:[%s12] sm:$0x3]
        %v1498 = vmul.f32 %v1487, %v1497
        %v1499 = vsel %vm981, %v1498, 0.0
        %1500 = vadd.xlane.f32.xlu0 %v1499
        %v1501 = vpop.xlane.xlu0 %1500
        %v1502 = vrot.slane %v1501, 4
        %v1503 = vadd.f32 %v1501, %v1502
        %v1504 = vrot.slane %v1503, 2
        %v1505 = vadd.f32 %v1503, %v1504
        %v1506 = vrot.slane %v1505, 1
        %v1507 = vadd.f32 %v1505, %v1506
        %s1508 = vtos %v1507
        %v1509 = vstv %s1508
        %v1510 = vmul.f32 %v1509, %v993
        %v1511 = vmul.f32 %v1496, %v1497
        %v1512 = vsel %vm981, %v1511, 0.0
        %1513 = vadd.xlane.f32.xlu0 %v1512
        %v1514 = vpop.xlane.xlu0 %1513
        %v1515 = vrot.slane %v1514, 4
        %v1516 = vadd.f32 %v1514, %v1515
        %v1517 = vrot.slane %v1516, 2
        %v1518 = vadd.f32 %v1516, %v1517
        %v1519 = vrot.slane %v1518, 1
        %v1520 = vadd.f32 %v1518, %v1519
        %s1521 = vtos %v1520
        %v1522 = vstv %s1521
        %v1523 = vmul.f32 %v1522, %v993
        %v1524 = vmul.f32 %v1510, %v1510
        %v1525 = vsub.f32 %v1523, %v1524
        %v1526 = vmax.f32 %v1525, 0.0
        %v1527 = vmul.f32 %v1497, %v1510
        %v1528 = vadd.f32 %v1527, 0.0
        %v1529 = vadd.f32 %v1526, 1e-05
        %v1530 = vrsqrt.pop %v1529
        %v1531 = vmul.f32 %v1497, %v1530
        %v1532 = vadd.f32 %v1531, 0.0
        %v1534 = vrot.slane %v1498, 1
        %v1536 = vsel %vm981, %v1534, 0.0
        %1537 = vadd.xlane.f32.xlu0 %v1536
        %v1538 = vpop.xlane.xlu0 %1537
        %v1539 = vrot.slane %v1538, 4
        %v1540 = vadd.f32 %v1538, %v1539
        %v1541 = vrot.slane %v1540, 2
        %v1542 = vadd.f32 %v1540, %v1541
        %v1543 = vrot.slane %v1542, 1
        %v1544 = vadd.f32 %v1542, %v1543
        %s1545 = vtos %v1544
        %v1546 = vstv %s1545
        %v1547 = vmul.f32 %v1546, %v993
        %v1549 = vrot.slane %v1511, 1
        %v1551 = vsel %vm981, %v1549, 0.0
        %1552 = vadd.xlane.f32.xlu0 %v1551
        %v1553 = vpop.xlane.xlu0 %1552
        %v1554 = vrot.slane %v1553, 4
        %v1555 = vadd.f32 %v1553, %v1554
        %v1556 = vrot.slane %v1555, 2
        %v1557 = vadd.f32 %v1555, %v1556
        %v1558 = vrot.slane %v1557, 1
        %v1559 = vadd.f32 %v1557, %v1558
        %s1560 = vtos %v1559
        %v1561 = vstv %s1560
        %v1562 = vmul.f32 %v1561, %v993
        %v1563 = vmul.f32 %v1547, %v1547
        %v1564 = vsub.f32 %v1562, %v1563
        %v1565 = vmax.f32 %v1564, 0.0
        %v1566 = vmul.f32 %v1497, %v1547
        %v1568 = vrot.slane %v1566, 1
        %v1570 = vadd.f32 %v1528, %v1568
        %v1571 = vadd.f32 %v1565, 1e-05
        %v1572 = vrsqrt.pop %v1571
        %v1573 = vmul.f32 %v1497, %v1572
        %v1575 = vrot.slane %v1573, 1
        %v1577 = vadd.f32 %v1532, %v1575
        %v1578 = vlaneseq
        %v1579 = vshrl.u32 %v1578, 7
        %v1580 = vsub.s32 0, %v1579
        %v1581 = vrot.slane %v1570, %v1580
        %v1582 = vsub.f32 %v1479, %v1581
        %v1583 = vsub.f32 %v1480, %v1581
        %v1584 = vlaneseq
        %v1585 = vshrl.u32 %v1584, 7
        %v1586 = vsub.s32 0, %v1585
        %v1587 = vrot.slane %v1577, %v1586
        %v1588 = vmul.f32 %v1582, %v1587
        %v1589 = vmul.f32 %v1583, %v1587
        %v1590 = vld [vmem:[%s10] sm:$0x1]
        %v1592 = vlaneseq
        %v1593 = vshrl.u32 %v1592, 7
        %v1594 = vsub.s32 0, %v1593
        %v1595 = vrot.slane %v1590, %v1594
        %v1597 = vmul.f32 %v1588, %v1595
        %v1598 = vmul.f32 %v1589, %v1595
        %v1599 = vld [vmem:[%s11] sm:$0x1]
        %v1601 = vlaneseq
        %v1602 = vshrl.u32 %v1601, 7
        %v1603 = vsub.s32 0, %v1602
        %v1604 = vrot.slane %v1599, %v1603
        %v1606 = vadd.f32 %v1597, %v1604
        %v1607 = vadd.f32 %v1598, %v1604
        %v1608 = vmax.f32 %v1606, 0.0
        %v1609 = vmax.f32 %v1607, 0.0
        %1610 = vst [vmem:[#allocation4] sm:$0xff] 0.0
        %1611 = vst.msk [vmem:[#allocation4 + $0x8] sm:$0xff] %vm1095, 0.0
        %1612 = vst [vmem:[#allocation4 + $0x10] sm:$0xff] 0.0
        %1613 = vst.msk [vmem:[#allocation4 + $0x18] sm:$0xff] %vm1095, 0.0
        %1614 = vst [vmem:[#allocation4 + $0x20] sm:$0x3] 0.0
        %1615 = vst.msk [vmem:[#allocation4 + $0x28] sm:$0x3] %vm1100, 0.0
        %v1618 = vrot.slane %v1608, 7
        %v1619 = vrot.slane %v1609, 7
        %v1620 = vsel %vm981, %v1618, %v1619
        %1621 = vrot.lane.b32.xlu0 %v1618, 8
        %v1622 = vpop.permute.xlu0 %1621
        %1623 = vrot.lane.b32.xlu0 %v1620, 8
        %v1624 = vpop.permute.xlu0 %1623
        %1625 = vrot.lane.b32.xlu0 %v1619, 8
        %v1626 = vpop.permute.xlu0 %1625
        %1630 = vst.msk [vmem:[#allocation4] sm:$0xfe] %vm1116, %v1622
        %1631 = vst.msk [vmem:[#allocation4 + $0x8] sm:$0xfe] %vm1118, %v1622
        %1632 = vst.msk [vmem:[#allocation4 + $0x10] sm:$0xff] %vm1120, %v1624
        %1633 = vst.msk [vmem:[#allocation4 + $0x18] sm:$0xff] %vm1122, %v1624
        %1634 = vst.msk [vmem:[#allocation4 + $0x20] sm:$0x1] %vm1124, %v1626
        %1635 = vst.msk [vmem:[#allocation4 + $0x28] sm:$0x1] %vm1126, %v1626
        %v1636 = vld [vmem:[#allocation4] sm:$0xff]
        %v1637 = vld [vmem:[#allocation4 + $0x8] sm:$0xff]
        %v1638 = vld [vmem:[#allocation4 + $0x10] sm:$0xff]
        %v1639 = vld [vmem:[#allocation4 + $0x18] sm:$0xff]
        %v1640 = vld [vmem:[#allocation10] sm:$0xff]
        %v1641 = vld [vmem:[#allocation10 + $0x8] sm:$0xff]
        %v1642 = vld [vmem:[#allocation10 + $0x10] sm:$0xff]
        %v1643 = vld [vmem:[#allocation10 + $0x18] sm:$0xff]
        %v1644 = vld [vmem:[#allocation10 + $0x20] sm:$0xff]
        %v1645 = vld [vmem:[#allocation10 + $0x28] sm:$0xff]
        %v1646 = vld [vmem:[#allocation10 + $0x30] sm:$0xff]
        %v1647 = vld [vmem:[#allocation10 + $0x38] sm:$0xff]
        %v1648 = vld [vmem:[#allocation10 + $0x40] sm:$0xff]
        %v1649 = vld [vmem:[#allocation10 + $0x48] sm:$0xff]
        %v1650 = vld [vmem:[#allocation10 + $0x50] sm:$0xff]
        %v1651 = vld [vmem:[#allocation10 + $0x58] sm:$0xff]
        %v1652 = vld [vmem:[#allocation10 + $0x60] sm:$0xff]
        %v1653 = vld [vmem:[#allocation10 + $0x68] sm:$0xff]
        %v1654 = vld [vmem:[#allocation10 + $0x70] sm:$0xff]
        %v1655 = vld [vmem:[#allocation10 + $0x78] sm:$0xff]
        %v1656 = vld [vmem:[#allocation10 + $0x80] sm:$0xff]
        %v1657 = vld [vmem:[#allocation10 + $0x88] sm:$0xff]
        %v1658 = vld [vmem:[#allocation4] sm:$0xfe]
        %v1659 = vld [vmem:[#allocation4 + $0x8] sm:$0xfe]
        %v1660 = vld [vmem:[#allocation4 + $0x20] sm:$0x1]
        %v1661 = vld [vmem:[#allocation4 + $0x28] sm:$0x1]
        %s1662 = scalar_lea.vmem [#allocation10], 144
        %v1663 = vld [vmem:[%s1662] sm:$0xff]
        %v1664 = vld [vmem:[%s1662 + $0x8] sm:$0xff]
        %v1665 = vld [vmem:[%s1662 + $0x10] sm:$0xff]
        %v1666 = vld [vmem:[%s1662 + $0x18] sm:$0xff]
        %v1667 = vld [vmem:[%s1662 + $0x20] sm:$0xff]
        %v1668 = vld [vmem:[%s1662 + $0x28] sm:$0xff]
        %v1669 = vld [vmem:[%s1662 + $0x30] sm:$0xff]
        %v1670 = vld [vmem:[%s1662 + $0x38] sm:$0xff]
        %v1671 = vld [vmem:[%s1662 + $0x40] sm:$0xff]
        %v1672 = vld [vmem:[%s1662 + $0x48] sm:$0xff]
        %v1673 = vld [vmem:[%s1662 + $0x50] sm:$0xff]
        %v1674 = vld [vmem:[%s1662 + $0x58] sm:$0xff]
        %v1675 = vld [vmem:[%s1662 + $0x60] sm:$0xff]
        %v1676 = vld [vmem:[%s1662 + $0x68] sm:$0xff]
        %v1677 = vld [vmem:[%s1662 + $0x70] sm:$0xff]
        %v1678 = vld [vmem:[%s1662 + $0x78] sm:$0xff]
        %v1679 = vld [vmem:[%s1662 + $0x80] sm:$0xff]
        %v1680 = vld [vmem:[%s1662 + $0x88] sm:$0xff]
        %v1687 = vrot.slane %v1658, 1
        %v1688 = vrot.slane %v1638, 1
        %v1689 = vsel %vm1179, %v1687, %v1688
        %v1690 = vrot.slane %v1659, 1
        %v1691 = vrot.slane %v1639, 1
        %v1692 = vsel %vm1179, %v1690, %v1691
        %v1693 = vrot.slane %v1660, 1
        %v1694 = vsel %vm1179, %v1688, %v1693
        %v1695 = vrot.slane %v1661, 1
        %v1696 = vsel %vm1179, %v1691, %v1695
        %v1699 = vsel %vm1095, %v1692, 0
        %v1701 = vsel %vm1095, %v1696, 0
        %1703 = vmatprep.subr.mxu0 0.0
        %1704 = vmatpush1.msra.mxu0 %v1663
        %1705 = vmatprep.subr.mxu0 0.0
        %1706 = vmatpush1.msra.mxu0 %v1664
        %1707 = vmatprep.subr.mxu0 0.0
        %1708 = vmatpush1.msra.mxu0 %v1665
        %1709 = vmatprep.subr.mxu0 0.0
        %1710 = vmatpush1.msra.mxu0 %v1666
        %1711 = vmatprep.subr.mxu0 0.0
        %1712 = vmatpush1.msra.mxu0 %v1667
        %1713 = vmatprep.subr.mxu0 0.0
        %1714 = vmatpush1.msra.mxu0 %v1668
        %1715 = vmatprep.subr.mxu0 0.0
        %1716 = vmatpush1.msra.mxu0 %v1669
        %1717 = vmatprep.subr.mxu0 0.0
        %1718 = vmatpush1.msra.mxu0 %v1670
        %1719 = vmatprep.subr.mxu0 0.0
        %1720 = vmatpush1.msra.mxu0 %v1671
        %1721 = vmatprep.subr.mxu0 0.0
        %1722 = vmatpush1.msra.mxu0 %v1672
        %1723 = vmatprep.subr.mxu0 0.0
        %1724 = vmatpush1.msra.mxu0 %v1673
        %1725 = vmatprep.subr.mxu0 0.0
        %1726 = vmatpush1.msra.mxu0 %v1674
        %1727 = vmatprep.subr.mxu0 0.0
        %1728 = vmatpush1.msra.mxu0 %v1675
        %1729 = vmatprep.subr.mxu0 0.0
        %1730 = vmatpush1.msra.mxu0 %v1676
        %1731 = vmatprep.subr.mxu0 0.0
        %1732 = vmatpush1.msra.mxu0 %v1677
        %1733 = vmatprep.subr.mxu0 0.0
        %1734 = vmatpush1.msra.mxu0 %v1678
        %1735 = vmatprep.subr.mxu0 0.0
        %1736 = vmatpush1.msra.mxu0 %v1679
        %1737 = vmatprep.subr.mxu0 0.0
        %1738 = vmatpush1.msra.mxu0 %v1680
        %1739 = vmatprep.subr.mxu0 0.0
        %1740 = vmatpush1.msra.mxu0 0.0
        %1741 = vmatprep.subr.mxu0 0.0
        %1742 = vmatpush1.msra.mxu0 0.0
        %1743 = vmatprep.subr.mxu0 0.0
        %1744 = vmatpush1.msra.mxu0 0.0
        %1745 = vmatprep.subr.mxu0 0.0
        %1746 = vmatpush1.msra.mxu0 0.0
        %1747 = vmatprep.subr.mxu0 0.0
        %1748 = vmatpush1.msra.mxu0 0.0
        %1749 = vmatprep.subr.mxu0 0.0
        %1750 = vmatpush1.msra.mxu0 0.0
        %1751 = vmatprep.subr.mxu0 0.0
        %1752 = vmatpush1.msra.mxu0 0.0
        %1753 = vmatprep.subr.mxu0 0.0
        %1754 = vmatpush1.msra.mxu0 0.0
        %1755 = vmatprep.subr.mxu0 0.0
        %1756 = vmatpush1.msra.mxu0 0.0
        %1757 = vmatprep.subr.mxu0 0.0
        %1758 = vmatpush1.msra.mxu0 0.0
        %1759 = vmatprep.subr.mxu0 0.0
        %1760 = vmatpush1.msra.mxu0 0.0
        %1761 = vmatprep.subr.mxu0 0.0
        %1762 = vmatpush1.msra.mxu0 0.0
        %1763 = vmatprep.subr.mxu0 0.0
        %1764 = vmatpush1.msra.mxu0 0.0
        %1765 = vmatprep.subr.mxu0 0.0
        %1766 = vmatpush1.msra.mxu0 0.0
        %1767 = vmatprep.mubr.f32.mxu0 %v1699
        %1768 = vmatmul.mubr.f32.gmra.mrb[0].mxu0 %v1689
        %v1769 = vpop.f32.mrb[0].mxu0
        %v1770 = vadd.f32 0.0, %v1769
        %v1771 = vpop.f32.mrb[0].mxu0
        %1772 = vmatprep.mubr.f32.mxu0 %v1701
        %1773 = vmatmul.mubr.f32.gmra.mrb[0].mxu0 %v1694
        %v1774 = vpop.f32.mrb[0].mxu0
        %v1775 = vadd.f32 0.0, %v1774
        %v1776 = vpop.f32.mrb[0].mxu0
        %1777 = vdwg.mxu0
        %v1779 = vsel %vm1095, %v1637, 0
        %v1781 = vsel %vm1095, %v1639, 0
        %1783 = vmatprep.subr.mxu0 0.0
        %1784 = vmatpush1.msra.mxu0 %v1640
        %1785 = vmatprep.subr.mxu0 0.0
        %1786 = vmatpush1.msra.mxu0 %v1641
        %1787 = vmatprep.subr.mxu0 0.0
        %1788 = vmatpush1.msra.mxu0 %v1642
        %1789 = vmatprep.subr.mxu0 0.0
        %1790 = vmatpush1.msra.mxu0 %v1643
        %1791 = vmatprep.subr.mxu0 0.0
        %1792 = vmatpush1.msra.mxu0 %v1644
        %1793 = vmatprep.subr.mxu0 0.0
        %1794 = vmatpush1.msra.mxu0 %v1645
        %1795 = vmatprep.subr.mxu0 0.0
        %1796 = vmatpush1.msra.mxu0 %v1646
        %1797 = vmatprep.subr.mxu0 0.0
        %1798 = vmatpush1.msra.mxu0 %v1647
        %1799 = vmatprep.subr.mxu0 0.0
        %1800 = vmatpush1.msra.mxu0 %v1648
        %1801 = vmatprep.subr.mxu0 0.0
        %1802 = vmatpush1.msra.mxu0 %v1649
        %1803 = vmatprep.subr.mxu0 0.0
        %1804 = vmatpush1.msra.mxu0 %v1650
        %1805 = vmatprep.subr.mxu0 0.0
        %1806 = vmatpush1.msra.mxu0 %v1651
        %1807 = vmatprep.subr.mxu0 0.0
        %1808 = vmatpush1.msra.mxu0 %v1652
        %1809 = vmatprep.subr.mxu0 0.0
        %1810 = vmatpush1.msra.mxu0 %v1653
        %1811 = vmatprep.subr.mxu0 0.0
        %1812 = vmatpush1.msra.mxu0 %v1654
        %1813 = vmatprep.subr.mxu0 0.0
        %1814 = vmatpush1.msra.mxu0 %v1655
        %1815 = vmatprep.subr.mxu0 0.0
        %1816 = vmatpush1.msra.mxu0 %v1656
        %1817 = vmatprep.subr.mxu0 0.0
        %1818 = vmatpush1.msra.mxu0 %v1657
        %1819 = vmatprep.subr.mxu0 0.0
        %1820 = vmatpush1.msra.mxu0 0.0
        %1821 = vmatprep.subr.mxu0 0.0
        %1822 = vmatpush1.msra.mxu0 0.0
        %1823 = vmatprep.subr.mxu0 0.0
        %1824 = vmatpush1.msra.mxu0 0.0
        %1825 = vmatprep.subr.mxu0 0.0
        %1826 = vmatpush1.msra.mxu0 0.0
        %1827 = vmatprep.subr.mxu0 0.0
        %1828 = vmatpush1.msra.mxu0 0.0
        %1829 = vmatprep.subr.mxu0 0.0
        %1830 = vmatpush1.msra.mxu0 0.0
        %1831 = vmatprep.subr.mxu0 0.0
        %1832 = vmatpush1.msra.mxu0 0.0
        %1833 = vmatprep.subr.mxu0 0.0
        %1834 = vmatpush1.msra.mxu0 0.0
        %1835 = vmatprep.subr.mxu0 0.0
        %1836 = vmatpush1.msra.mxu0 0.0
        %1837 = vmatprep.subr.mxu0 0.0
        %1838 = vmatpush1.msra.mxu0 0.0
        %1839 = vmatprep.subr.mxu0 0.0
        %1840 = vmatpush1.msra.mxu0 0.0
        %1841 = vmatprep.subr.mxu0 0.0
        %1842 = vmatpush1.msra.mxu0 0.0
        %1843 = vmatprep.subr.mxu0 0.0
        %1844 = vmatpush1.msra.mxu0 0.0
        %1845 = vmatprep.subr.mxu0 0.0
        %1846 = vmatpush1.msra.mxu0 0.0
        %1847 = vmatprep.mubr.f32.mxu0 %v1779
        %1848 = vmatmul.mubr.f32.gmra.mrb[0].mxu0 %v1636
        %v1849 = vpop.f32.mrb[0].mxu0
        %v1850 = vadd.f32 %v1770, %v1849
        %v1851 = vpop.f32.mrb[0].mxu0
        %1852 = vmatprep.mubr.f32.mxu0 %v1781
        %1853 = vmatmul.mubr.f32.gmra.mrb[0].mxu0 %v1638
        %v1854 = vpop.f32.mrb[0].mxu0
        %v1855 = vadd.f32 %v1775, %v1854
        %v1856 = vpop.f32.mrb[0].mxu0
        %1857 = vdwg.mxu0
        %v1858 = vld [vmem:[#allocation4] sm:$0xfc]
        %v1859 = vld [vmem:[#allocation4 + $0x8] sm:$0xfc]
        %v1860 = vld [vmem:[#allocation4 + $0x20] sm:$0x3]
        %v1861 = vld [vmem:[#allocation4 + $0x28] sm:$0x3]
        %s1862 = scalar_lea.vmem [#allocation10], 288
        %v1863 = vld [vmem:[%s1862] sm:$0xff]
        %v1864 = vld [vmem:[%s1862 + $0x8] sm:$0xff]
        %v1865 = vld [vmem:[%s1862 + $0x10] sm:$0xff]
        %v1866 = vld [vmem:[%s1862 + $0x18] sm:$0xff]
        %v1867 = vld [vmem:[%s1862 + $0x20] sm:$0xff]
        %v1868 = vld [vmem:[%s1862 + $0x28] sm:$0xff]
        %v1869 = vld [vmem:[%s1862 + $0x30] sm:$0xff]
        %v1870 = vld [vmem:[%s1862 + $0x38] sm:$0xff]
        %v1871 = vld [vmem:[%s1862 + $0x40] sm:$0xff]
        %v1872 = vld [vmem:[%s1862 + $0x48] sm:$0xff]
        %v1873 = vld [vmem:[%s1862 + $0x50] sm:$0xff]
        %v1874 = vld [vmem:[%s1862 + $0x58] sm:$0xff]
        %v1875 = vld [vmem:[%s1862 + $0x60] sm:$0xff]
        %v1876 = vld [vmem:[%s1862 + $0x68] sm:$0xff]
        %v1877 = vld [vmem:[%s1862 + $0x70] sm:$0xff]
        %v1878 = vld [vmem:[%s1862 + $0x78] sm:$0xff]
        %v1879 = vld [vmem:[%s1862 + $0x80] sm:$0xff]
        %v1880 = vld [vmem:[%s1862 + $0x88] sm:$0xff]
        %v1885 = vrot.slane %v1858, 2
        %v1886 = vrot.slane %v1638, 2
        %v1887 = vsel %vm1378, %v1885, %v1886
        %v1888 = vrot.slane %v1859, 2
        %v1889 = vrot.slane %v1639, 2
        %v1890 = vsel %vm1378, %v1888, %v1889
        %v1891 = vrot.slane %v1860, 2
        %v1892 = vsel %vm1378, %v1886, %v1891
        %v1893 = vrot.slane %v1861, 2
        %v1894 = vsel %vm1378, %v1889, %v1893
        %v1897 = vsel %vm1095, %v1890, 0
        %v1899 = vsel %vm1095, %v1894, 0
        %1901 = vmatprep.subr.mxu0 0.0
        %1902 = vmatpush1.msra.mxu0 %v1863
        %1903 = vmatprep.subr.mxu0 0.0
        %1904 = vmatpush1.msra.mxu0 %v1864
        %1905 = vmatprep.subr.mxu0 0.0
        %1906 = vmatpush1.msra.mxu0 %v1865
        %1907 = vmatprep.subr.mxu0 0.0
        %1908 = vmatpush1.msra.mxu0 %v1866
        %1909 = vmatprep.subr.mxu0 0.0
        %1910 = vmatpush1.msra.mxu0 %v1867
        %1911 = vmatprep.subr.mxu0 0.0
        %1912 = vmatpush1.msra.mxu0 %v1868
        %1913 = vmatprep.subr.mxu0 0.0
        %1914 = vmatpush1.msra.mxu0 %v1869
        %1915 = vmatprep.subr.mxu0 0.0
        %1916 = vmatpush1.msra.mxu0 %v1870
        %1917 = vmatprep.subr.mxu0 0.0
        %1918 = vmatpush1.msra.mxu0 %v1871
        %1919 = vmatprep.subr.mxu0 0.0
        %1920 = vmatpush1.msra.mxu0 %v1872
        %1921 = vmatprep.subr.mxu0 0.0
        %1922 = vmatpush1.msra.mxu0 %v1873
        %1923 = vmatprep.subr.mxu0 0.0
        %1924 = vmatpush1.msra.mxu0 %v1874
        %1925 = vmatprep.subr.mxu0 0.0
        %1926 = vmatpush1.msra.mxu0 %v1875
        %1927 = vmatprep.subr.mxu0 0.0
        %1928 = vmatpush1.msra.mxu0 %v1876
        %1929 = vmatprep.subr.mxu0 0.0
        %1930 = vmatpush1.msra.mxu0 %v1877
        %1931 = vmatprep.subr.mxu0 0.0
        %1932 = vmatpush1.msra.mxu0 %v1878
        %1933 = vmatprep.subr.mxu0 0.0
        %1934 = vmatpush1.msra.mxu0 %v1879
        %1935 = vmatprep.subr.mxu0 0.0
        %1936 = vmatpush1.msra.mxu0 %v1880
        %1937 = vmatprep.subr.mxu0 0.0
        %1938 = vmatpush1.msra.mxu0 0.0
        %1939 = vmatprep.subr.mxu0 0.0
        %1940 = vmatpush1.msra.mxu0 0.0
        %1941 = vmatprep.subr.mxu0 0.0
        %1942 = vmatpush1.msra.mxu0 0.0
        %1943 = vmatprep.subr.mxu0 0.0
        %1944 = vmatpush1.msra.mxu0 0.0
        %1945 = vmatprep.subr.mxu0 0.0
        %1946 = vmatpush1.msra.mxu0 0.0
        %1947 = vmatprep.subr.mxu0 0.0
        %1948 = vmatpush1.msra.mxu0 0.0
        %1949 = vmatprep.subr.mxu0 0.0
        %1950 = vmatpush1.msra.mxu0 0.0
        %1951 = vmatprep.subr.mxu0 0.0
        %1952 = vmatpush1.msra.mxu0 0.0
        %1953 = vmatprep.subr.mxu0 0.0
        %1954 = vmatpush1.msra.mxu0 0.0
        %1955 = vmatprep.subr.mxu0 0.0
        %1956 = vmatpush1.msra.mxu0 0.0
        %1957 = vmatprep.subr.mxu0 0.0
        %1958 = vmatpush1.msra.mxu0 0.0
        %1959 = vmatprep.subr.mxu0 0.0
        %1960 = vmatpush1.msra.mxu0 0.0
        %1961 = vmatprep.subr.mxu0 0.0
        %1962 = vmatpush1.msra.mxu0 0.0
        %1963 = vmatprep.subr.mxu0 0.0
        %1964 = vmatpush1.msra.mxu0 0.0
        %1965 = vmatprep.mubr.f32.mxu0 %v1897
        %1966 = vmatmul.mubr.f32.gmra.mrb[0].mxu0 %v1887
        %v1967 = vpop.f32.mrb[0].mxu0
        %v1968 = vadd.f32 0.0, %v1967
        %v1969 = vpop.f32.mrb[0].mxu0
        %1970 = vmatprep.mubr.f32.mxu0 %v1899
        %1971 = vmatmul.mubr.f32.gmra.mrb[0].mxu0 %v1892
        %v1972 = vpop.f32.mrb[0].mxu0
        %v1973 = vadd.f32 0.0, %v1972
        %v1974 = vpop.f32.mrb[0].mxu0
        %1975 = vdwg.mxu0
        %v1976 = vadd.f32 %v1850, %v1968
        %v1977 = vadd.f32 %v1855, %v1973
        %v1978 = vld [vmem:[%s14] sm:$0x1]
        %v1980 = vlaneseq
        %v1981 = vshrl.u32 %v1980, 7
        %v1982 = vsub.s32 0, %v1981
        %v1983 = vrot.slane %v1978, %v1982
        %v1985 = vadd.f32 %v1976, %v1983
        %v1986 = vadd.f32 %v1977, %v1983
        %v1987 = vadd.f32 %v1985, %v1986
        %v1988 = vrot.slane %v1987, 4
        %v1989 = vadd.f32 %v1987, %v1988
        %v1990 = vrot.slane %v1989, 2
        %v1991 = vadd.f32 %v1989, %v1990
        %v1992 = vrot.slane %v1991, 1
        %v1993 = vadd.f32 %v1991, %v1992
        %v1994 = vmul.f32 %v1985, %v1985
        %v1995 = vmul.f32 %v1986, %v1986
        %v1996 = vadd.f32 %v1994, %v1995
        %v1997 = vrot.slane %v1996, 4
        %v1998 = vadd.f32 %v1996, %v1997
        %v1999 = vrot.slane %v1998, 2
        %v2000 = vadd.f32 %v1998, %v1999
        %v2001 = vrot.slane %v2000, 1
        %v2002 = vadd.f32 %v2000, %v2001
        %v2003 = vld [vmem:[%s17] sm:$0x3]
        %v2004 = vmul.f32 %v1993, %v2003
        %v2005 = vsel %vm981, %v2004, 0.0
        %2006 = vadd.xlane.f32.xlu0 %v2005
        %v2007 = vpop.xlane.xlu0 %2006
        %v2008 = vrot.slane %v2007, 4
        %v2009 = vadd.f32 %v2007, %v2008
        %v2010 = vrot.slane %v2009, 2
        %v2011 = vadd.f32 %v2009, %v2010
        %v2012 = vrot.slane %v2011, 1
        %v2013 = vadd.f32 %v2011, %v2012
        %s2014 = vtos %v2013
        %v2015 = vstv %s2014
        %v2016 = vmul.f32 %v2015, %v993
        %v2017 = vmul.f32 %v2002, %v2003
        %v2018 = vsel %vm981, %v2017, 0.0
        %2019 = vadd.xlane.f32.xlu0 %v2018
        %v2020 = vpop.xlane.xlu0 %2019
        %v2021 = vrot.slane %v2020, 4
        %v2022 = vadd.f32 %v2020, %v2021
        %v2023 = vrot.slane %v2022, 2
        %v2024 = vadd.f32 %v2022, %v2023
        %v2025 = vrot.slane %v2024, 1
        %v2026 = vadd.f32 %v2024, %v2025
        %s2027 = vtos %v2026
        %v2028 = vstv %s2027
        %v2029 = vmul.f32 %v2028, %v993
        %v2030 = vmul.f32 %v2016, %v2016
        %v2031 = vsub.f32 %v2029, %v2030
        %v2032 = vmax.f32 %v2031, 0.0
        %v2033 = vmul.f32 %v2003, %v2016
        %v2034 = vadd.f32 %v2033, 0.0
        %v2035 = vadd.f32 %v2032, 1e-05
        %v2036 = vrsqrt.pop %v2035
        %v2037 = vmul.f32 %v2003, %v2036
        %v2038 = vadd.f32 %v2037, 0.0
        %v2040 = vrot.slane %v2004, 1
        %v2042 = vsel %vm981, %v2040, 0.0
        %2043 = vadd.xlane.f32.xlu0 %v2042
        %v2044 = vpop.xlane.xlu0 %2043
        %v2045 = vrot.slane %v2044, 4
        %v2046 = vadd.f32 %v2044, %v2045
        %v2047 = vrot.slane %v2046, 2
        %v2048 = vadd.f32 %v2046, %v2047
        %v2049 = vrot.slane %v2048, 1
        %v2050 = vadd.f32 %v2048, %v2049
        %s2051 = vtos %v2050
        %v2052 = vstv %s2051
        %v2053 = vmul.f32 %v2052, %v993
        %v2055 = vrot.slane %v2017, 1
        %v2057 = vsel %vm981, %v2055, 0.0
        %2058 = vadd.xlane.f32.xlu0 %v2057
        %v2059 = vpop.xlane.xlu0 %2058
        %v2060 = vrot.slane %v2059, 4
        %v2061 = vadd.f32 %v2059, %v2060
        %v2062 = vrot.slane %v2061, 2
        %v2063 = vadd.f32 %v2061, %v2062
        %v2064 = vrot.slane %v2063, 1
        %v2065 = vadd.f32 %v2063, %v2064
        %s2066 = vtos %v2065
        %v2067 = vstv %s2066
        %v2068 = vmul.f32 %v2067, %v993
        %v2069 = vmul.f32 %v2053, %v2053
        %v2070 = vsub.f32 %v2068, %v2069
        %v2071 = vmax.f32 %v2070, 0.0
        %v2072 = vmul.f32 %v2003, %v2053
        %v2074 = vrot.slane %v2072, 1
        %v2076 = vadd.f32 %v2034, %v2074
        %v2077 = vadd.f32 %v2071, 1e-05
        %v2078 = vrsqrt.pop %v2077
        %v2079 = vmul.f32 %v2003, %v2078
        %v2081 = vrot.slane %v2079, 1
        %v2083 = vadd.f32 %v2038, %v2081
        %v2084 = vlaneseq
        %v2085 = vshrl.u32 %v2084, 7
        %v2086 = vsub.s32 0, %v2085
        %v2087 = vrot.slane %v2076, %v2086
        %v2088 = vsub.f32 %v1985, %v2087
        %v2089 = vsub.f32 %v1986, %v2087
        %v2090 = vlaneseq
        %v2091 = vshrl.u32 %v2090, 7
        %v2092 = vsub.s32 0, %v2091
        %v2093 = vrot.slane %v2083, %v2092
        %v2094 = vmul.f32 %v2088, %v2093
        %v2095 = vmul.f32 %v2089, %v2093
        %v2096 = vld [vmem:[%s15] sm:$0x1]
        %v2098 = vlaneseq
        %v2099 = vshrl.u32 %v2098, 7
        %v2100 = vsub.s32 0, %v2099
        %v2101 = vrot.slane %v2096, %v2100
        %v2103 = vmul.f32 %v2094, %v2101
        %v2104 = vmul.f32 %v2095, %v2101
        %v2105 = vld [vmem:[%s16] sm:$0x1]
        %v2107 = vlaneseq
        %v2108 = vshrl.u32 %v2107, 7
        %v2109 = vsub.s32 0, %v2108
        %v2110 = vrot.slane %v2105, %v2109
        %v2112 = vadd.f32 %v2103, %v2110
        %v2113 = vadd.f32 %v2104, %v2110
        %v2114 = vmax.f32 %v2112, 0.0
        %v2115 = vmax.f32 %v2113, 0.0
        %2116 = vst [vmem:[%s650] sm:$0xff] %v2114
        %2117 = vst [vmem:[%s650 + $0x8] sm:$0xff] %v2115
        %v2118 = vld [vmem:[%s1] sm:$0xff]
        %v2120 = vsel %vm1095, %v2118, 0
        %2122 = vmatprep.subr.mxu0 0.0
        %2123 = vmatpush1.msra.mxu0 %v2114
        %2124 = vmatprep.subr.mxu0 0.0
        %2125 = vmatpush1.msra.mxu0 %v2115
        %2126 = vmatprep.subr.mxu0 0.0
        %2127 = vmatpush1.msra.mxu0 0.0
        %2128 = vmatprep.subr.mxu0 0.0
        %2129 = vmatpush1.msra.mxu0 0.0
        %2130 = vmatprep.subr.mxu0 0.0
        %2131 = vmatpush1.msra.mxu0 0.0
        %2132 = vmatprep.subr.mxu0 0.0
        %2133 = vmatpush1.msra.mxu0 0.0
        %2134 = vmatprep.subr.mxu0 0.0
        %2135 = vmatpush1.msra.mxu0 0.0
        %2136 = vmatprep.subr.mxu0 0.0
        %2137 = vmatpush1.msra.mxu0 0.0
        %2138 = vmatprep.subr.mxu0 0.0
        %2139 = vmatpush1.msra.mxu0 0.0
        %2140 = vmatprep.subr.mxu0 0.0
        %2141 = vmatpush1.msra.mxu0 0.0
        %2142 = vmatprep.subr.mxu0 0.0
        %2143 = vmatpush1.msra.mxu0 0.0
        %2144 = vmatprep.subr.mxu0 0.0
        %2145 = vmatpush1.msra.mxu0 0.0
        %2146 = vmatprep.subr.mxu0 0.0
        %2147 = vmatpush1.msra.mxu0 0.0
        %2148 = vmatprep.subr.mxu0 0.0
        %2149 = vmatpush1.msra.mxu0 0.0
        %2150 = vmatprep.subr.mxu0 0.0
        %2151 = vmatpush1.msra.mxu0 0.0
        %2152 = vmatprep.subr.mxu0 0.0
        %2153 = vmatpush1.msra.mxu0 0.0
        %2154 = vmatprep.subr.mxu0 0.0
        %2155 = vmatpush1.msra.mxu0 0.0
        %2156 = vmatprep.subr.mxu0 0.0
        %2157 = vmatpush1.msra.mxu0 0.0
        %2158 = vmatprep.subr.mxu0 0.0
        %2159 = vmatpush1.msra.mxu0 0.0
        %2160 = vmatprep.subr.mxu0 0.0
        %2161 = vmatpush1.msra.mxu0 0.0
        %2162 = vmatprep.subr.mxu0 0.0
        %2163 = vmatpush1.msra.mxu0 0.0
        %2164 = vmatprep.subr.mxu0 0.0
        %2165 = vmatpush1.msra.mxu0 0.0
        %2166 = vmatprep.subr.mxu0 0.0
        %2167 = vmatpush1.msra.mxu0 0.0
        %2168 = vmatprep.subr.mxu0 0.0
        %2169 = vmatpush1.msra.mxu0 0.0
        %2170 = vmatprep.subr.mxu0 0.0
        %2171 = vmatpush1.msra.mxu0 0.0
        %2172 = vmatprep.subr.mxu0 0.0
        %2173 = vmatpush1.msra.mxu0 0.0
        %2174 = vmatprep.subr.mxu0 0.0
        %2175 = vmatpush1.msra.mxu0 0.0
        %2176 = vmatprep.subr.mxu0 0.0
        %2177 = vmatpush1.msra.mxu0 0.0
        %2178 = vmatprep.subr.mxu0 0.0
        %2179 = vmatpush1.msra.mxu0 0.0
        %2180 = vmatprep.subr.mxu0 0.0
        %2181 = vmatpush1.msra.mxu0 0.0
        %2182 = vmatprep.subr.mxu0 0.0
        %2183 = vmatpush1.msra.mxu0 0.0
        %2184 = vmatprep.subr.mxu0 0.0
        %2185 = vmatpush1.msra.mxu0 0.0
        %2186 = vmatprep.mubr.f32.mxu0 0.0
        %2187 = vmatmul.mubr.f32.gmra.mrb[0].mxu0 %v2120
        %v2188 = vpop.f32.mrb[0].mxu0
        %v2189 = vadd.f32 0.0, %v2188
        %v2190 = vpop.f32.mrb[0].mxu0
        %2191 = vdwg.mxu0
        %v2192 = vld [vmem:[%s2] sm:$0xff]
        %v2193 = vld [vmem:[%s2 + $0x8] sm:$0xff]
        %v2194 = vld [vmem:[%s2 + $0x10] sm:$0xff]
        %v2195 = vld [vmem:[%s2 + $0x18] sm:$0xff]
        %v2196 = vld [vmem:[%s2 + $0x20] sm:$0xff]
        %v2197 = vld [vmem:[%s2 + $0x28] sm:$0xff]
        %v2198 = vld [vmem:[%s2 + $0x30] sm:$0xff]
        %v2199 = vld [vmem:[%s2 + $0x38] sm:$0xff]
        %v2200 = vld [vmem:[%s2 + $0x40] sm:$0xff]
        %v2201 = vld [vmem:[%s2 + $0x48] sm:$0xff]
        %v2202 = vld [vmem:[%s2 + $0x50] sm:$0xff]
        %v2203 = vld [vmem:[%s2 + $0x58] sm:$0xff]
        %v2204 = vld [vmem:[%s2 + $0x60] sm:$0xff]
        %v2205 = vld [vmem:[%s2 + $0x68] sm:$0xff]
        %v2206 = vld [vmem:[%s2 + $0x70] sm:$0xff]
        %v2207 = vld [vmem:[%s2 + $0x78] sm:$0xff]
        %2208 = vmatprep.subr.mxu0 0.0
        %2209 = vmatpush1.msra.mxu0 %v2192
        %2210 = vmatprep.subr.mxu0 0.0
        %2211 = vmatpush1.msra.mxu0 %v2193
        %2212 = vmatprep.subr.mxu0 0.0
        %2213 = vmatpush1.msra.mxu0 %v2194
        %2214 = vmatprep.subr.mxu0 0.0
        %2215 = vmatpush1.msra.mxu0 %v2195
        %2216 = vmatprep.subr.mxu0 0.0
        %2217 = vmatpush1.msra.mxu0 %v2196
        %2218 = vmatprep.subr.mxu0 0.0
        %2219 = vmatpush1.msra.mxu0 %v2197
        %2220 = vmatprep.subr.mxu0 0.0
        %2221 = vmatpush1.msra.mxu0 %v2198
        %2222 = vmatprep.subr.mxu0 0.0
        %2223 = vmatpush1.msra.mxu0 %v2199
        %2224 = vmatprep.subr.mxu0 0.0
        %2225 = vmatpush1.msra.mxu0 %v2200
        %2226 = vmatprep.subr.mxu0 0.0
        %2227 = vmatpush1.msra.mxu0 %v2201
        %2228 = vmatprep.subr.mxu0 0.0
        %2229 = vmatpush1.msra.mxu0 %v2202
        %2230 = vmatprep.subr.mxu0 0.0
        %2231 = vmatpush1.msra.mxu0 %v2203
        %2232 = vmatprep.subr.mxu0 0.0
        %2233 = vmatpush1.msra.mxu0 %v2204
        %2234 = vmatprep.subr.mxu0 0.0
        %2235 = vmatpush1.msra.mxu0 %v2205
        %2236 = vmatprep.subr.mxu0 0.0
        %2237 = vmatpush1.msra.mxu0 %v2206
        %2238 = vmatprep.subr.mxu0 0.0
        %2239 = vmatpush1.msra.mxu0 %v2207
        %2240 = vmatprep.subr.mxu0 0.0
        %2241 = vmatpush1.msra.mxu0 0.0
        %2242 = vmatprep.subr.mxu0 0.0
        %2243 = vmatpush1.msra.mxu0 0.0
        %2244 = vmatprep.subr.mxu0 0.0
        %2245 = vmatpush1.msra.mxu0 0.0
        %2246 = vmatprep.subr.mxu0 0.0
        %2247 = vmatpush1.msra.mxu0 0.0
        %2248 = vmatprep.subr.mxu0 0.0
        %2249 = vmatpush1.msra.mxu0 0.0
        %2250 = vmatprep.subr.mxu0 0.0
        %2251 = vmatpush1.msra.mxu0 0.0
        %2252 = vmatprep.subr.mxu0 0.0
        %2253 = vmatpush1.msra.mxu0 0.0
        %2254 = vmatprep.subr.mxu0 0.0
        %2255 = vmatpush1.msra.mxu0 0.0
        %2256 = vmatprep.subr.mxu0 0.0
        %2257 = vmatpush1.msra.mxu0 0.0
        %2258 = vmatprep.subr.mxu0 0.0
        %2259 = vmatpush1.msra.mxu0 0.0
        %2260 = vmatprep.subr.mxu0 0.0
        %2261 = vmatpush1.msra.mxu0 0.0
        %2262 = vmatprep.subr.mxu0 0.0
        %2263 = vmatpush1.msra.mxu0 0.0
        %2264 = vmatprep.subr.mxu0 0.0
        %2265 = vmatpush1.msra.mxu0 0.0
        %2266 = vmatprep.subr.mxu0 0.0
        %2267 = vmatpush1.msra.mxu0 0.0
        %2268 = vmatprep.subr.mxu0 0.0
        %2269 = vmatpush1.msra.mxu0 0.0
        %2270 = vmatprep.subr.mxu0 0.0
        %2271 = vmatpush1.msra.mxu0 0.0
        %2272 = vmatprep.mubr.f32.mxu0 0.0
        %2273 = vmatmul.mubr.f32.gmra.mrb[0].mxu0 %v2189
        %v2274 = vpop.f32.mrb[0].mxu0
        %v2275 = vadd.f32 0.0, %v2274
        %v2276 = vpop.f32.mrb[0].mxu0
        %2277 = vdwg.mxu0
        %vm2278 = vcmask 523264
        %2279 = vst.msk [vmem:[%s643] sm:$0xff] %vm2278, %v2275
        %s2280 = sand.u32 %s430, 1
        %s2281 = scalar_lea.sflag [#allocation7], %s2280
        %s2282 = sand.u32 %s430, 1
        %s2283 = smul.addr %s2282, 8
        %s2284 = scalar_lea.vmem [#allocation11], %s2283
        %s2285 = sand.u32 %s456, 1
        %s2286 = scalar_lea.sflag [#allocation13], %s2285
        %s2287 = sand.u32 %s456, 1
        %s2288 = smul.addr %s2287, 16
        %s2289 = scalar_lea.vmem [#allocation12], %s2288
        // Predicated region
        $region105: #{tpu_custom_call.1} parent=91 // pred_check
          %p2290 = pneg %p440
        $region106: #{tpu_custom_call.1} parent=91 // pred_check_branch
          %2292 = sbr.rel (%p2290) target = $region108
        $region107: #{tpu_custom_call.1} parent=91 // pred_region
          %s2294 = ssub.s32 128, 128
          %2295 = vsyncadd %s2281, %s2294
          %s2296 = smul.addr %s39, 128
          %s2297 = scalar_lea.hbm %s18, %s2296
          %s2299 = sshll.u32 %s2284, 4
          %s2300 = int_to_ptr.vmem [resolvable:$true] %s2299
          %2302 = dma.vmem_to_hbm [thread:$0]  %s2300, 128, %s2297, %s2281
        $region108: #{tpu_custom_call.1} parent=91 // pred_fallthru
          _
        // Predicated region
        $region109: #{tpu_custom_call.1} parent=91 // pred_check
          %p2303 = pneg %p466
        $region110: #{tpu_custom_call.1} parent=91 // pred_check_branch
          %2305 = sbr.rel (%p2303) target = $region112
        $region111: #{tpu_custom_call.1} parent=91 // pred_region
          %s2307 = ssub.s32 256, 256
          %2308 = vsyncadd %s2286, %s2307
          %s2309 = smul.addr %s39, 2
          %s2310 = smul.addr %s2309, 128
          %s2311 = scalar_lea.hbm %s19, %s2310
          %s2312 = sshll.u32 %s2289, 4
          %s2313 = int_to_ptr.vmem [resolvable:$true] %s2312
          %2318 = dma.vmem_to_hbm [thread:$0]  %s2313, 256, %s2311, %s2286, 128, 128, 8
        $region112: #{tpu_custom_call.1} parent=91 // pred_fallthru
          _
      $region92: #{tpu_custom_call.1} parent=5 // pred_fallthru
        _
      %p2319 = scmp.le.s32.totalorder 2, %s34
      // Predicated region
      $region113: #{tpu_custom_call.1} parent=5 // pred_check
        %p2320 = pneg %p2319
      $region114: #{tpu_custom_call.1} parent=5 // pred_check_branch
        %2322 = sbr.rel (%p2320) target = $region116
      $region115: #{tpu_custom_call.1} parent=5 // pred_region
        %s2323 = ssub.s32 %s34, 2
        // Predicated region
        $region117: #{tpu_custom_call.1} parent=115 // pred_check
          %p2324 = pneg %p446
        $region118: #{tpu_custom_call.1} parent=115 // pred_check_branch
          %2326 = sbr.rel (%p2324) target = $region120
        $region119: #{tpu_custom_call.1} parent=115 // pred_region
          %s2327 = sand.u32 %s431, 1
          %s2328 = scalar_lea.sflag [#allocation7], %s2327
          %s2329 = sand.u32 %s431, 1
          %s2330 = smul.addr %s2329, 8
          %s2331 = scalar_lea.vmem [#allocation11], %s2330
          %2332 = dma.done %s2328, 128
        $region120: #{tpu_custom_call.1} parent=115 // pred_fallthru
          _
        // Predicated region
        $region121: #{tpu_custom_call.1} parent=115 // pred_check
          %p2333 = pneg %p472
        $region122: #{tpu_custom_call.1} parent=115 // pred_check_branch
          %2335 = sbr.rel (%p2333) target = $region124
        $region123: #{tpu_custom_call.1} parent=115 // pred_region
          %s2336 = sand.u32 %s457, 1
          %s2337 = scalar_lea.sflag [#allocation13], %s2336
          %s2338 = sand.u32 %s457, 1
          %s2339 = smul.addr %s2338, 16
          %s2340 = scalar_lea.vmem [#allocation12], %s2339
          %2341 = dma.done %s2337, 256
        $region124: #{tpu_custom_call.1} parent=115 // pred_fallthru
          _
      $region116: #{tpu_custom_call.1} parent=5 // pred_fallthru
        _
    $region6: #{tpu_custom_call.1} parent=1 // loop_footer
      %s38 = sadd.s32 1, %s34
    $region7: #{tpu_custom_call.1} parent=1 // loop_footer_branch
      %33 = sbr.rel target = $region3
    $region8: #{tpu_custom_call.1} parent=1 // loop_exit
      _
    %2342 = vsyncpa [#allocation6], 1
    %s2343 = scalar_lea.sflag [#allocation6], 1
    %2344 = vsyncpa %s2343, 1
    %2345 = vsyncpa [#allocation9], 1
    %2346 = vsyncpa [#allocation7], 1
    %s2347 = scalar_lea.sflag [#allocation7], 1
    %2348 = vsyncpa %s2347, 1
    %2349 = vsyncpa [#allocation13], 1
    %s2350 = scalar_lea.sflag [#allocation13], 1
    %2351 = vsyncpa %s2350, 1

</llo_original>
